<compile_context>
chip_gen: v7x
topology: tpu7x:2x2x1
jax: 0.10.0
libtpu: 0.0.40
codegen_flags: <defaults>
</compile_context>

<pallas_src>
import math

import jax
import jax.numpy as jnp
import numpy as np
from jax.experimental import pallas as pl
from jax.experimental.pallas import tpu as pltpu


# ------------------------------ Pallas wrapper -------------------------------
def solana_forward_pallas(x, p):
    B, S, F = x.shape
    C = p["conv1_w"].shape[0]
    H = p["lstm_v_whh"].shape[1]
    H2, G = 2 * H, 8 * H
    N = S * B
    eps = 1e-5
    f32 = jnp.float32

    def r8(n):  # 8-sublane-aligned packing offsets
        return ((n + 7) // 8) * 8

    # ---- BatchNorm folded to per-channel scale/shift (running stats) ----
    def bn_fold(g, b, rm, rv):
        sc = g / jnp.sqrt(rv + eps)
        return sc.astype(f32), (b - rm * sc).astype(f32)

    s1, t1 = bn_fold(p["bn1_gamma"], p["bn1_beta"], p["bn1_mean"], p["bn1_var"])
    s2, t2 = bn_fold(p["bn2_gamma"], p["bn2_beta"], p["bn2_mean"], p["bn2_var"])

    # ---- conv weights (Cout, Cin, 3) -> im2col (3*Cin, Cout), taps [s-1,s,s+1] ----
    def pack_conv(w):
        w = w.astype(f32)
        return jnp.transpose(w, (2, 1, 0)).reshape(3 * w.shape[1], w.shape[0])

    w1p = pack_conv(p["conv1_w"])                                   # (3F, C)
    w2p = pack_conv(p["conv2_w"])                                   # (3C, C)

    # ---- fused heads: col 0 = value head on h_v, col 1 = dir head on h_d ----
    fc32 = jnp.zeros((H2, C), f32)
    fc32 = fc32.at[0:H, 0].set(p["fc_v_w"][0].astype(f32))
    fc32 = fc32.at[H:H2, 1].set(p["fc_d_w"][0].astype(f32))
    fcb = jnp.zeros((C,), f32).at[0].set(p["fc_v_b"][0]).at[1].set(p["fc_d_b"][0])

    vec = jnp.stack([p["conv1_b"].astype(f32), s1, t1,
                     p["conv2_b"].astype(f32), s2, fcb], axis=0)    # (6, C)

    o_w1, o_w2 = 0, r8(3 * F)
    o_fc = o_w2 + r8(3 * C)
    o_vec = o_fc + r8(H2)
    params32 = jnp.zeros((o_vec + 6, C), f32)
    params32 = params32.at[o_w1:o_w1 + 3 * F].set(w1p)
    params32 = params32.at[o_w2:o_w2 + 3 * C].set(w2p)
    params32 = params32.at[o_fc:o_fc + H2].set(fc32)
    params32 = params32.at[o_vec:o_vec + 6].set(vec)

    # ---- fused LSTM weights; fused gate order [i_v,i_d, f_v,f_d, g_v,g_d, o_v,o_d] ----
    wv = p["lstm_v_wih"].astype(f32).T                              # (C, 4H) torch order i,f,g,o
    wd = p["lstm_d_wih"].astype(f32).T
    rv = p["lstm_v_whh"].astype(f32).T                              # (H, 4H)
    rd = p["lstm_d_whh"].astype(f32).T
    bv = (p["lstm_v_bih"] + p["lstm_v_bhh"]).astype(f32)
    bd = (p["lstm_d_bih"] + p["lstm_d_bhh"]).astype(f32)
    zH = jnp.zeros((H, H), f32)
    wih_cols, whh_cols, b_cols = [], [], []
    for k in range(4):
        sl = slice(k * H, (k + 1) * H)
        wih_cols += [wv[:, sl], wd[:, sl]]
        whh_cols += [jnp.concatenate([rv[:, sl], zH], axis=0),
                     jnp.concatenate([zH, rd[:, sl]], axis=0)]
        b_cols += [bv[sl], bd[sl]]
    wih_cat = jnp.concatenate(wih_cols, axis=1)                     # (C, 8H)
    whh_bd = jnp.concatenate(whh_cols, axis=1)                      # (2H, 8H) block-diag
    b_cat = jnp.concatenate(b_cols)                                 # (8H,)

    o_wih, o_whh = 0, r8(C)
    o_b = o_whh + r8(H2)
    lstm_w = jnp.zeros((o_b + 1, G), f32)
    lstm_w = lstm_w.at[o_wih:o_wih + C].set(wih_cat)
    lstm_w = lstm_w.at[o_whh:o_whh + H2].set(whh_bd)
    lstm_w = lstm_w.at[o_b].set(b_cat)

    # ---- time-major row arrays (row = s*B + b) ----
    tw = jax.nn.softmax(p["time_weights"].astype(f32))              # (S,)
    tw_rows = jnp.broadcast_to(jnp.repeat(tw, B)[:, None], (N, F))
    use_dims = min(p["pos_enc"].shape[1], C)
    pe = jnp.zeros((S, C), f32).at[:, :use_dims].set(
        p["pos_enc"][:S, :use_dims].astype(f32))
    pe_rows = jnp.repeat(pe, B, axis=0) + t2[None, :]               # bn2 shift folded in

    x_flat = jnp.transpose(x.astype(f32), (1, 0, 2)).reshape(N, F)

    # ------------------------------- kernel ----------------------------------
    def kernel(x_ref, tw_ref, pe_ref, p_ref, lw_ref, out_ref):
        def leaky(v):
            return jnp.where(v > 0, v, 0.2 * v)

        def conv3(inp, w):
            # im2col: [tap s-1 | tap s | tap s+1] along channels, one matmul.
            cin = inp.shape[1]
            zb = jnp.zeros((B, cin), f32)
            pad = jnp.concatenate([zb, inp, zb], axis=0)            # (N+2B, cin)
            taps = jnp.concatenate(
                [pad[0:N, :], pad[B:N + B, :], pad[2 * B:2 * B + N, :]], axis=1)
            return jnp.dot(taps, w, preferred_element_type=f32)

        w1 = p_ref[o_w1:o_w1 + 3 * F, :]
        w2 = p_ref[o_w2:o_w2 + 3 * C, :]
        fc = p_ref[o_fc:o_fc + H2, :]
        cb1 = p_ref[o_vec + 0:o_vec + 1, :]
        sc1 = p_ref[o_vec + 1:o_vec + 2, :]
        sh1 = p_ref[o_vec + 2:o_vec + 3, :]
        cb2 = p_ref[o_vec + 3:o_vec + 4, :]
        sc2 = p_ref[o_vec + 4:o_vec + 5, :]
        fcb_r = p_ref[o_vec + 5:o_vec + 6, :]

        # time-weighted input + CNN stack (BN folded; pos-enc/bn2 shift in pe_ref)
        xw = x_ref[...] * tw_ref[...]
        h1 = leaky(conv3(xw, w1) + cb1) * sc1 + sh1
        cnn = leaky(conv3(h1, w2) + cb2) * sc2 + pe_ref[...]
        # TODO(synk): Dropout(0.2) is eval-mode identity here (no in-kernel RNG mask).

        # fused input->hidden projection for BOTH LSTMs, all timesteps at once
        wih = lw_ref[o_wih:o_wih + C, :]
        whh = lw_ref[o_whh:o_whh + H2, :]
        bias = lw_ref[o_b:o_b + 1, :]
        xi = jnp.dot(cnn, wih, preferred_element_type=f32) + bias   # (N, 8H)

        # fused block-diagonal recurrence: 1 matmul + 1 sigmoid + 2 tanh per step
        h_cat = jnp.zeros((B, H2), f32)
        c_cat = jnp.zeros((B, H2), f32)
        for s in range(S):                                          # static unroll, S = 24
            gates = xi[s * B:(s + 1) * B, :] + jnp.dot(
                h_cat, whh, preferred_element_type=f32)             # (B, 8H)
            sg = jax.nn.sigmoid(gates)
            th = jnp.tanh(gates)
            c_cat = sg[:, H2:2 * H2] * c_cat + sg[:, 0:H2] * th[:, 2 * H2:3 * H2]
            h_cat = sg[:, 3 * H2:4 * H2] * jnp.tanh(c_cat)

        # fused heads: col 0 = value prediction, col 1 = direction logit
        heads = jnp.dot(h_cat, fc, preferred_element_type=f32) + fcb_r
        out_ref[...] = heads[:, 0:1] * (0.8 + 0.2 * jnp.tanh(heads[:, 1:2]))

    # Single grid point (everything is a few KiB and fits VMEM on v5e/v6e/v7x).
    return pl.pallas_call(
        kernel,
        out_shape=jax.ShapeDtypeStruct((B, 1), f32),
        in_specs=[pl.BlockSpec(memory_space=pltpu.MemorySpace.VMEM)] * 5,
        out_specs=pl.BlockSpec(memory_space=pltpu.MemorySpace.VMEM),
    )(x_flat, tw_rows, pe_rows, params32, lstm_w)


# --------------------------- pure-JAX reference ------------------------------
def solana_forward_reference(x, p):
    B, S, F = x.shape
    C = p["conv1_w"].shape[0]
    eps = 1e-5

    tw = jax.nn.softmax(p["time_weights"])
    xw = x * tw[None, :, None]
    xc = jnp.transpose(xw, (0, 2, 1))                               # (B, F, S)  (NCW)

    def conv1d(inp, w, b):                                          # torch Conv1d, pad=1
        pad = jnp.pad(inp, ((0, 0), (0, 0), (1, 1)))
        win = jnp.stack([pad[:, :, k:k + S] for k in range(3)], axis=0)
        return jnp.einsum('kbcs,ock->bos', win, w) + b[None, :, None]

    def leaky(v):
        return jnp.where(v > 0, v, 0.2 * v)

    def bn(v, g, be, rm, rv):
        return ((v - rm[None, :, None]) / jnp.sqrt(rv[None, :, None] + eps)
                * g[None, :, None] + be[None, :, None])

    h = bn(leaky(conv1d(xc, p["conv1_w"], p["conv1_b"])),
           p["bn1_gamma"], p["bn1_beta"], p["bn1_mean"], p["bn1_var"])
    h = bn(leaky(conv1d(h, p["conv2_w"], p["conv2_b"])),
           p["bn2_gamma"], p["bn2_beta"], p["bn2_mean"], p["bn2_var"])
    cnn_out = jnp.transpose(h, (0, 2, 1))                           # (B, S, C)
    use_dims = min(p["pos_enc"].shape[1], C)
    cnn_out = cnn_out.at[:, :, :use_dims].add(p["pos_enc"][None, :S, :use_dims])

    def lstm(inp, wih, whh, bih, bhh):
        Hh = whh.shape[1]

        def step(carry, x_t):
            hp, cp = carry
            gates = x_t @ wih.T + bih + hp @ whh.T + bhh
            i = jax.nn.sigmoid(gates[:, :Hh])
            f = jax.nn.sigmoid(gates[:, Hh:2 * Hh])
            g = jnp.tanh(gates[:, 2 * Hh:3 * Hh])
            o = jax.nn.sigmoid(gates[:, 3 * Hh:])
            cn = f * cp + i * g
            hn = o * jnp.tanh(cn)
            return (hn, cn), hn

        init = (jnp.zeros((B, Hh), jnp.float32), jnp.zeros((B, Hh), jnp.float32))
        _, hs = jax.lax.scan(step, init, jnp.transpose(inp, (1, 0, 2)))
        return hs[-1]

    hv = lstm(cnn_out, p["lstm_v_wih"], p["lstm_v_whh"], p["lstm_v_bih"], p["lstm_v_bhh"])
    hd = lstm(cnn_out, p["lstm_d_wih"], p["lstm_d_whh"], p["lstm_d_bih"], p["lstm_d_bhh"])
    value_pred = hv @ p["fc_v_w"].T + p["fc_v_b"]
    dir_logit = hd @ p["fc_d_w"].T + p["fc_d_b"]
    return value_pred * (0.8 + 0.2 * jnp.tanh(dir_logit))


# ------------------------------ param init -----------------------------------
def init_params(key, input_size, cnn_channels, lstm_hidden):
    ks = jax.random.split(key, 26)

    def nrm(k, shape, scale=0.1):
        return (scale * jax.random.normal(k, shape)).astype(jnp.float32)

    # positional encoding exactly as in SolanaPredictor.__init__
    position = jnp.arange(24, dtype=jnp.float32)[:, None]
    div_term = jnp.exp(jnp.arange(0, 8, 2, dtype=jnp.float32) * (-math.log(10000.0) / 8))
    pos_enc = jnp.zeros((24, 8), jnp.float32)
    pos_enc = pos_enc.at[:, 0::2].set(jnp.sin(position * div_term))
    pos_enc = pos_enc.at[:, 1::2].set(jnp.cos(position * div_term))

    C, H, F = cnn_channels, lstm_hidden, input_size
    return {
        "time_weights": jnp.ones((24,), jnp.float32) / 24 + nrm(ks[0], (24,), 0.05),
        "conv1_w": nrm(ks[1], (C, F, 3)),
        "conv1_b": nrm(ks[2], (C,)),
        "bn1_gamma": 1.0 + nrm(ks[3], (C,)),
        "bn1_beta": nrm(ks[4], (C,)),
        "bn1_mean": nrm(ks[5], (C,)),
        "bn1_var": 1.0 + jnp.abs(nrm(ks[6], (C,))),
        "conv2_w": nrm(ks[7], (C, C, 3)),
        "conv2_b": nrm(ks[8], (C,)),
        "bn2_gamma": 1.0 + nrm(ks[9], (C,)),
        "bn2_beta": nrm(ks[10], (C,)),
        "bn2_mean": nrm(ks[11], (C,)),
        "bn2_var": 1.0 + jnp.abs(nrm(ks[12], (C,))),
        "pos_enc": pos_enc,
        "lstm_v_wih": nrm(ks[13], (4 * H, C)),
        "lstm_v_whh": nrm(ks[14], (4 * H, H)),
        "lstm_v_bih": nrm(ks[15], (4 * H,)),
        "lstm_v_bhh": nrm(ks[16], (4 * H,)),
        "lstm_d_wih": nrm(ks[17], (4 * H, C)),
        "lstm_d_whh": nrm(ks[18], (4 * H, H)),
        "lstm_d_bih": nrm(ks[19], (4 * H,)),
        "lstm_d_bhh": nrm(ks[20], (4 * H,)),
        "fc_v_w": nrm(ks[21], (1, H)),
        "fc_v_b": nrm(ks[22], (1,)),
        "fc_d_w": nrm(ks[23], (1, H)),
        "fc_d_b": nrm(ks[24], (1,)),
    }


if __name__ == "__main__":
    # seq length is fixed to 24 by time_weights / pos_enc in the module.
    B, S, F = 2, 24, 8
    C, H = 32, 32

    key = jax.random.PRNGKey(0)
    kx, kp = jax.random.split(key)
    x = jax.random.normal(kx, (B, S, F), dtype=jnp.float32)
    params = init_params(kp, input_size=F, cnn_channels=C, lstm_hidden=H)

    out = jax.jit(solana_forward_pallas)(x, params)
    out = jax.block_until_ready(out)

    ref = jax.block_until_ready(solana_forward_reference(x, params))
    np.testing.assert_allclose(np.asarray(out), np.asarray(ref), rtol=2e-2, atol=2e-2)

    print("KERNEL_OK")
</pallas_src>

<mosaic_0001>
module attributes {stable_mosaic.version = 11 : i64} {
  func.func @kernel(%arg0: memref<48x8xf32, #tpu.memory_space<vmem>>, %arg1: memref<48x8xf32, #tpu.memory_space<vmem>>, %arg2: memref<48x32xf32, #tpu.memory_space<vmem>>, %arg3: memref<190x32xf32, #tpu.memory_space<vmem>>, %arg4: memref<97x256xf32, #tpu.memory_space<vmem>>, %arg5: memref<2x1xf32, #tpu.memory_space<vmem>>) attributes {dimension_semantics = [], scalar_prefetch = 0 : i64, scratch_operands = 0 : i64, tpu.core_type = #tpu.core_type<tc>} {
    %c0 = arith.constant 0 : index
    %c0_0 = arith.constant 0 : index
    %0 = vector.load %arg3[%c0, %c0_0] : memref<190x32xf32, #tpu.memory_space<vmem>>, vector<24x32xf32>
    %c24 = arith.constant 24 : index
    %c0_1 = arith.constant 0 : index
    %1 = vector.load %arg3[%c24, %c0_1] : memref<190x32xf32, #tpu.memory_space<vmem>>, vector<96x32xf32>
    %c120 = arith.constant 120 : index
    %c0_2 = arith.constant 0 : index
    %2 = vector.load %arg3[%c120, %c0_2] : memref<190x32xf32, #tpu.memory_space<vmem>>, vector<64x32xf32>
    %c184 = arith.constant 184 : index
    %c0_3 = arith.constant 0 : index
    %3 = vector.load %arg3[%c184, %c0_3] : memref<190x32xf32, #tpu.memory_space<vmem>>, vector<1x32xf32>
    %c185 = arith.constant 185 : index
    %c0_4 = arith.constant 0 : index
    %4 = vector.load %arg3[%c185, %c0_4] : memref<190x32xf32, #tpu.memory_space<vmem>>, vector<1x32xf32>
    %c186 = arith.constant 186 : index
    %c0_5 = arith.constant 0 : index
    %5 = vector.load %arg3[%c186, %c0_5] : memref<190x32xf32, #tpu.memory_space<vmem>>, vector<1x32xf32>
    %c187 = arith.constant 187 : index
    %c0_6 = arith.constant 0 : index
    %6 = vector.load %arg3[%c187, %c0_6] : memref<190x32xf32, #tpu.memory_space<vmem>>, vector<1x32xf32>
    %c188 = arith.constant 188 : index
    %c0_7 = arith.constant 0 : index
    %7 = vector.load %arg3[%c188, %c0_7] : memref<190x32xf32, #tpu.memory_space<vmem>>, vector<1x32xf32>
    %c189 = arith.constant 189 : index
    %c0_8 = arith.constant 0 : index
    %8 = vector.load %arg3[%c189, %c0_8] : memref<190x32xf32, #tpu.memory_space<vmem>>, vector<1x32xf32>
    %c0_9 = arith.constant 0 : index
    %c0_10 = arith.constant 0 : index
    %9 = vector.load %arg0[%c0_9, %c0_10] : memref<48x8xf32, #tpu.memory_space<vmem>>, vector<48x8xf32>
    %c0_11 = arith.constant 0 : index
    %c0_12 = arith.constant 0 : index
    %10 = vector.load %arg1[%c0_11, %c0_12] : memref<48x8xf32, #tpu.memory_space<vmem>>, vector<48x8xf32>
    %11 = arith.mulf %9, %10 : vector<48x8xf32>
    %cst = arith.constant 0.000000e+00 : f32
    %12 = vector.broadcast %cst : f32 to vector<2x8xf32>
    %13 = tpu.concatenate %12, %11, %12 in 0 : vector<2x8xf32>, vector<48x8xf32>, vector<2x8xf32> -> vector<52x8xf32>
    %14 = vector.extract_strided_slice %13 {offsets = [0, 0], sizes = [48, 8], strides = [1, 1]} : vector<52x8xf32> to vector<48x8xf32>
    %15 = vector.extract_strided_slice %13 {offsets = [2, 0], sizes = [48, 8], strides = [1, 1]} : vector<52x8xf32> to vector<48x8xf32>
    %16 = vector.extract_strided_slice %13 {offsets = [4, 0], sizes = [48, 8], strides = [1, 1]} : vector<52x8xf32> to vector<48x8xf32>
    %17 = tpu.concatenate %14, %15, %16 in 1 : vector<48x8xf32>, vector<48x8xf32>, vector<48x8xf32> -> vector<48x24xf32>
    %cst_13 = arith.constant dense<0.000000e+00> : vector<48x32xf32>
    %18 = tpu.matmul %17, %0, %cst_13 {dimension_numbers = #tpu.dot_dimension_numbers<[1], [0], [0], [1], [0, 0, 1, 1], [], []>} : vector<48x24xf32>, vector<24x32xf32>, vector<48x32xf32> -> vector<48x32xf32>
    %19 = vector.broadcast %3 : vector<1x32xf32> to vector<48x32xf32>
    %20 = arith.addf %18, %19 : vector<48x32xf32>
    %cst_14 = arith.constant 0.000000e+00 : f32
    %21 = vector.broadcast %cst_14 : f32 to vector<48x32xf32>
    %22 = arith.cmpf ogt, %20, %21 : vector<48x32xf32>
    %cst_15 = arith.constant 2.000000e-01 : f32
    %23 = vector.broadcast %cst_15 : f32 to vector<48x32xf32>
    %24 = arith.mulf %23, %20 : vector<48x32xf32>
    %25 = arith.select %22, %20, %24 : vector<48x32xi1>, vector<48x32xf32>
    %26 = vector.broadcast %4 : vector<1x32xf32> to vector<48x32xf32>
    %27 = arith.mulf %25, %26 : vector<48x32xf32>
    %28 = vector.broadcast %5 : vector<1x32xf32> to vector<48x32xf32>
    %29 = arith.addf %27, %28 : vector<48x32xf32>
    %cst_16 = arith.constant 0.000000e+00 : f32
    %30 = vector.broadcast %cst_16 : f32 to vector<2x32xf32>
    %31 = tpu.concatenate %30, %29, %30 in 0 : vector<2x32xf32>, vector<48x32xf32>, vector<2x32xf32> -> vector<52x32xf32>
    %32 = vector.extract_strided_slice %31 {offsets = [0, 0], sizes = [48, 32], strides = [1, 1]} : vector<52x32xf32> to vector<48x32xf32>
    %33 = vector.extract_strided_slice %31 {offsets = [2, 0], sizes = [48, 32], strides = [1, 1]} : vector<52x32xf32> to vector<48x32xf32>
    %34 = vector.extract_strided_slice %31 {offsets = [4, 0], sizes = [48, 32], strides = [1, 1]} : vector<52x32xf32> to vector<48x32xf32>
    %35 = tpu.concatenate %32, %33, %34 in 1 : vector<48x32xf32>, vector<48x32xf32>, vector<48x32xf32> -> vector<48x96xf32>
    %cst_17 = arith.constant dense<0.000000e+00> : vector<48x32xf32>
    %36 = tpu.matmul %35, %1, %cst_17 {dimension_numbers = #tpu.dot_dimension_numbers<[1], [0], [0], [1], [0, 0, 1, 1], [], []>} : vector<48x96xf32>, vector<96x32xf32>, vector<48x32xf32> -> vector<48x32xf32>
    %37 = vector.broadcast %6 : vector<1x32xf32> to vector<48x32xf32>
    %38 = arith.addf %36, %37 : vector<48x32xf32>
    %cst_18 = arith.constant 0.000000e+00 : f32
    %39 = vector.broadcast %cst_18 : f32 to vector<48x32xf32>
    %40 = arith.cmpf ogt, %38, %39 : vector<48x32xf32>
    %cst_19 = arith.constant 2.000000e-01 : f32
    %41 = vector.broadcast %cst_19 : f32 to vector<48x32xf32>
    %42 = arith.mulf %41, %38 : vector<48x32xf32>
    %43 = arith.select %40, %38, %42 : vector<48x32xi1>, vector<48x32xf32>
    %44 = vector.broadcast %7 : vector<1x32xf32> to vector<48x32xf32>
    %45 = arith.mulf %43, %44 : vector<48x32xf32>
    %c0_20 = arith.constant 0 : index
    %c0_21 = arith.constant 0 : index
    %46 = vector.load %arg2[%c0_20, %c0_21] : memref<48x32xf32, #tpu.memory_space<vmem>>, vector<48x32xf32>
    %47 = arith.addf %45, %46 : vector<48x32xf32>
    %c0_22 = arith.constant 0 : index
    %c0_23 = arith.constant 0 : index
    %48 = vector.load %arg4[%c0_22, %c0_23] : memref<97x256xf32, #tpu.memory_space<vmem>>, vector<32x256xf32>
    %c32 = arith.constant 32 : index
    %c0_24 = arith.constant 0 : index
    %49 = vector.load %arg4[%c32, %c0_24] : memref<97x256xf32, #tpu.memory_space<vmem>>, vector<64x256xf32>
    %c96 = arith.constant 96 : index
    %c0_25 = arith.constant 0 : index
    %50 = vector.load %arg4[%c96, %c0_25] : memref<97x256xf32, #tpu.memory_space<vmem>>, vector<1x256xf32>
    %cst_26 = arith.constant dense<0.000000e+00> : vector<48x256xf32>
    %51 = tpu.matmul %47, %48, %cst_26 {dimension_numbers = #tpu.dot_dimension_numbers<[1], [0], [0], [1], [0, 0, 1, 1], [], []>} : vector<48x32xf32>, vector<32x256xf32>, vector<48x256xf32> -> vector<48x256xf32>
    %52 = vector.broadcast %50 : vector<1x256xf32> to vector<48x256xf32>
    %53 = arith.addf %51, %52 : vector<48x256xf32>
    %cst_27 = arith.constant 0.000000e+00 : f32
    %54 = vector.broadcast %cst_27 : f32 to vector<2x64xf32>
    %cst_28 = arith.constant 0.000000e+00 : f32
    %55 = vector.broadcast %cst_28 : f32 to vector<2x64xf32>
    %56 = vector.extract_strided_slice %53 {offsets = [0, 0], sizes = [2, 256], strides = [1, 1]} : vector<48x256xf32> to vector<2x256xf32>
    %cst_29 = arith.constant dense<0.000000e+00> : vector<2x256xf32>
    %57 = tpu.matmul %54, %49, %cst_29 {dimension_numbers = #tpu.dot_dimension_numbers<[1], [0], [0], [1], [0, 0, 1, 1], [], []>} : vector<2x64xf32>, vector<64x256xf32>, vector<2x256xf32> -> vector<2x256xf32>
    %58 = arith.addf %56, %57 : vector<2x256xf32>
    %59 = arith.negf %58 : vector<2x256xf32>
    %60 = math.exp %59 : vector<2x256xf32>
    %cst_30 = arith.constant 1.000000e+00 : f32
    %61 = vector.broadcast %cst_30 : f32 to vector<2x256xf32>
    %62 = arith.addf %61, %60 : vector<2x256xf32>
    %63 = arith.divf %61, %62 : vector<2x256xf32>
    %64 = math.tanh %58 : vector<2x256xf32>
    %65 = vector.extract_strided_slice %63 {offsets = [0, 64], sizes = [2, 64], strides = [1, 1]} : vector<2x256xf32> to vector<2x64xf32>
    %66 = arith.mulf %65, %55 : vector<2x64xf32>
    %67 = vector.extract_strided_slice %63 {offsets = [0, 0], sizes = [2, 64], strides = [1, 1]} : vector<2x256xf32> to vector<2x64xf32>
    %68 = vector.extract_strided_slice %64 {offsets = [0, 128], sizes = [2, 64], strides = [1, 1]} : vector<2x256xf32> to vector<2x64xf32>
    %69 = arith.mulf %67, %68 : vector<2x64xf32>
    %70 = arith.addf %66, %69 : vector<2x64xf32>
    %71 = vector.extract_strided_slice %63 {offsets = [0, 192], sizes = [2, 64], strides = [1, 1]} : vector<2x256xf32> to vector<2x64xf32>
    %72 = math.tanh %70 : vector<2x64xf32>
    %73 = arith.mulf %71, %72 : vector<2x64xf32>
    %74 = vector.extract_strided_slice %53 {offsets = [2, 0], sizes = [2, 256], strides = [1, 1]} : vector<48x256xf32> to vector<2x256xf32>
    %cst_31 = arith.constant dense<0.000000e+00> : vector<2x256xf32>
    %75 = tpu.matmul %73, %49, %cst_31 {dimension_numbers = #tpu.dot_dimension_numbers<[1], [0], [0], [1], [0, 0, 1, 1], [], []>} : vector<2x64xf32>, vector<64x256xf32>, vector<2x256xf32> -> vector<2x256xf32>
    %76 = arith.addf %74, %75 : vector<2x256xf32>
    %77 = arith.negf %76 : vector<2x256xf32>
    %78 = math.exp %77 : vector<2x256xf32>
    %cst_32 = arith.constant 1.000000e+00 : f32
    %79 = vector.broadcast %cst_32 : f32 to vector<2x256xf32>
    %80 = arith.addf %79, %78 : vector<2x256xf32>
    %81 = arith.divf %79, %80 : vector<2x256xf32>
    %82 = math.tanh %76 : vector<2x256xf32>
    %83 = vector.extract_strided_slice %81 {offsets = [0, 64], sizes = [2, 64], strides = [1, 1]} : vector<2x256xf32> to vector<2x64xf32>
    %84 = arith.mulf %83, %70 : vector<2x64xf32>
    %85 = vector.extract_strided_slice %81 {offsets = [0, 0], sizes = [2, 64], strides = [1, 1]} : vector<2x256xf32> to vector<2x64xf32>
    %86 = vector.extract_strided_slice %82 {offsets = [0, 128], sizes = [2, 64], strides = [1, 1]} : vector<2x256xf32> to vector<2x64xf32>
    %87 = arith.mulf %85, %86 : vector<2x64xf32>
    %88 = arith.addf %84, %87 : vector<2x64xf32>
    %89 = vector.extract_strided_slice %81 {offsets = [0, 192], sizes = [2, 64], strides = [1, 1]} : vector<2x256xf32> to vector<2x64xf32>
    %90 = math.tanh %88 : vector<2x64xf32>
    %91 = arith.mulf %89, %90 : vector<2x64xf32>
    %92 = vector.extract_strided_slice %53 {offsets = [4, 0], sizes = [2, 256], strides = [1, 1]} : vector<48x256xf32> to vector<2x256xf32>
    %cst_33 = arith.constant dense<0.000000e+00> : vector<2x256xf32>
    %93 = tpu.matmul %91, %49, %cst_33 {dimension_numbers = #tpu.dot_dimension_numbers<[1], [0], [0], [1], [0, 0, 1, 1], [], []>} : vector<2x64xf32>, vector<64x256xf32>, vector<2x256xf32> -> vector<2x256xf32>
    %94 = arith.addf %92, %93 : vector<2x256xf32>
    %95 = arith.negf %94 : vector<2x256xf32>
    %96 = math.exp %95 : vector<2x256xf32>
    %cst_34 = arith.constant 1.000000e+00 : f32
    %97 = vector.broadcast %cst_34 : f32 to vector<2x256xf32>
    %98 = arith.addf %97, %96 : vector<2x256xf32>
    %99 = arith.divf %97, %98 : vector<2x256xf32>
    %100 = math.tanh %94 : vector<2x256xf32>
    %101 = vector.extract_strided_slice %99 {offsets = [0, 64], sizes = [2, 64], strides = [1, 1]} : vector<2x256xf32> to vector<2x64xf32>
    %102 = arith.mulf %101, %88 : vector<2x64xf32>
    %103 = vector.extract_strided_slice %99 {offsets = [0, 0], sizes = [2, 64], strides = [1, 1]} : vector<2x256xf32> to vector<2x64xf32>
    %104 = vector.extract_strided_slice %100 {offsets = [0, 128], sizes = [2, 64], strides = [1, 1]} : vector<2x256xf32> to vector<2x64xf32>
    %105 = arith.mulf %103, %104 : vector<2x64xf32>
    %106 = arith.addf %102, %105 : vector<2x64xf32>
    %107 = vector.extract_strided_slice %99 {offsets = [0, 192], sizes = [2, 64], strides = [1, 1]} : vector<2x256xf32> to vector<2x64xf32>
    %108 = math.tanh %106 : vector<2x64xf32>
    %109 = arith.mulf %107, %108 : vector<2x64xf32>
    %110 = vector.extract_strided_slice %53 {offsets = [6, 0], sizes = [2, 256], strides = [1, 1]} : vector<48x256xf32> to vector<2x256xf32>
    %cst_35 = arith.constant dense<0.000000e+00> : vector<2x256xf32>
    %111 = tpu.matmul %109, %49, %cst_35 {dimension_numbers = #tpu.dot_dimension_numbers<[1], [0], [0], [1], [0, 0, 1, 1], [], []>} : vector<2x64xf32>, vector<64x256xf32>, vector<2x256xf32> -> vector<2x256xf32>
    %112 = arith.addf %110, %111 : vector<2x256xf32>
    %113 = arith.negf %112 : vector<2x256xf32>
    %114 = math.exp %113 : vector<2x256xf32>
    %cst_36 = arith.constant 1.000000e+00 : f32
    %115 = vector.broadcast %cst_36 : f32 to vector<2x256xf32>
    %116 = arith.addf %115, %114 : vector<2x256xf32>
    %117 = arith.divf %115, %116 : vector<2x256xf32>
    %118 = math.tanh %112 : vector<2x256xf32>
    %119 = vector.extract_strided_slice %117 {offsets = [0, 64], sizes = [2, 64], strides = [1, 1]} : vector<2x256xf32> to vector<2x64xf32>
    %120 = arith.mulf %119, %106 : vector<2x64xf32>
    %121 = vector.extract_strided_slice %117 {offsets = [0, 0], sizes = [2, 64], strides = [1, 1]} : vector<2x256xf32> to vector<2x64xf32>
    %122 = vector.extract_strided_slice %118 {offsets = [0, 128], sizes = [2, 64], strides = [1, 1]} : vector<2x256xf32> to vector<2x64xf32>
    %123 = arith.mulf %121, %122 : vector<2x64xf32>
    %124 = arith.addf %120, %123 : vector<2x64xf32>
    %125 = vector.extract_strided_slice %117 {offsets = [0, 192], sizes = [2, 64], strides = [1, 1]} : vector<2x256xf32> to vector<2x64xf32>
    %126 = math.tanh %124 : vector<2x64xf32>
    %127 = arith.mulf %125, %126 : vector<2x64xf32>
    %128 = vector.extract_strided_slice %53 {offsets = [8, 0], sizes = [2, 256], strides = [1, 1]} : vector<48x256xf32> to vector<2x256xf32>
    %cst_37 = arith.constant dense<0.000000e+00> : vector<2x256xf32>
    %129 = tpu.matmul %127, %49, %cst_37 {dimension_numbers = #tpu.dot_dimension_numbers<[1], [0], [0], [1], [0, 0, 1, 1], [], []>} : vector<2x64xf32>, vector<64x256xf32>, vector<2x256xf32> -> vector<2x256xf32>
    %130 = arith.addf %128, %129 : vector<2x256xf32>
    %131 = arith.negf %130 : vector<2x256xf32>
    %132 = math.exp %131 : vector<2x256xf32>
    %cst_38 = arith.constant 1.000000e+00 : f32
    %133 = vector.broadcast %cst_38 : f32 to vector<2x256xf32>
    %134 = arith.addf %133, %132 : vector<2x256xf32>
    %135 = arith.divf %133, %134 : vector<2x256xf32>
    %136 = math.tanh %130 : vector<2x256xf32>
    %137 = vector.extract_strided_slice %135 {offsets = [0, 64], sizes = [2, 64], strides = [1, 1]} : vector<2x256xf32> to vector<2x64xf32>
    %138 = arith.mulf %137, %124 : vector<2x64xf32>
    %139 = vector.extract_strided_slice %135 {offsets = [0, 0], sizes = [2, 64], strides = [1, 1]} : vector<2x256xf32> to vector<2x64xf32>
    %140 = vector.extract_strided_slice %136 {offsets = [0, 128], sizes = [2, 64], strides = [1, 1]} : vector<2x256xf32> to vector<2x64xf32>
    %141 = arith.mulf %139, %140 : vector<2x64xf32>
    %142 = arith.addf %138, %141 : vector<2x64xf32>
    %143 = vector.extract_strided_slice %135 {offsets = [0, 192], sizes = [2, 64], strides = [1, 1]} : vector<2x256xf32> to vector<2x64xf32>
    %144 = math.tanh %142 : vector<2x64xf32>
    %145 = arith.mulf %143, %144 : vector<2x64xf32>
    %146 = vector.extract_strided_slice %53 {offsets = [10, 0], sizes = [2, 256], strides = [1, 1]} : vector<48x256xf32> to vector<2x256xf32>
    %cst_39 = arith.constant dense<0.000000e+00> : vector<2x256xf32>
    %147 = tpu.matmul %145, %49, %cst_39 {dimension_numbers = #tpu.dot_dimension_numbers<[1], [0], [0], [1], [0, 0, 1, 1], [], []>} : vector<2x64xf32>, vector<64x256xf32>, vector<2x256xf32> -> vector<2x256xf32>
    %148 = arith.addf %146, %147 : vector<2x256xf32>
    %149 = arith.negf %148 : vector<2x256xf32>
    %150 = math.exp %149 : vector<2x256xf32>
    %cst_40 = arith.constant 1.000000e+00 : f32
    %151 = vector.broadcast %cst_40 : f32 to vector<2x256xf32>
    %152 = arith.addf %151, %150 : vector<2x256xf32>
    %153 = arith.divf %151, %152 : vector<2x256xf32>
    %154 = math.tanh %148 : vector<2x256xf32>
    %155 = vector.extract_strided_slice %153 {offsets = [0, 64], sizes = [2, 64], strides = [1, 1]} : vector<2x256xf32> to vector<2x64xf32>
    %156 = arith.mulf %155, %142 : vector<2x64xf32>
    %157 = vector.extract_strided_slice %153 {offsets = [0, 0], sizes = [2, 64], strides = [1, 1]} : vector<2x256xf32> to vector<2x64xf32>
    %158 = vector.extract_strided_slice %154 {offsets = [0, 128], sizes = [2, 64], strides = [1, 1]} : vector<2x256xf32> to vector<2x64xf32>
    %159 = arith.mulf %157, %158 : vector<2x64xf32>
    %160 = arith.addf %156, %159 : vector<2x64xf32>
    %161 = vector.extract_strided_slice %153 {offsets = [0, 192], sizes = [2, 64], strides = [1, 1]} : vector<2x256xf32> to vector<2x64xf32>
    %162 = math.tanh %160 : vector<2x64xf32>
    %163 = arith.mulf %161, %162 : vector<2x64xf32>
    %164 = vector.extract_strided_slice %53 {offsets = [12, 0], sizes = [2, 256], strides = [1, 1]} : vector<48x256xf32> to vector<2x256xf32>
    %cst_41 = arith.constant dense<0.000000e+00> : vector<2x256xf32>
    %165 = tpu.matmul %163, %49, %cst_41 {dimension_numbers = #tpu.dot_dimension_numbers<[1], [0], [0], [1], [0, 0, 1, 1], [], []>} : vector<2x64xf32>, vector<64x256xf32>, vector<2x256xf32> -> vector<2x256xf32>
    %166 = arith.addf %164, %165 : vector<2x256xf32>
    %167 = arith.negf %166 : vector<2x256xf32>
    %168 = math.exp %167 : vector<2x256xf32>
    %cst_42 = arith.constant 1.000000e+00 : f32
    %169 = vector.broadcast %cst_42 : f32 to vector<2x256xf32>
    %170 = arith.addf %169, %168 : vector<2x256xf32>
    %171 = arith.divf %169, %170 : vector<2x256xf32>
    %172 = math.tanh %166 : vector<2x256xf32>
    %173 = vector.extract_strided_slice %171 {offsets = [0, 64], sizes = [2, 64], strides = [1, 1]} : vector<2x256xf32> to vector<2x64xf32>
    %174 = arith.mulf %173, %160 : vector<2x64xf32>
    %175 = vector.extract_strided_slice %171 {offsets = [0, 0], sizes = [2, 64], strides = [1, 1]} : vector<2x256xf32> to vector<2x64xf32>
    %176 = vector.extract_strided_slice %172 {offsets = [0, 128], sizes = [2, 64], strides = [1, 1]} : vector<2x256xf32> to vector<2x64xf32>
    %177 = arith.mulf %175, %176 : vector<2x64xf32>
    %178 = arith.addf %174, %177 : vector<2x64xf32>
    %179 = vector.extract_strided_slice %171 {offsets = [0, 192], sizes = [2, 64], strides = [1, 1]} : vector<2x256xf32> to vector<2x64xf32>
    %180 = math.tanh %178 : vector<2x64xf32>
    %181 = arith.mulf %179, %180 : vector<2x64xf32>
    %182 = vector.extract_strided_slice %53 {offsets = [14, 0], sizes = [2, 256], strides = [1, 1]} : vector<48x256xf32> to vector<2x256xf32>
    %cst_43 = arith.constant dense<0.000000e+00> : vector<2x256xf32>
    %183 = tpu.matmul %181, %49, %cst_43 {dimension_numbers = #tpu.dot_dimension_numbers<[1], [0], [0], [1], [0, 0, 1, 1], [], []>} : vector<2x64xf32>, vector<64x256xf32>, vector<2x256xf32> -> vector<2x256xf32>
    %184 = arith.addf %182, %183 : vector<2x256xf32>
    %185 = arith.negf %184 : vector<2x256xf32>
    %186 = math.exp %185 : vector<2x256xf32>
    %cst_44 = arith.constant 1.000000e+00 : f32
    %187 = vector.broadcast %cst_44 : f32 to vector<2x256xf32>
    %188 = arith.addf %187, %186 : vector<2x256xf32>
    %189 = arith.divf %187, %188 : vector<2x256xf32>
    %190 = math.tanh %184 : vector<2x256xf32>
    %191 = vector.extract_strided_slice %189 {offsets = [0, 64], sizes = [2, 64], strides = [1, 1]} : vector<2x256xf32> to vector<2x64xf32>
    %192 = arith.mulf %191, %178 : vector<2x64xf32>
    %193 = vector.extract_strided_slice %189 {offsets = [0, 0], sizes = [2, 64], strides = [1, 1]} : vector<2x256xf32> to vector<2x64xf32>
    %194 = vector.extract_strided_slice %190 {offsets = [0, 128], sizes = [2, 64], strides = [1, 1]} : vector<2x256xf32> to vector<2x64xf32>
    %195 = arith.mulf %193, %194 : vector<2x64xf32>
    %196 = arith.addf %192, %195 : vector<2x64xf32>
    %197 = vector.extract_strided_slice %189 {offsets = [0, 192], sizes = [2, 64], strides = [1, 1]} : vector<2x256xf32> to vector<2x64xf32>
    %198 = math.tanh %196 : vector<2x64xf32>
    %199 = arith.mulf %197, %198 : vector<2x64xf32>
    %200 = vector.extract_strided_slice %53 {offsets = [16, 0], sizes = [2, 256], strides = [1, 1]} : vector<48x256xf32> to vector<2x256xf32>
    %cst_45 = arith.constant dense<0.000000e+00> : vector<2x256xf32>
    %201 = tpu.matmul %199, %49, %cst_45 {dimension_numbers = #tpu.dot_dimension_numbers<[1], [0], [0], [1], [0, 0, 1, 1], [], []>} : vector<2x64xf32>, vector<64x256xf32>, vector<2x256xf32> -> vector<2x256xf32>
    %202 = arith.addf %200, %201 : vector<2x256xf32>
    %203 = arith.negf %202 : vector<2x256xf32>
    %204 = math.exp %203 : vector<2x256xf32>
    %cst_46 = arith.constant 1.000000e+00 : f32
    %205 = vector.broadcast %cst_46 : f32 to vector<2x256xf32>
    %206 = arith.addf %205, %204 : vector<2x256xf32>
    %207 = arith.divf %205, %206 : vector<2x256xf32>
    %208 = math.tanh %202 : vector<2x256xf32>
    %209 = vector.extract_strided_slice %207 {offsets = [0, 64], sizes = [2, 64], strides = [1, 1]} : vector<2x256xf32> to vector<2x64xf32>
    %210 = arith.mulf %209, %196 : vector<2x64xf32>
    %211 = vector.extract_strided_slice %207 {offsets = [0, 0], sizes = [2, 64], strides = [1, 1]} : vector<2x256xf32> to vector<2x64xf32>
    %212 = vector.extract_strided_slice %208 {offsets = [0, 128], sizes = [2, 64], strides = [1, 1]} : vector<2x256xf32> to vector<2x64xf32>
    %213 = arith.mulf %211, %212 : vector<2x64xf32>
    %214 = arith.addf %210, %213 : vector<2x64xf32>
    %215 = vector.extract_strided_slice %207 {offsets = [0, 192], sizes = [2, 64], strides = [1, 1]} : vector<2x256xf32> to vector<2x64xf32>
    %216 = math.tanh %214 : vector<2x64xf32>
    %217 = arith.mulf %215, %216 : vector<2x64xf32>
    %218 = vector.extract_strided_slice %53 {offsets = [18, 0], sizes = [2, 256], strides = [1, 1]} : vector<48x256xf32> to vector<2x256xf32>
    %cst_47 = arith.constant dense<0.000000e+00> : vector<2x256xf32>
    %219 = tpu.matmul %217, %49, %cst_47 {dimension_numbers = #tpu.dot_dimension_numbers<[1], [0], [0], [1], [0, 0, 1, 1], [], []>} : vector<2x64xf32>, vector<64x256xf32>, vector<2x256xf32> -> vector<2x256xf32>
    %220 = arith.addf %218, %219 : vector<2x256xf32>
    %221 = arith.negf %220 : vector<2x256xf32>
    %222 = math.exp %221 : vector<2x256xf32>
    %cst_48 = arith.constant 1.000000e+00 : f32
    %223 = vector.broadcast %cst_48 : f32 to vector<2x256xf32>
    %224 = arith.addf %223, %222 : vector<2x256xf32>
    %225 = arith.divf %223, %224 : vector<2x256xf32>
    %226 = math.tanh %220 : vector<2x256xf32>
    %227 = vector.extract_strided_slice %225 {offsets = [0, 64], sizes = [2, 64], strides = [1, 1]} : vector<2x256xf32> to vector<2x64xf32>
    %228 = arith.mulf %227, %214 : vector<2x64xf32>
    %229 = vector.extract_strided_slice %225 {offsets = [0, 0], sizes = [2, 64], strides = [1, 1]} : vector<2x256xf32> to vector<2x64xf32>
    %230 = vector.extract_strided_slice %226 {offsets = [0, 128], sizes = [2, 64], strides = [1, 1]} : vector<2x256xf32> to vector<2x64xf32>
    %231 = arith.mulf %229, %230 : vector<2x64xf32>
    %232 = arith.addf %228, %231 : vector<2x64xf32>
    %233 = vector.extract_strided_slice %225 {offsets = [0, 192], sizes = [2, 64], strides = [1, 1]} : vector<2x256xf32> to vector<2x64xf32>
    %234 = math.tanh %232 : vector<2x64xf32>
    %235 = arith.mulf %233, %234 : vector<2x64xf32>
    %236 = vector.extract_strided_slice %53 {offsets = [20, 0], sizes = [2, 256], strides = [1, 1]} : vector<48x256xf32> to vector<2x256xf32>
    %cst_49 = arith.constant dense<0.000000e+00> : vector<2x256xf32>
    %237 = tpu.matmul %235, %49, %cst_49 {dimension_numbers = #tpu.dot_dimension_numbers<[1], [0], [0], [1], [0, 0, 1, 1], [], []>} : vector<2x64xf32>, vector<64x256xf32>, vector<2x256xf32> -> vector<2x256xf32>
    %238 = arith.addf %236, %237 : vector<2x256xf32>
    %239 = arith.negf %238 : vector<2x256xf32>
    %240 = math.exp %239 : vector<2x256xf32>
    %cst_50 = arith.constant 1.000000e+00 : f32
    %241 = vector.broadcast %cst_50 : f32 to vector<2x256xf32>
    %242 = arith.addf %241, %240 : vector<2x256xf32>
    %243 = arith.divf %241, %242 : vector<2x256xf32>
    %244 = math.tanh %238 : vector<2x256xf32>
    %245 = vector.extract_strided_slice %243 {offsets = [0, 64], sizes = [2, 64], strides = [1, 1]} : vector<2x256xf32> to vector<2x64xf32>
    %246 = arith.mulf %245, %232 : vector<2x64xf32>
    %247 = vector.extract_strided_slice %243 {offsets = [0, 0], sizes = [2, 64], strides = [1, 1]} : vector<2x256xf32> to vector<2x64xf32>
    %248 = vector.extract_strided_slice %244 {offsets = [0, 128], sizes = [2, 64], strides = [1, 1]} : vector<2x256xf32> to vector<2x64xf32>
    %249 = arith.mulf %247, %248 : vector<2x64xf32>
    %250 = arith.addf %246, %249 : vector<2x64xf32>
    %251 = vector.extract_strided_slice %243 {offsets = [0, 192], sizes = [2, 64], strides = [1, 1]} : vector<2x256xf32> to vector<2x64xf32>
    %252 = math.tanh %250 : vector<2x64xf32>
    %253 = arith.mulf %251, %252 : vector<2x64xf32>
    %254 = vector.extract_strided_slice %53 {offsets = [22, 0], sizes = [2, 256], strides = [1, 1]} : vector<48x256xf32> to vector<2x256xf32>
    %cst_51 = arith.constant dense<0.000000e+00> : vector<2x256xf32>
    %255 = tpu.matmul %253, %49, %cst_51 {dimension_numbers = #tpu.dot_dimension_numbers<[1], [0], [0], [1], [0, 0, 1, 1], [], []>} : vector<2x64xf32>, vector<64x256xf32>, vector<2x256xf32> -> vector<2x256xf32>
    %256 = arith.addf %254, %255 : vector<2x256xf32>
    %257 = arith.negf %256 : vector<2x256xf32>
    %258 = math.exp %257 : vector<2x256xf32>
    %cst_52 = arith.constant 1.000000e+00 : f32
    %259 = vector.broadcast %cst_52 : f32 to vector<2x256xf32>
    %260 = arith.addf %259, %258 : vector<2x256xf32>
    %261 = arith.divf %259, %260 : vector<2x256xf32>
    %262 = math.tanh %256 : vector<2x256xf32>
    %263 = vector.extract_strided_slice %261 {offsets = [0, 64], sizes = [2, 64], strides = [1, 1]} : vector<2x256xf32> to vector<2x64xf32>
    %264 = arith.mulf %263, %250 : vector<2x64xf32>
    %265 = vector.extract_strided_slice %261 {offsets = [0, 0], sizes = [2, 64], strides = [1, 1]} : vector<2x256xf32> to vector<2x64xf32>
    %266 = vector.extract_strided_slice %262 {offsets = [0, 128], sizes = [2, 64], strides = [1, 1]} : vector<2x256xf32> to vector<2x64xf32>
    %267 = arith.mulf %265, %266 : vector<2x64xf32>
    %268 = arith.addf %264, %267 : vector<2x64xf32>
    %269 = vector.extract_strided_slice %261 {offsets = [0, 192], sizes = [2, 64], strides = [1, 1]} : vector<2x256xf32> to vector<2x64xf32>
    %270 = math.tanh %268 : vector<2x64xf32>
    %271 = arith.mulf %269, %270 : vector<2x64xf32>
    %272 = vector.extract_strided_slice %53 {offsets = [24, 0], sizes = [2, 256], strides = [1, 1]} : vector<48x256xf32> to vector<2x256xf32>
    %cst_53 = arith.constant dense<0.000000e+00> : vector<2x256xf32>
    %273 = tpu.matmul %271, %49, %cst_53 {dimension_numbers = #tpu.dot_dimension_numbers<[1], [0], [0], [1], [0, 0, 1, 1], [], []>} : vector<2x64xf32>, vector<64x256xf32>, vector<2x256xf32> -> vector<2x256xf32>
    %274 = arith.addf %272, %273 : vector<2x256xf32>
    %275 = arith.negf %274 : vector<2x256xf32>
    %276 = math.exp %275 : vector<2x256xf32>
    %cst_54 = arith.constant 1.000000e+00 : f32
    %277 = vector.broadcast %cst_54 : f32 to vector<2x256xf32>
    %278 = arith.addf %277, %276 : vector<2x256xf32>
    %279 = arith.divf %277, %278 : vector<2x256xf32>
    %280 = math.tanh %274 : vector<2x256xf32>
    %281 = vector.extract_strided_slice %279 {offsets = [0, 64], sizes = [2, 64], strides = [1, 1]} : vector<2x256xf32> to vector<2x64xf32>
    %282 = arith.mulf %281, %268 : vector<2x64xf32>
    %283 = vector.extract_strided_slice %279 {offsets = [0, 0], sizes = [2, 64], strides = [1, 1]} : vector<2x256xf32> to vector<2x64xf32>
    %284 = vector.extract_strided_slice %280 {offsets = [0, 128], sizes = [2, 64], strides = [1, 1]} : vector<2x256xf32> to vector<2x64xf32>
    %285 = arith.mulf %283, %284 : vector<2x64xf32>
    %286 = arith.addf %282, %285 : vector<2x64xf32>
    %287 = vector.extract_strided_slice %279 {offsets = [0, 192], sizes = [2, 64], strides = [1, 1]} : vector<2x256xf32> to vector<2x64xf32>
    %288 = math.tanh %286 : vector<2x64xf32>
    %289 = arith.mulf %287, %288 : vector<2x64xf32>
    %290 = vector.extract_strided_slice %53 {offsets = [26, 0], sizes = [2, 256], strides = [1, 1]} : vector<48x256xf32> to vector<2x256xf32>
    %cst_55 = arith.constant dense<0.000000e+00> : vector<2x256xf32>
    %291 = tpu.matmul %289, %49, %cst_55 {dimension_numbers = #tpu.dot_dimension_numbers<[1], [0], [0], [1], [0, 0, 1, 1], [], []>} : vector<2x64xf32>, vector<64x256xf32>, vector<2x256xf32> -> vector<2x256xf32>
    %292 = arith.addf %290, %291 : vector<2x256xf32>
    %293 = arith.negf %292 : vector<2x256xf32>
    %294 = math.exp %293 : vector<2x256xf32>
    %cst_56 = arith.constant 1.000000e+00 : f32
    %295 = vector.broadcast %cst_56 : f32 to vector<2x256xf32>
    %296 = arith.addf %295, %294 : vector<2x256xf32>
    %297 = arith.divf %295, %296 : vector<2x256xf32>
    %298 = math.tanh %292 : vector<2x256xf32>
    %299 = vector.extract_strided_slice %297 {offsets = [0, 64], sizes = [2, 64], strides = [1, 1]} : vector<2x256xf32> to vector<2x64xf32>
    %300 = arith.mulf %299, %286 : vector<2x64xf32>
    %301 = vector.extract_strided_slice %297 {offsets = [0, 0], sizes = [2, 64], strides = [1, 1]} : vector<2x256xf32> to vector<2x64xf32>
    %302 = vector.extract_strided_slice %298 {offsets = [0, 128], sizes = [2, 64], strides = [1, 1]} : vector<2x256xf32> to vector<2x64xf32>
    %303 = arith.mulf %301, %302 : vector<2x64xf32>
    %304 = arith.addf %300, %303 : vector<2x64xf32>
    %305 = vector.extract_strided_slice %297 {offsets = [0, 192], sizes = [2, 64], strides = [1, 1]} : vector<2x256xf32> to vector<2x64xf32>
    %306 = math.tanh %304 : vector<2x64xf32>
    %307 = arith.mulf %305, %306 : vector<2x64xf32>
    %308 = vector.extract_strided_slice %53 {offsets = [28, 0], sizes = [2, 256], strides = [1, 1]} : vector<48x256xf32> to vector<2x256xf32>
    %cst_57 = arith.constant dense<0.000000e+00> : vector<2x256xf32>
    %309 = tpu.matmul %307, %49, %cst_57 {dimension_numbers = #tpu.dot_dimension_numbers<[1], [0], [0], [1], [0, 0, 1, 1], [], []>} : vector<2x64xf32>, vector<64x256xf32>, vector<2x256xf32> -> vector<2x256xf32>
    %310 = arith.addf %308, %309 : vector<2x256xf32>
    %311 = arith.negf %310 : vector<2x256xf32>
    %312 = math.exp %311 : vector<2x256xf32>
    %cst_58 = arith.constant 1.000000e+00 : f32
    %313 = vector.broadcast %cst_58 : f32 to vector<2x256xf32>
    %314 = arith.addf %313, %312 : vector<2x256xf32>
    %315 = arith.divf %313, %314 : vector<2x256xf32>
    %316 = math.tanh %310 : vector<2x256xf32>
    %317 = vector.extract_strided_slice %315 {offsets = [0, 64], sizes = [2, 64], strides = [1, 1]} : vector<2x256xf32> to vector<2x64xf32>
    %318 = arith.mulf %317, %304 : vector<2x64xf32>
    %319 = vector.extract_strided_slice %315 {offsets = [0, 0], sizes = [2, 64], strides = [1, 1]} : vector<2x256xf32> to vector<2x64xf32>
    %320 = vector.extract_strided_slice %316 {offsets = [0, 128], sizes = [2, 64], strides = [1, 1]} : vector<2x256xf32> to vector<2x64xf32>
    %321 = arith.mulf %319, %320 : vector<2x64xf32>
    %322 = arith.addf %318, %321 : vector<2x64xf32>
    %323 = vector.extract_strided_slice %315 {offsets = [0, 192], sizes = [2, 64], strides = [1, 1]} : vector<2x256xf32> to vector<2x64xf32>
    %324 = math.tanh %322 : vector<2x64xf32>
    %325 = arith.mulf %323, %324 : vector<2x64xf32>
    %326 = vector.extract_strided_slice %53 {offsets = [30, 0], sizes = [2, 256], strides = [1, 1]} : vector<48x256xf32> to vector<2x256xf32>
    %cst_59 = arith.constant dense<0.000000e+00> : vector<2x256xf32>
    %327 = tpu.matmul %325, %49, %cst_59 {dimension_numbers = #tpu.dot_dimension_numbers<[1], [0], [0], [1], [0, 0, 1, 1], [], []>} : vector<2x64xf32>, vector<64x256xf32>, vector<2x256xf32> -> vector<2x256xf32>
    %328 = arith.addf %326, %327 : vector<2x256xf32>
    %329 = arith.negf %328 : vector<2x256xf32>
    %330 = math.exp %329 : vector<2x256xf32>
    %cst_60 = arith.constant 1.000000e+00 : f32
    %331 = vector.broadcast %cst_60 : f32 to vector<2x256xf32>
    %332 = arith.addf %331, %330 : vector<2x256xf32>
    %333 = arith.divf %331, %332 : vector<2x256xf32>
    %334 = math.tanh %328 : vector<2x256xf32>
    %335 = vector.extract_strided_slice %333 {offsets = [0, 64], sizes = [2, 64], strides = [1, 1]} : vector<2x256xf32> to vector<2x64xf32>
    %336 = arith.mulf %335, %322 : vector<2x64xf32>
    %337 = vector.extract_strided_slice %333 {offsets = [0, 0], sizes = [2, 64], strides = [1, 1]} : vector<2x256xf32> to vector<2x64xf32>
    %338 = vector.extract_strided_slice %334 {offsets = [0, 128], sizes = [2, 64], strides = [1, 1]} : vector<2x256xf32> to vector<2x64xf32>
    %339 = arith.mulf %337, %338 : vector<2x64xf32>
    %340 = arith.addf %336, %339 : vector<2x64xf32>
    %341 = vector.extract_strided_slice %333 {offsets = [0, 192], sizes = [2, 64], strides = [1, 1]} : vector<2x256xf32> to vector<2x64xf32>
    %342 = math.tanh %340 : vector<2x64xf32>
    %343 = arith.mulf %341, %342 : vector<2x64xf32>
    %344 = vector.extract_strided_slice %53 {offsets = [32, 0], sizes = [2, 256], strides = [1, 1]} : vector<48x256xf32> to vector<2x256xf32>
    %cst_61 = arith.constant dense<0.000000e+00> : vector<2x256xf32>
    %345 = tpu.matmul %343, %49, %cst_61 {dimension_numbers = #tpu.dot_dimension_numbers<[1], [0], [0], [1], [0, 0, 1, 1], [], []>} : vector<2x64xf32>, vector<64x256xf32>, vector<2x256xf32> -> vector<2x256xf32>
    %346 = arith.addf %344, %345 : vector<2x256xf32>
    %347 = arith.negf %346 : vector<2x256xf32>
    %348 = math.exp %347 : vector<2x256xf32>
    %cst_62 = arith.constant 1.000000e+00 : f32
    %349 = vector.broadcast %cst_62 : f32 to vector<2x256xf32>
    %350 = arith.addf %349, %348 : vector<2x256xf32>
    %351 = arith.divf %349, %350 : vector<2x256xf32>
    %352 = math.tanh %346 : vector<2x256xf32>
    %353 = vector.extract_strided_slice %351 {offsets = [0, 64], sizes = [2, 64], strides = [1, 1]} : vector<2x256xf32> to vector<2x64xf32>
    %354 = arith.mulf %353, %340 : vector<2x64xf32>
    %355 = vector.extract_strided_slice %351 {offsets = [0, 0], sizes = [2, 64], strides = [1, 1]} : vector<2x256xf32> to vector<2x64xf32>
    %356 = vector.extract_strided_slice %352 {offsets = [0, 128], sizes = [2, 64], strides = [1, 1]} : vector<2x256xf32> to vector<2x64xf32>
    %357 = arith.mulf %355, %356 : vector<2x64xf32>
    %358 = arith.addf %354, %357 : vector<2x64xf32>
    %359 = vector.extract_strided_slice %351 {offsets = [0, 192], sizes = [2, 64], strides = [1, 1]} : vector<2x256xf32> to vector<2x64xf32>
    %360 = math.tanh %358 : vector<2x64xf32>
    %361 = arith.mulf %359, %360 : vector<2x64xf32>
    %362 = vector.extract_strided_slice %53 {offsets = [34, 0], sizes = [2, 256], strides = [1, 1]} : vector<48x256xf32> to vector<2x256xf32>
    %cst_63 = arith.constant dense<0.000000e+00> : vector<2x256xf32>
    %363 = tpu.matmul %361, %49, %cst_63 {dimension_numbers = #tpu.dot_dimension_numbers<[1], [0], [0], [1], [0, 0, 1, 1], [], []>} : vector<2x64xf32>, vector<64x256xf32>, vector<2x256xf32> -> vector<2x256xf32>
    %364 = arith.addf %362, %363 : vector<2x256xf32>
    %365 = arith.negf %364 : vector<2x256xf32>
    %366 = math.exp %365 : vector<2x256xf32>
    %cst_64 = arith.constant 1.000000e+00 : f32
    %367 = vector.broadcast %cst_64 : f32 to vector<2x256xf32>
    %368 = arith.addf %367, %366 : vector<2x256xf32>
    %369 = arith.divf %367, %368 : vector<2x256xf32>
    %370 = math.tanh %364 : vector<2x256xf32>
    %371 = vector.extract_strided_slice %369 {offsets = [0, 64], sizes = [2, 64], strides = [1, 1]} : vector<2x256xf32> to vector<2x64xf32>
    %372 = arith.mulf %371, %358 : vector<2x64xf32>
    %373 = vector.extract_strided_slice %369 {offsets = [0, 0], sizes = [2, 64], strides = [1, 1]} : vector<2x256xf32> to vector<2x64xf32>
    %374 = vector.extract_strided_slice %370 {offsets = [0, 128], sizes = [2, 64], strides = [1, 1]} : vector<2x256xf32> to vector<2x64xf32>
    %375 = arith.mulf %373, %374 : vector<2x64xf32>
    %376 = arith.addf %372, %375 : vector<2x64xf32>
    %377 = vector.extract_strided_slice %369 {offsets = [0, 192], sizes = [2, 64], strides = [1, 1]} : vector<2x256xf32> to vector<2x64xf32>
    %378 = math.tanh %376 : vector<2x64xf32>
    %379 = arith.mulf %377, %378 : vector<2x64xf32>
    %380 = vector.extract_strided_slice %53 {offsets = [36, 0], sizes = [2, 256], strides = [1, 1]} : vector<48x256xf32> to vector<2x256xf32>
    %cst_65 = arith.constant dense<0.000000e+00> : vector<2x256xf32>
    %381 = tpu.matmul %379, %49, %cst_65 {dimension_numbers = #tpu.dot_dimension_numbers<[1], [0], [0], [1], [0, 0, 1, 1], [], []>} : vector<2x64xf32>, vector<64x256xf32>, vector<2x256xf32> -> vector<2x256xf32>
    %382 = arith.addf %380, %381 : vector<2x256xf32>
    %383 = arith.negf %382 : vector<2x256xf32>
    %384 = math.exp %383 : vector<2x256xf32>
    %cst_66 = arith.constant 1.000000e+00 : f32
    %385 = vector.broadcast %cst_66 : f32 to vector<2x256xf32>
    %386 = arith.addf %385, %384 : vector<2x256xf32>
    %387 = arith.divf %385, %386 : vector<2x256xf32>
    %388 = math.tanh %382 : vector<2x256xf32>
    %389 = vector.extract_strided_slice %387 {offsets = [0, 64], sizes = [2, 64], strides = [1, 1]} : vector<2x256xf32> to vector<2x64xf32>
    %390 = arith.mulf %389, %376 : vector<2x64xf32>
    %391 = vector.extract_strided_slice %387 {offsets = [0, 0], sizes = [2, 64], strides = [1, 1]} : vector<2x256xf32> to vector<2x64xf32>
    %392 = vector.extract_strided_slice %388 {offsets = [0, 128], sizes = [2, 64], strides = [1, 1]} : vector<2x256xf32> to vector<2x64xf32>
    %393 = arith.mulf %391, %392 : vector<2x64xf32>
    %394 = arith.addf %390, %393 : vector<2x64xf32>
    %395 = vector.extract_strided_slice %387 {offsets = [0, 192], sizes = [2, 64], strides = [1, 1]} : vector<2x256xf32> to vector<2x64xf32>
    %396 = math.tanh %394 : vector<2x64xf32>
    %397 = arith.mulf %395, %396 : vector<2x64xf32>
    %398 = vector.extract_strided_slice %53 {offsets = [38, 0], sizes = [2, 256], strides = [1, 1]} : vector<48x256xf32> to vector<2x256xf32>
    %cst_67 = arith.constant dense<0.000000e+00> : vector<2x256xf32>
    %399 = tpu.matmul %397, %49, %cst_67 {dimension_numbers = #tpu.dot_dimension_numbers<[1], [0], [0], [1], [0, 0, 1, 1], [], []>} : vector<2x64xf32>, vector<64x256xf32>, vector<2x256xf32> -> vector<2x256xf32>
    %400 = arith.addf %398, %399 : vector<2x256xf32>
    %401 = arith.negf %400 : vector<2x256xf32>
    %402 = math.exp %401 : vector<2x256xf32>
    %cst_68 = arith.constant 1.000000e+00 : f32
    %403 = vector.broadcast %cst_68 : f32 to vector<2x256xf32>
    %404 = arith.addf %403, %402 : vector<2x256xf32>
    %405 = arith.divf %403, %404 : vector<2x256xf32>
    %406 = math.tanh %400 : vector<2x256xf32>
    %407 = vector.extract_strided_slice %405 {offsets = [0, 64], sizes = [2, 64], strides = [1, 1]} : vector<2x256xf32> to vector<2x64xf32>
    %408 = arith.mulf %407, %394 : vector<2x64xf32>
    %409 = vector.extract_strided_slice %405 {offsets = [0, 0], sizes = [2, 64], strides = [1, 1]} : vector<2x256xf32> to vector<2x64xf32>
    %410 = vector.extract_strided_slice %406 {offsets = [0, 128], sizes = [2, 64], strides = [1, 1]} : vector<2x256xf32> to vector<2x64xf32>
    %411 = arith.mulf %409, %410 : vector<2x64xf32>
    %412 = arith.addf %408, %411 : vector<2x64xf32>
    %413 = vector.extract_strided_slice %405 {offsets = [0, 192], sizes = [2, 64], strides = [1, 1]} : vector<2x256xf32> to vector<2x64xf32>
    %414 = math.tanh %412 : vector<2x64xf32>
    %415 = arith.mulf %413, %414 : vector<2x64xf32>
    %416 = vector.extract_strided_slice %53 {offsets = [40, 0], sizes = [2, 256], strides = [1, 1]} : vector<48x256xf32> to vector<2x256xf32>
    %cst_69 = arith.constant dense<0.000000e+00> : vector<2x256xf32>
    %417 = tpu.matmul %415, %49, %cst_69 {dimension_numbers = #tpu.dot_dimension_numbers<[1], [0], [0], [1], [0, 0, 1, 1], [], []>} : vector<2x64xf32>, vector<64x256xf32>, vector<2x256xf32> -> vector<2x256xf32>
    %418 = arith.addf %416, %417 : vector<2x256xf32>
    %419 = arith.negf %418 : vector<2x256xf32>
    %420 = math.exp %419 : vector<2x256xf32>
    %cst_70 = arith.constant 1.000000e+00 : f32
    %421 = vector.broadcast %cst_70 : f32 to vector<2x256xf32>
    %422 = arith.addf %421, %420 : vector<2x256xf32>
    %423 = arith.divf %421, %422 : vector<2x256xf32>
    %424 = math.tanh %418 : vector<2x256xf32>
    %425 = vector.extract_strided_slice %423 {offsets = [0, 64], sizes = [2, 64], strides = [1, 1]} : vector<2x256xf32> to vector<2x64xf32>
    %426 = arith.mulf %425, %412 : vector<2x64xf32>
    %427 = vector.extract_strided_slice %423 {offsets = [0, 0], sizes = [2, 64], strides = [1, 1]} : vector<2x256xf32> to vector<2x64xf32>
    %428 = vector.extract_strided_slice %424 {offsets = [0, 128], sizes = [2, 64], strides = [1, 1]} : vector<2x256xf32> to vector<2x64xf32>
    %429 = arith.mulf %427, %428 : vector<2x64xf32>
    %430 = arith.addf %426, %429 : vector<2x64xf32>
    %431 = vector.extract_strided_slice %423 {offsets = [0, 192], sizes = [2, 64], strides = [1, 1]} : vector<2x256xf32> to vector<2x64xf32>
    %432 = math.tanh %430 : vector<2x64xf32>
    %433 = arith.mulf %431, %432 : vector<2x64xf32>
    %434 = vector.extract_strided_slice %53 {offsets = [42, 0], sizes = [2, 256], strides = [1, 1]} : vector<48x256xf32> to vector<2x256xf32>
    %cst_71 = arith.constant dense<0.000000e+00> : vector<2x256xf32>
    %435 = tpu.matmul %433, %49, %cst_71 {dimension_numbers = #tpu.dot_dimension_numbers<[1], [0], [0], [1], [0, 0, 1, 1], [], []>} : vector<2x64xf32>, vector<64x256xf32>, vector<2x256xf32> -> vector<2x256xf32>
    %436 = arith.addf %434, %435 : vector<2x256xf32>
    %437 = arith.negf %436 : vector<2x256xf32>
    %438 = math.exp %437 : vector<2x256xf32>
    %cst_72 = arith.constant 1.000000e+00 : f32
    %439 = vector.broadcast %cst_72 : f32 to vector<2x256xf32>
    %440 = arith.addf %439, %438 : vector<2x256xf32>
    %441 = arith.divf %439, %440 : vector<2x256xf32>
    %442 = math.tanh %436 : vector<2x256xf32>
    %443 = vector.extract_strided_slice %441 {offsets = [0, 64], sizes = [2, 64], strides = [1, 1]} : vector<2x256xf32> to vector<2x64xf32>
    %444 = arith.mulf %443, %430 : vector<2x64xf32>
    %445 = vector.extract_strided_slice %441 {offsets = [0, 0], sizes = [2, 64], strides = [1, 1]} : vector<2x256xf32> to vector<2x64xf32>
    %446 = vector.extract_strided_slice %442 {offsets = [0, 128], sizes = [2, 64], strides = [1, 1]} : vector<2x256xf32> to vector<2x64xf32>
    %447 = arith.mulf %445, %446 : vector<2x64xf32>
    %448 = arith.addf %444, %447 : vector<2x64xf32>
    %449 = vector.extract_strided_slice %441 {offsets = [0, 192], sizes = [2, 64], strides = [1, 1]} : vector<2x256xf32> to vector<2x64xf32>
    %450 = math.tanh %448 : vector<2x64xf32>
    %451 = arith.mulf %449, %450 : vector<2x64xf32>
    %452 = vector.extract_strided_slice %53 {offsets = [44, 0], sizes = [2, 256], strides = [1, 1]} : vector<48x256xf32> to vector<2x256xf32>
    %cst_73 = arith.constant dense<0.000000e+00> : vector<2x256xf32>
    %453 = tpu.matmul %451, %49, %cst_73 {dimension_numbers = #tpu.dot_dimension_numbers<[1], [0], [0], [1], [0, 0, 1, 1], [], []>} : vector<2x64xf32>, vector<64x256xf32>, vector<2x256xf32> -> vector<2x256xf32>
    %454 = arith.addf %452, %453 : vector<2x256xf32>
    %455 = arith.negf %454 : vector<2x256xf32>
    %456 = math.exp %455 : vector<2x256xf32>
    %cst_74 = arith.constant 1.000000e+00 : f32
    %457 = vector.broadcast %cst_74 : f32 to vector<2x256xf32>
    %458 = arith.addf %457, %456 : vector<2x256xf32>
    %459 = arith.divf %457, %458 : vector<2x256xf32>
    %460 = math.tanh %454 : vector<2x256xf32>
    %461 = vector.extract_strided_slice %459 {offsets = [0, 64], sizes = [2, 64], strides = [1, 1]} : vector<2x256xf32> to vector<2x64xf32>
    %462 = arith.mulf %461, %448 : vector<2x64xf32>
    %463 = vector.extract_strided_slice %459 {offsets = [0, 0], sizes = [2, 64], strides = [1, 1]} : vector<2x256xf32> to vector<2x64xf32>
    %464 = vector.extract_strided_slice %460 {offsets = [0, 128], sizes = [2, 64], strides = [1, 1]} : vector<2x256xf32> to vector<2x64xf32>
    %465 = arith.mulf %463, %464 : vector<2x64xf32>
    %466 = arith.addf %462, %465 : vector<2x64xf32>
    %467 = vector.extract_strided_slice %459 {offsets = [0, 192], sizes = [2, 64], strides = [1, 1]} : vector<2x256xf32> to vector<2x64xf32>
    %468 = math.tanh %466 : vector<2x64xf32>
    %469 = arith.mulf %467, %468 : vector<2x64xf32>
    %470 = vector.extract_strided_slice %53 {offsets = [46, 0], sizes = [2, 256], strides = [1, 1]} : vector<48x256xf32> to vector<2x256xf32>
    %cst_75 = arith.constant dense<0.000000e+00> : vector<2x256xf32>
    %471 = tpu.matmul %469, %49, %cst_75 {dimension_numbers = #tpu.dot_dimension_numbers<[1], [0], [0], [1], [0, 0, 1, 1], [], []>} : vector<2x64xf32>, vector<64x256xf32>, vector<2x256xf32> -> vector<2x256xf32>
    %472 = arith.addf %470, %471 : vector<2x256xf32>
    %473 = arith.negf %472 : vector<2x256xf32>
    %474 = math.exp %473 : vector<2x256xf32>
    %cst_76 = arith.constant 1.000000e+00 : f32
    %475 = vector.broadcast %cst_76 : f32 to vector<2x256xf32>
    %476 = arith.addf %475, %474 : vector<2x256xf32>
    %477 = arith.divf %475, %476 : vector<2x256xf32>
    %478 = math.tanh %472 : vector<2x256xf32>
    %479 = vector.extract_strided_slice %477 {offsets = [0, 64], sizes = [2, 64], strides = [1, 1]} : vector<2x256xf32> to vector<2x64xf32>
    %480 = arith.mulf %479, %466 : vector<2x64xf32>
    %481 = vector.extract_strided_slice %477 {offsets = [0, 0], sizes = [2, 64], strides = [1, 1]} : vector<2x256xf32> to vector<2x64xf32>
    %482 = vector.extract_strided_slice %478 {offsets = [0, 128], sizes = [2, 64], strides = [1, 1]} : vector<2x256xf32> to vector<2x64xf32>
    %483 = arith.mulf %481, %482 : vector<2x64xf32>
    %484 = arith.addf %480, %483 : vector<2x64xf32>
    %485 = vector.extract_strided_slice %477 {offsets = [0, 192], sizes = [2, 64], strides = [1, 1]} : vector<2x256xf32> to vector<2x64xf32>
    %486 = math.tanh %484 : vector<2x64xf32>
    %487 = arith.mulf %485, %486 : vector<2x64xf32>
    %cst_77 = arith.constant dense<0.000000e+00> : vector<2x32xf32>
    %488 = tpu.matmul %487, %2, %cst_77 {dimension_numbers = #tpu.dot_dimension_numbers<[1], [0], [0], [1], [0, 0, 1, 1], [], []>} : vector<2x64xf32>, vector<64x32xf32>, vector<2x32xf32> -> vector<2x32xf32>
    %489 = vector.broadcast %8 : vector<1x32xf32> to vector<2x32xf32>
    %490 = arith.addf %488, %489 : vector<2x32xf32>
    %491 = vector.extract_strided_slice %490 {offsets = [0, 0], sizes = [2, 1], strides = [1, 1]} : vector<2x32xf32> to vector<2x1xf32>
    %492 = vector.extract_strided_slice %490 {offsets = [0, 1], sizes = [2, 1], strides = [1, 1]} : vector<2x32xf32> to vector<2x1xf32>
    %493 = math.tanh %492 : vector<2x1xf32>
    %cst_78 = arith.constant 2.000000e-01 : f32
    %494 = vector.broadcast %cst_78 : f32 to vector<2x1xf32>
    %495 = arith.mulf %494, %493 : vector<2x1xf32>
    %cst_79 = arith.constant 8.000000e-01 : f32
    %496 = vector.broadcast %cst_79 : f32 to vector<2x1xf32>
    %497 = arith.addf %496, %495 : vector<2x1xf32>
    %498 = arith.mulf %491, %497 : vector<2x1xf32>
    %c0_80 = arith.constant 0 : index
    %c0_81 = arith.constant 0 : index
    %499 = vector.load %arg5[%c0_80, %c0_81] : memref<2x1xf32, #tpu.memory_space<vmem>>, vector<2x1xf32>
    tpu.vector_store %arg5[%c0_80, %c0_81], %498 {strides = array<i32>} : memref<2x1xf32, #tpu.memory_space<vmem>>, vector<2x1xf32>,
    return
  }
}

</mosaic_0001>

<llo_original>
// kernel: solana_forward_pallas.1
$region0: #{solana_forward_pallas.1}
  #allocation0 [shape = 'u32[]', space=smem, size = 0x4, offset = 0x4, fixed_abs, tag = 'smem constant byte address 0x4 - core index']
  #allocation1 [shape = 'u32[144,128]{1,0:T(1,128)}', space=vmem, size = 0x12000, scoped, tag = 'internal scratch']
  %s0 = inlined_call_operand.vmem [shape: f32[48,8], index: 0, kind: input, shape index: {}]
  %s1 = inlined_call_operand.vmem [shape: f32[48,8], index: 1, kind: input, shape index: {}]
  %s2 = inlined_call_operand.vmem [shape: f32[48,32], index: 2, kind: input, shape index: {}]
  %s3 = inlined_call_operand.vmem [shape: f32[190,32], index: 3, kind: input, shape index: {}]
  %s4 = inlined_call_operand.vmem [shape: f32[97,256], index: 4, kind: input, shape index: {}]
  %s5 = inlined_call_operand.vmem [shape: f32[2,1], index: 5, kind: output, shape index: {}]
  %s6 = sld [smem:[#allocation0]]
  $region30: #{solana_forward_pallas.1} parent=0
    _
  %s8 = ssub.s32 1, %s6
  %s9 = scalar_select 0, %s8, %s6
  // Predicated region
  $region2: #{solana_forward_pallas.1} parent=0 // pred_check
    _
  $region3: #{solana_forward_pallas.1} parent=0 // pred_check_branch
    %11 = sbr.rel (0) target = $region5
  $region4: #{solana_forward_pallas.1} parent=0 // pred_region
    _
  $region5: #{solana_forward_pallas.1} parent=0 // pred_fallthru
    _
  // Predicated region
  $region6: #{solana_forward_pallas.1} parent=0 // pred_check
    _
  $region7: #{solana_forward_pallas.1} parent=0 // pred_check_branch
    %13 = sbr.rel (0) target = $region9
  $region8: #{solana_forward_pallas.1} parent=0 // pred_region
    _
  $region9: #{solana_forward_pallas.1} parent=0 // pred_fallthru
    _
  // Predicated region
  $region10: #{solana_forward_pallas.1} parent=0 // pred_check
    _
  $region11: #{solana_forward_pallas.1} parent=0 // pred_check_branch
    %15 = sbr.rel (0) target = $region13
  $region12: #{solana_forward_pallas.1} parent=0 // pred_region
    _
  $region13: #{solana_forward_pallas.1} parent=0 // pred_fallthru
    _
  // Predicated region
  $region14: #{solana_forward_pallas.1} parent=0 // pred_check
    _
  $region15: #{solana_forward_pallas.1} parent=0 // pred_check_branch
    %17 = sbr.rel (0) target = $region17
  $region16: #{solana_forward_pallas.1} parent=0 // pred_region
    _
  $region17: #{solana_forward_pallas.1} parent=0 // pred_fallthru
    _
  // Predicated region
  $region18: #{solana_forward_pallas.1} parent=0 // pred_check
    _
  $region19: #{solana_forward_pallas.1} parent=0 // pred_check_branch
    %19 = sbr.rel (0) target = $region21
  $region20: #{solana_forward_pallas.1} parent=0 // pred_region
    _
  $region21: #{solana_forward_pallas.1} parent=0 // pred_fallthru
    _
  %v20 = vld [vmem:[%s3] sm:$0xff]
  %v21 = vld [vmem:[%s3 + $0x8] sm:$0xff]
  %v22 = vld [vmem:[%s3 + $0x10] sm:$0xff]
  %v23 = vld [vmem:[%s3 + $0x18] sm:$0xff]
  %v24 = vld [vmem:[%s3 + $0x20] sm:$0xff]
  %v25 = vld [vmem:[%s3 + $0x28] sm:$0xff]
  %v26 = vld [vmem:[%s3 + $0x30] sm:$0xff]
  %v27 = vld [vmem:[%s3 + $0x38] sm:$0xff]
  %v28 = vld [vmem:[%s3 + $0x40] sm:$0xff]
  %v29 = vld [vmem:[%s3 + $0x48] sm:$0xff]
  %v30 = vld [vmem:[%s3 + $0x50] sm:$0xff]
  %v31 = vld [vmem:[%s3 + $0x58] sm:$0xff]
  %v32 = vld [vmem:[%s3 + $0x60] sm:$0xff]
  %v33 = vld [vmem:[%s3 + $0x68] sm:$0xff]
  %v34 = vld [vmem:[%s3 + $0x70] sm:$0xff]
  %v35 = vld [vmem:[%s3 + $0x78] sm:$0xff]
  %v36 = vld [vmem:[%s3 + $0x80] sm:$0xff]
  %v37 = vld [vmem:[%s3 + $0x88] sm:$0xff]
  %v38 = vld [vmem:[%s3 + $0x90] sm:$0xff]
  %v39 = vld [vmem:[%s3 + $0x98] sm:$0xff]
  %v40 = vld [vmem:[%s3 + $0xa0] sm:$0xff]
  %v41 = vld [vmem:[%s3 + $0xa8] sm:$0xff]
  %v42 = vld [vmem:[%s3 + $0xb0] sm:$0xff]
  %v43 = vld [vmem:[%s3 + $0xb8] sm:$0x1]
  %v44 = vld [vmem:[%s3 + $0xb9] sm:$0x1]
  %v45 = vld [vmem:[%s3 + $0xba] sm:$0x1]
  %v46 = vld [vmem:[%s3 + $0xbb] sm:$0x1]
  %v47 = vld [vmem:[%s3 + $0xbc] sm:$0x1]
  %v48 = vld [vmem:[%s3 + $0xbd] sm:$0x1]
  %v49 = vld [vmem:[%s0] sm:$0xff]
  %v50 = vld [vmem:[%s0 + $0x8] sm:$0xff]
  %v51 = vld [vmem:[%s0 + $0x10] sm:$0xff]
  %v52 = vld [vmem:[%s0 + $0x18] sm:$0xff]
  %v53 = vld [vmem:[%s0 + $0x20] sm:$0xff]
  %v54 = vld [vmem:[%s0 + $0x28] sm:$0xff]
  %v55 = vld [vmem:[%s1] sm:$0xff]
  %v56 = vld [vmem:[%s1 + $0x8] sm:$0xff]
  %v57 = vld [vmem:[%s1 + $0x10] sm:$0xff]
  %v58 = vld [vmem:[%s1 + $0x18] sm:$0xff]
  %v59 = vld [vmem:[%s1 + $0x20] sm:$0xff]
  %v60 = vld [vmem:[%s1 + $0x28] sm:$0xff]
  %v61 = vmul.f32 %v49, %v55
  %v62 = vmul.f32 %v50, %v56
  %v63 = vmul.f32 %v51, %v57
  %v64 = vmul.f32 %v52, %v58
  %v65 = vmul.f32 %v53, %v59
  %v66 = vmul.f32 %v54, %v60
  %vm73 = vcmask 1041408
  %v74 = vrot.slane %v61, 6
  %v75 = vrot.slane %v62, 6
  %v76 = vsel %vm73, %v74, %v75
  %v77 = vrot.slane %v63, 6
  %v78 = vsel %vm73, %v75, %v77
  %v79 = vrot.slane %v64, 6
  %v80 = vsel %vm73, %v77, %v79
  %v81 = vrot.slane %v65, 6
  %v82 = vsel %vm73, %v79, %v81
  %v83 = vrot.slane %v66, 6
  %v84 = vsel %vm73, %v81, %v83
  %v92 = vsel %vm73, 0.0, %v74
  %v93 = vsel %vm73, %v83, 0.0
  %vm96 = vcmask 1045504
  %v97 = vrot.slane %v92, 2
  %v98 = vrot.slane %v76, 2
  %v99 = vsel %vm96, %v97, %v98
  %v100 = vrot.slane %v78, 2
  %v101 = vsel %vm96, %v98, %v100
  %v102 = vrot.slane %v80, 2
  %v103 = vsel %vm96, %v100, %v102
  %v104 = vrot.slane %v82, 2
  %v105 = vsel %vm96, %v102, %v104
  %v106 = vrot.slane %v84, 2
  %v107 = vsel %vm96, %v104, %v106
  %v108 = vrot.slane %v93, 2
  %v109 = vsel %vm96, %v106, %v108
  %110 = vrot.lane.b32.xlu0 %v99, 8
  %v111 = vpop.permute.xlu0 %110
  %112 = vrot.lane.b32.xlu0 %v101, 8
  %v113 = vpop.permute.xlu0 %112
  %114 = vrot.lane.b32.xlu0 %v103, 8
  %v115 = vpop.permute.xlu0 %114
  %116 = vrot.lane.b32.xlu0 %v105, 8
  %v117 = vpop.permute.xlu0 %116
  %118 = vrot.lane.b32.xlu0 %v107, 8
  %v119 = vpop.permute.xlu0 %118
  %120 = vrot.lane.b32.xlu0 %v109, 8
  %v121 = vpop.permute.xlu0 %120
  %vm128 = vcmask 1043456
  %v129 = vrot.slane %v92, 4
  %v130 = vrot.slane %v76, 4
  %v131 = vsel %vm128, %v129, %v130
  %v132 = vrot.slane %v78, 4
  %v133 = vsel %vm128, %v130, %v132
  %v134 = vrot.slane %v80, 4
  %v135 = vsel %vm128, %v132, %v134
  %v136 = vrot.slane %v82, 4
  %v137 = vsel %vm128, %v134, %v136
  %v138 = vrot.slane %v84, 4
  %v139 = vsel %vm128, %v136, %v138
  %v140 = vrot.slane %v93, 4
  %v141 = vsel %vm128, %v138, %v140
  %142 = vrot.lane.b32.xlu0 %v131, 16
  %v143 = vpop.permute.xlu0 %142
  %144 = vrot.lane.b32.xlu0 %v133, 16
  %v145 = vpop.permute.xlu0 %144
  %146 = vrot.lane.b32.xlu0 %v135, 16
  %v147 = vpop.permute.xlu0 %146
  %148 = vrot.lane.b32.xlu0 %v137, 16
  %v149 = vpop.permute.xlu0 %148
  %150 = vrot.lane.b32.xlu0 %v139, 16
  %v151 = vpop.permute.xlu0 %150
  %152 = vrot.lane.b32.xlu0 %v141, 16
  %v153 = vpop.permute.xlu0 %152
  %vm160 = vcmask 64512
  %v161 = vsel %vm160, %v92, %v111
  %v162 = vsel %vm160, %v76, %v113
  %v163 = vsel %vm160, %v78, %v115
  %v164 = vsel %vm160, %v80, %v117
  %v165 = vsel %vm160, %v82, %v119
  %v166 = vsel %vm160, %v84, %v121
  %vm167 = vcmask 130048
  %v168 = vsel %vm167, %v161, %v143
  %v169 = vsel %vm167, %v162, %v145
  %v170 = vsel %vm167, %v163, %v147
  %v171 = vsel %vm167, %v164, %v149
  %v172 = vsel %vm167, %v165, %v151
  %v173 = vsel %vm167, %v166, %v153
  %v174 = vlaneseq
  %v175 = vshrl.u32 %v174, 7
  %v176 = vsub.s32 0, %v175
  %v177 = vrot.slane %v43, %v176
  %vm178 = vcmask 195584
  %v180 = vsel %vm178, %v168, 0
  %v183 = vsel %vm178, %v169, 0
  %v186 = vsel %vm178, %v170, 0
  %v189 = vsel %vm178, %v171, 0
  %v192 = vsel %vm178, %v172, 0
  %v195 = vsel %vm178, %v173, 0
  %197 = vmatprep.subr.mxu0 0.0
  %198 = vmatpush1.msra.mxu0 %v20
  %199 = vmatprep.subr.mxu0 0.0
  %200 = vmatpush1.msra.mxu0 %v21
  %201 = vmatprep.subr.mxu0 0.0
  %202 = vmatpush1.msra.mxu0 %v22
  %203 = vmatprep.subr.mxu0 0.0
  %204 = vmatpush1.msra.mxu0 0.0
  %205 = vmatprep.subr.mxu0 0.0
  %206 = vmatpush1.msra.mxu0 0.0
  %207 = vmatprep.subr.mxu0 0.0
  %208 = vmatpush1.msra.mxu0 0.0
  %209 = vmatprep.subr.mxu0 0.0
  %210 = vmatpush1.msra.mxu0 0.0
  %211 = vmatprep.subr.mxu0 0.0
  %212 = vmatpush1.msra.mxu0 0.0
  %213 = vmatprep.subr.mxu0 0.0
  %214 = vmatpush1.msra.mxu0 0.0
  %215 = vmatprep.subr.mxu0 0.0
  %216 = vmatpush1.msra.mxu0 0.0
  %217 = vmatprep.subr.mxu0 0.0
  %218 = vmatpush1.msra.mxu0 0.0
  %219 = vmatprep.subr.mxu0 0.0
  %220 = vmatpush1.msra.mxu0 0.0
  %221 = vmatprep.subr.mxu0 0.0
  %222 = vmatpush1.msra.mxu0 0.0
  %223 = vmatprep.subr.mxu0 0.0
  %224 = vmatpush1.msra.mxu0 0.0
  %225 = vmatprep.subr.mxu0 0.0
  %226 = vmatpush1.msra.mxu0 0.0
  %227 = vmatprep.subr.mxu0 0.0
  %228 = vmatpush1.msra.mxu0 0.0
  %229 = vmatprep.subr.mxu0 0.0
  %230 = vmatpush1.msra.mxu0 0.0
  %231 = vmatprep.subr.mxu0 0.0
  %232 = vmatpush1.msra.mxu0 0.0
  %233 = vmatprep.subr.mxu0 0.0
  %234 = vmatpush1.msra.mxu0 0.0
  %235 = vmatprep.subr.mxu0 0.0
  %236 = vmatpush1.msra.mxu0 0.0
  %237 = vmatprep.subr.mxu0 0.0
  %238 = vmatpush1.msra.mxu0 0.0
  %239 = vmatprep.subr.mxu0 0.0
  %240 = vmatpush1.msra.mxu0 0.0
  %241 = vmatprep.subr.mxu0 0.0
  %242 = vmatpush1.msra.mxu0 0.0
  %243 = vmatprep.subr.mxu0 0.0
  %244 = vmatpush1.msra.mxu0 0.0
  %245 = vmatprep.subr.mxu0 0.0
  %246 = vmatpush1.msra.mxu0 0.0
  %247 = vmatprep.subr.mxu0 0.0
  %248 = vmatpush1.msra.mxu0 0.0
  %249 = vmatprep.subr.mxu0 0.0
  %250 = vmatpush1.msra.mxu0 0.0
  %251 = vmatprep.subr.mxu0 0.0
  %252 = vmatpush1.msra.mxu0 0.0
  %253 = vmatprep.subr.mxu0 0.0
  %254 = vmatpush1.msra.mxu0 0.0
  %255 = vmatprep.subr.mxu0 0.0
  %256 = vmatpush1.msra.mxu0 0.0
  %257 = vmatprep.subr.mxu0 0.0
  %258 = vmatpush1.msra.mxu0 0.0
  %259 = vmatprep.subr.mxu0 0.0
  %260 = vmatpush1.msra.mxu0 0.0
  %261 = vmatprep.mubr.f32.mxu0 0.0
  %262 = vmatmul.mubr.f32.gmra.mrb[0].mxu0 %v180
  %v263 = vpop.f32.mrb[0].mxu0
  %v264 = vadd.f32 %v177, %v263
  %v265 = vpop.f32.mrb[0].mxu0
  %266 = vmatprep.mubr.f32.mxu0 0.0
  %267 = vmatmul.mubr.f32.gmra.mrb[0].mxu0 %v183
  %v268 = vpop.f32.mrb[0].mxu0
  %v269 = vadd.f32 %v177, %v268
  %v270 = vpop.f32.mrb[0].mxu0
  %271 = vmatprep.mubr.f32.mxu0 0.0
  %272 = vmatmul.mubr.f32.gmra.mrb[0].mxu0 %v186
  %v273 = vpop.f32.mrb[0].mxu0
  %v274 = vadd.f32 %v177, %v273
  %v275 = vpop.f32.mrb[0].mxu0
  %276 = vmatprep.mubr.f32.mxu0 0.0
  %277 = vmatmul.mubr.f32.gmra.mrb[0].mxu0 %v189
  %v278 = vpop.f32.mrb[0].mxu0
  %v279 = vadd.f32 %v177, %v278
  %v280 = vpop.f32.mrb[0].mxu0
  %281 = vmatprep.mubr.f32.mxu0 0.0
  %282 = vmatmul.mubr.f32.gmra.mrb[0].mxu0 %v192
  %v283 = vpop.f32.mrb[0].mxu0
  %v284 = vadd.f32 %v177, %v283
  %v285 = vpop.f32.mrb[0].mxu0
  %286 = vmatprep.mubr.f32.mxu0 0.0
  %287 = vmatmul.mubr.f32.gmra.mrb[0].mxu0 %v195
  %v288 = vpop.f32.mrb[0].mxu0
  %v289 = vadd.f32 %v177, %v288
  %v290 = vpop.f32.mrb[0].mxu0
  %291 = vdwg.mxu0
  %vm292 = vcmp.gt.f32.partialorder %v264, 0.0
  %vm293 = vcmp.gt.f32.partialorder %v269, 0.0
  %vm294 = vcmp.gt.f32.partialorder %v274, 0.0
  %vm295 = vcmp.gt.f32.partialorder %v279, 0.0
  %vm296 = vcmp.gt.f32.partialorder %v284, 0.0
  %vm297 = vcmp.gt.f32.partialorder %v289, 0.0
  %v298 = vmul.f32 %v264, 0.2
  %v299 = vmul.f32 %v269, 0.2
  %v300 = vmul.f32 %v274, 0.2
  %v301 = vmul.f32 %v279, 0.2
  %v302 = vmul.f32 %v284, 0.2
  %v303 = vmul.f32 %v289, 0.2
  %v304 = vsel %vm292, %v264, %v298
  %v305 = vsel %vm293, %v269, %v299
  %v306 = vsel %vm294, %v274, %v300
  %v307 = vsel %vm295, %v279, %v301
  %v308 = vsel %vm296, %v284, %v302
  %v309 = vsel %vm297, %v289, %v303
  %v310 = vlaneseq
  %v311 = vshrl.u32 %v310, 7
  %v312 = vsub.s32 0, %v311
  %v313 = vrot.slane %v44, %v312
  %v314 = vmul.f32 %v304, %v313
  %v315 = vmul.f32 %v305, %v313
  %v316 = vmul.f32 %v306, %v313
  %v317 = vmul.f32 %v307, %v313
  %v318 = vmul.f32 %v308, %v313
  %v319 = vmul.f32 %v309, %v313
  %v320 = vlaneseq
  %v321 = vshrl.u32 %v320, 7
  %v322 = vsub.s32 0, %v321
  %v323 = vrot.slane %v45, %v322
  %v324 = vadd.f32 %v314, %v323
  %v325 = vadd.f32 %v315, %v323
  %v326 = vadd.f32 %v316, %v323
  %v327 = vadd.f32 %v317, %v323
  %v328 = vadd.f32 %v318, %v323
  %v329 = vadd.f32 %v319, %v323
  %v336 = vrot.slane %v324, 6
  %v337 = vrot.slane %v325, 6
  %v338 = vsel %vm73, %v336, %v337
  %v339 = vrot.slane %v326, 6
  %v340 = vsel %vm73, %v337, %v339
  %v341 = vrot.slane %v327, 6
  %v342 = vsel %vm73, %v339, %v341
  %v343 = vrot.slane %v328, 6
  %v344 = vsel %vm73, %v341, %v343
  %v345 = vrot.slane %v329, 6
  %v346 = vsel %vm73, %v343, %v345
  %v354 = vsel %vm73, 0.0, %v336
  %v355 = vsel %vm73, %v345, 0.0
  %v358 = vrot.slane %v354, 2
  %v359 = vrot.slane %v338, 2
  %v360 = vsel %vm96, %v358, %v359
  %v361 = vrot.slane %v340, 2
  %v362 = vsel %vm96, %v359, %v361
  %v363 = vrot.slane %v342, 2
  %v364 = vsel %vm96, %v361, %v363
  %v365 = vrot.slane %v344, 2
  %v366 = vsel %vm96, %v363, %v365
  %v367 = vrot.slane %v346, 2
  %v368 = vsel %vm96, %v365, %v367
  %v369 = vrot.slane %v355, 2
  %v370 = vsel %vm96, %v367, %v369
  %371 = vrot.lane.b32.xlu0 %v360, 32
  %v372 = vpop.permute.xlu0 %371
  %373 = vrot.lane.b32.xlu0 %v362, 32
  %v374 = vpop.permute.xlu0 %373
  %375 = vrot.lane.b32.xlu0 %v364, 32
  %v376 = vpop.permute.xlu0 %375
  %377 = vrot.lane.b32.xlu0 %v366, 32
  %v378 = vpop.permute.xlu0 %377
  %379 = vrot.lane.b32.xlu0 %v368, 32
  %v380 = vpop.permute.xlu0 %379
  %381 = vrot.lane.b32.xlu0 %v370, 32
  %v382 = vpop.permute.xlu0 %381
  %v389 = vrot.slane %v354, 4
  %v390 = vrot.slane %v338, 4
  %v391 = vsel %vm128, %v389, %v390
  %v392 = vrot.slane %v340, 4
  %v393 = vsel %vm128, %v390, %v392
  %v394 = vrot.slane %v342, 4
  %v395 = vsel %vm128, %v392, %v394
  %v396 = vrot.slane %v344, 4
  %v397 = vsel %vm128, %v394, %v396
  %v398 = vrot.slane %v346, 4
  %v399 = vsel %vm128, %v396, %v398
  %v400 = vrot.slane %v355, 4
  %v401 = vsel %vm128, %v398, %v400
  %402 = vrot.lane.b32.xlu0 %v391, 64
  %v403 = vpop.permute.xlu0 %402
  %404 = vrot.lane.b32.xlu0 %v393, 64
  %v405 = vpop.permute.xlu0 %404
  %406 = vrot.lane.b32.xlu0 %v395, 64
  %v407 = vpop.permute.xlu0 %406
  %408 = vrot.lane.b32.xlu0 %v397, 64
  %v409 = vpop.permute.xlu0 %408
  %410 = vrot.lane.b32.xlu0 %v399, 64
  %v411 = vpop.permute.xlu0 %410
  %412 = vrot.lane.b32.xlu0 %v401, 64
  %v413 = vpop.permute.xlu0 %412
  %vm420 = vcmask 261120
  %v421 = vsel %vm420, %v354, %v372
  %v422 = vsel %vm420, %v338, %v374
  %v423 = vsel %vm420, %v340, %v376
  %v424 = vsel %vm420, %v342, %v378
  %v425 = vsel %vm420, %v344, %v380
  %v426 = vsel %vm420, %v346, %v382
  %vm427 = vcmask 523264
  %v428 = vsel %vm427, %v421, %v403
  %v429 = vsel %vm427, %v422, %v405
  %v430 = vsel %vm427, %v423, %v407
  %v431 = vsel %vm427, %v424, %v409
  %v432 = vsel %vm427, %v425, %v411
  %v433 = vsel %vm427, %v426, %v413
  %v434 = vlaneseq
  %v435 = vshrl.u32 %v434, 7
  %v436 = vsub.s32 0, %v435
  %v437 = vrot.slane %v46, %v436
  %vm438 = vcmask 785408
  %v440 = vsel %vm438, %v428, 0
  %v443 = vsel %vm438, %v429, 0
  %v446 = vsel %vm438, %v430, 0
  %v449 = vsel %vm438, %v431, 0
  %v452 = vsel %vm438, %v432, 0
  %v455 = vsel %vm438, %v433, 0
  %457 = vmatprep.subr.mxu0 0.0
  %458 = vmatpush1.msra.mxu0 %v23
  %459 = vmatprep.subr.mxu0 0.0
  %460 = vmatpush1.msra.mxu0 %v24
  %461 = vmatprep.subr.mxu0 0.0
  %462 = vmatpush1.msra.mxu0 %v25
  %463 = vmatprep.subr.mxu0 0.0
  %464 = vmatpush1.msra.mxu0 %v26
  %465 = vmatprep.subr.mxu0 0.0
  %466 = vmatpush1.msra.mxu0 %v27
  %467 = vmatprep.subr.mxu0 0.0
  %468 = vmatpush1.msra.mxu0 %v28
  %469 = vmatprep.subr.mxu0 0.0
  %470 = vmatpush1.msra.mxu0 %v29
  %471 = vmatprep.subr.mxu0 0.0
  %472 = vmatpush1.msra.mxu0 %v30
  %473 = vmatprep.subr.mxu0 0.0
  %474 = vmatpush1.msra.mxu0 %v31
  %475 = vmatprep.subr.mxu0 0.0
  %476 = vmatpush1.msra.mxu0 %v32
  %477 = vmatprep.subr.mxu0 0.0
  %478 = vmatpush1.msra.mxu0 %v33
  %479 = vmatprep.subr.mxu0 0.0
  %480 = vmatpush1.msra.mxu0 %v34
  %481 = vmatprep.subr.mxu0 0.0
  %482 = vmatpush1.msra.mxu0 0.0
  %483 = vmatprep.subr.mxu0 0.0
  %484 = vmatpush1.msra.mxu0 0.0
  %485 = vmatprep.subr.mxu0 0.0
  %486 = vmatpush1.msra.mxu0 0.0
  %487 = vmatprep.subr.mxu0 0.0
  %488 = vmatpush1.msra.mxu0 0.0
  %489 = vmatprep.subr.mxu0 0.0
  %490 = vmatpush1.msra.mxu0 0.0
  %491 = vmatprep.subr.mxu0 0.0
  %492 = vmatpush1.msra.mxu0 0.0
  %493 = vmatprep.subr.mxu0 0.0
  %494 = vmatpush1.msra.mxu0 0.0
  %495 = vmatprep.subr.mxu0 0.0
  %496 = vmatpush1.msra.mxu0 0.0
  %497 = vmatprep.subr.mxu0 0.0
  %498 = vmatpush1.msra.mxu0 0.0
  %499 = vmatprep.subr.mxu0 0.0
  %500 = vmatpush1.msra.mxu0 0.0
  %501 = vmatprep.subr.mxu0 0.0
  %502 = vmatpush1.msra.mxu0 0.0
  %503 = vmatprep.subr.mxu0 0.0
  %504 = vmatpush1.msra.mxu0 0.0
  %505 = vmatprep.subr.mxu0 0.0
  %506 = vmatpush1.msra.mxu0 0.0
  %507 = vmatprep.subr.mxu0 0.0
  %508 = vmatpush1.msra.mxu0 0.0
  %509 = vmatprep.subr.mxu0 0.0
  %510 = vmatpush1.msra.mxu0 0.0
  %511 = vmatprep.subr.mxu0 0.0
  %512 = vmatpush1.msra.mxu0 0.0
  %513 = vmatprep.subr.mxu0 0.0
  %514 = vmatpush1.msra.mxu0 0.0
  %515 = vmatprep.subr.mxu0 0.0
  %516 = vmatpush1.msra.mxu0 0.0
  %517 = vmatprep.subr.mxu0 0.0
  %518 = vmatpush1.msra.mxu0 0.0
  %519 = vmatprep.subr.mxu0 0.0
  %520 = vmatpush1.msra.mxu0 0.0
  %521 = vmatprep.mubr.f32.mxu0 0.0
  %522 = vmatmul.mubr.f32.gmra.mrb[0].mxu0 %v440
  %v523 = vpop.f32.mrb[0].mxu0
  %v524 = vadd.f32 %v437, %v523
  %v525 = vpop.f32.mrb[0].mxu0
  %526 = vmatprep.mubr.f32.mxu0 0.0
  %527 = vmatmul.mubr.f32.gmra.mrb[0].mxu0 %v443
  %v528 = vpop.f32.mrb[0].mxu0
  %v529 = vadd.f32 %v437, %v528
  %v530 = vpop.f32.mrb[0].mxu0
  %531 = vmatprep.mubr.f32.mxu0 0.0
  %532 = vmatmul.mubr.f32.gmra.mrb[0].mxu0 %v446
  %v533 = vpop.f32.mrb[0].mxu0
  %v534 = vadd.f32 %v437, %v533
  %v535 = vpop.f32.mrb[0].mxu0
  %536 = vmatprep.mubr.f32.mxu0 0.0
  %537 = vmatmul.mubr.f32.gmra.mrb[0].mxu0 %v449
  %v538 = vpop.f32.mrb[0].mxu0
  %v539 = vadd.f32 %v437, %v538
  %v540 = vpop.f32.mrb[0].mxu0
  %541 = vmatprep.mubr.f32.mxu0 0.0
  %542 = vmatmul.mubr.f32.gmra.mrb[0].mxu0 %v452
  %v543 = vpop.f32.mrb[0].mxu0
  %v544 = vadd.f32 %v437, %v543
  %v545 = vpop.f32.mrb[0].mxu0
  %546 = vmatprep.mubr.f32.mxu0 0.0
  %547 = vmatmul.mubr.f32.gmra.mrb[0].mxu0 %v455
  %v548 = vpop.f32.mrb[0].mxu0
  %v549 = vadd.f32 %v437, %v548
  %v550 = vpop.f32.mrb[0].mxu0
  %551 = vdwg.mxu0
  %vm552 = vcmp.gt.f32.partialorder %v524, 0.0
  %vm553 = vcmp.gt.f32.partialorder %v529, 0.0
  %vm554 = vcmp.gt.f32.partialorder %v534, 0.0
  %vm555 = vcmp.gt.f32.partialorder %v539, 0.0
  %vm556 = vcmp.gt.f32.partialorder %v544, 0.0
  %vm557 = vcmp.gt.f32.partialorder %v549, 0.0
  %v558 = vmul.f32 %v524, 0.2
  %v559 = vmul.f32 %v529, 0.2
  %v560 = vmul.f32 %v534, 0.2
  %v561 = vmul.f32 %v539, 0.2
  %v562 = vmul.f32 %v544, 0.2
  %v563 = vmul.f32 %v549, 0.2
  %v564 = vsel %vm552, %v524, %v558
  %v565 = vsel %vm553, %v529, %v559
  %v566 = vsel %vm554, %v534, %v560
  %v567 = vsel %vm555, %v539, %v561
  %v568 = vsel %vm556, %v544, %v562
  %v569 = vsel %vm557, %v549, %v563
  %v570 = vlaneseq
  %v571 = vshrl.u32 %v570, 7
  %v572 = vsub.s32 0, %v571
  %v573 = vrot.slane %v47, %v572
  %v574 = vmul.f32 %v564, %v573
  %v575 = vmul.f32 %v565, %v573
  %v576 = vmul.f32 %v566, %v573
  %v577 = vmul.f32 %v567, %v573
  %v578 = vmul.f32 %v568, %v573
  %v579 = vmul.f32 %v569, %v573
  %v580 = vld [vmem:[%s2] sm:$0xff]
  %v581 = vld [vmem:[%s2 + $0x8] sm:$0xff]
  %v582 = vld [vmem:[%s2 + $0x10] sm:$0xff]
  %v583 = vld [vmem:[%s2 + $0x18] sm:$0xff]
  %v584 = vld [vmem:[%s2 + $0x20] sm:$0xff]
  %v585 = vld [vmem:[%s2 + $0x28] sm:$0xff]
  %v586 = vadd.f32 %v574, %v580
  %v587 = vadd.f32 %v575, %v581
  %v588 = vadd.f32 %v576, %v582
  %v589 = vadd.f32 %v577, %v583
  %v590 = vadd.f32 %v578, %v584
  %v591 = vadd.f32 %v579, %v585
  %v592 = vld [vmem:[%s4] sm:$0xff]
  %v593 = vld [vmem:[%s4 + $0x8] sm:$0xff]
  %v594 = vld [vmem:[%s4 + $0x10] sm:$0xff]
  %v595 = vld [vmem:[%s4 + $0x18] sm:$0xff]
  %v596 = vld [vmem:[%s4 + $0x20] sm:$0xff]
  %v597 = vld [vmem:[%s4 + $0x28] sm:$0xff]
  %v598 = vld [vmem:[%s4 + $0x30] sm:$0xff]
  %v599 = vld [vmem:[%s4 + $0x38] sm:$0xff]
  %v600 = vld [vmem:[%s4 + $0x40] sm:$0xff]
  %v601 = vld [vmem:[%s4 + $0x48] sm:$0xff]
  %v602 = vld [vmem:[%s4 + $0x50] sm:$0xff]
  %v603 = vld [vmem:[%s4 + $0x58] sm:$0xff]
  %v604 = vld [vmem:[%s4 + $0x60] sm:$0xff]
  %v605 = vld [vmem:[%s4 + $0x68] sm:$0xff]
  %v606 = vld [vmem:[%s4 + $0x70] sm:$0xff]
  %v607 = vld [vmem:[%s4 + $0x78] sm:$0xff]
  %v608 = vld [vmem:[%s4 + $0x80] sm:$0xff]
  %v609 = vld [vmem:[%s4 + $0x88] sm:$0xff]
  %v610 = vld [vmem:[%s4 + $0x90] sm:$0xff]
  %v611 = vld [vmem:[%s4 + $0x98] sm:$0xff]
  %v612 = vld [vmem:[%s4 + $0xa0] sm:$0xff]
  %v613 = vld [vmem:[%s4 + $0xa8] sm:$0xff]
  %v614 = vld [vmem:[%s4 + $0xb0] sm:$0xff]
  %v615 = vld [vmem:[%s4 + $0xb8] sm:$0xff]
  %s616 = scalar_lea.vmem %s4, 192
  %v617 = vld [vmem:[%s616] ss:$8 sm:$0x3]
  %v619 = vlaneseq
  %v620 = vshrl.u32 %v619, 7
  %v621 = vsub.s32 0, %v620
  %v622 = vrot.slane %v617, %v621
  %v623 = vlaneseq
  %v624 = vshrl.u32 %v623, 7
  %v625 = vsub.s32 1, %v624
  %v626 = vrot.slane %v617, %v625
  %v630 = vsel %vm420, %v586, 0
  %v633 = vsel %vm420, %v587, 0
  %v636 = vsel %vm420, %v588, 0
  %v639 = vsel %vm420, %v589, 0
  %v642 = vsel %vm420, %v590, 0
  %v645 = vsel %vm420, %v591, 0
  %647 = vmatprep.subr.mxu0 %v593
  %648 = vmatpush1.msra.mxu0 %v592
  %649 = vmatprep.subr.mxu0 %v595
  %650 = vmatpush1.msra.mxu0 %v594
  %651 = vmatprep.subr.mxu0 %v597
  %652 = vmatpush1.msra.mxu0 %v596
  %653 = vmatprep.subr.mxu0 %v599
  %654 = vmatpush1.msra.mxu0 %v598
  %655 = vmatprep.subr.mxu0 0.0
  %656 = vmatpush1.msra.mxu0 0.0
  %657 = vmatprep.subr.mxu0 0.0
  %658 = vmatpush1.msra.mxu0 0.0
  %659 = vmatprep.subr.mxu0 0.0
  %660 = vmatpush1.msra.mxu0 0.0
  %661 = vmatprep.subr.mxu0 0.0
  %662 = vmatpush1.msra.mxu0 0.0
  %663 = vmatprep.subr.mxu0 0.0
  %664 = vmatpush1.msra.mxu0 0.0
  %665 = vmatprep.subr.mxu0 0.0
  %666 = vmatpush1.msra.mxu0 0.0
  %667 = vmatprep.subr.mxu0 0.0
  %668 = vmatpush1.msra.mxu0 0.0
  %669 = vmatprep.subr.mxu0 0.0
  %670 = vmatpush1.msra.mxu0 0.0
  %671 = vmatprep.subr.mxu0 0.0
  %672 = vmatpush1.msra.mxu0 0.0
  %673 = vmatprep.subr.mxu0 0.0
  %674 = vmatpush1.msra.mxu0 0.0
  %675 = vmatprep.subr.mxu0 0.0
  %676 = vmatpush1.msra.mxu0 0.0
  %677 = vmatprep.subr.mxu0 0.0
  %678 = vmatpush1.msra.mxu0 0.0
  %679 = vmatprep.subr.mxu0 0.0
  %680 = vmatpush1.msra.mxu0 0.0
  %681 = vmatprep.subr.mxu0 0.0
  %682 = vmatpush1.msra.mxu0 0.0
  %683 = vmatprep.subr.mxu0 0.0
  %684 = vmatpush1.msra.mxu0 0.0
  %685 = vmatprep.subr.mxu0 0.0
  %686 = vmatpush1.msra.mxu0 0.0
  %687 = vmatprep.subr.mxu0 0.0
  %688 = vmatpush1.msra.mxu0 0.0
  %689 = vmatprep.subr.mxu0 0.0
  %690 = vmatpush1.msra.mxu0 0.0
  %691 = vmatprep.subr.mxu0 0.0
  %692 = vmatpush1.msra.mxu0 0.0
  %693 = vmatprep.subr.mxu0 0.0
  %694 = vmatpush1.msra.mxu0 0.0
  %695 = vmatprep.subr.mxu0 0.0
  %696 = vmatpush1.msra.mxu0 0.0
  %697 = vmatprep.subr.mxu0 0.0
  %698 = vmatpush1.msra.mxu0 0.0
  %699 = vmatprep.subr.mxu0 0.0
  %700 = vmatpush1.msra.mxu0 0.0
  %701 = vmatprep.subr.mxu0 0.0
  %702 = vmatpush1.msra.mxu0 0.0
  %703 = vmatprep.subr.mxu0 0.0
  %704 = vmatpush1.msra.mxu0 0.0
  %705 = vmatprep.subr.mxu0 0.0
  %706 = vmatpush1.msra.mxu0 0.0
  %707 = vmatprep.subr.mxu0 0.0
  %708 = vmatpush1.msra.mxu0 0.0
  %709 = vmatprep.subr.mxu0 0.0
  %710 = vmatpush1.msra.mxu0 0.0
  %711 = vmatprep.mubr.f32.mxu0 0.0
  %712 = vmatmul.mubr.f32.gmra.mrb[0].mxu0 %v630
  %v713 = vpop.f32.mrb[0].mxu0
  %v714 = vadd.f32 %v622, %v713
  %v715 = vpop.f32.mrb[0].mxu0
  %v716 = vadd.f32 %v626, %v715
  %717 = vmatprep.mubr.f32.mxu0 0.0
  %718 = vmatmul.mubr.f32.gmra.mrb[0].mxu0 %v633
  %v719 = vpop.f32.mrb[0].mxu0
  %v720 = vadd.f32 %v622, %v719
  %v721 = vpop.f32.mrb[0].mxu0
  %v722 = vadd.f32 %v626, %v721
  %723 = vmatprep.mubr.f32.mxu0 0.0
  %724 = vmatmul.mubr.f32.gmra.mrb[0].mxu0 %v636
  %v725 = vpop.f32.mrb[0].mxu0
  %v726 = vadd.f32 %v622, %v725
  %v727 = vpop.f32.mrb[0].mxu0
  %v728 = vadd.f32 %v626, %v727
  %729 = vmatprep.mubr.f32.mxu0 0.0
  %730 = vmatmul.mubr.f32.gmra.mrb[0].mxu0 %v639
  %v731 = vpop.f32.mrb[0].mxu0
  %v732 = vadd.f32 %v622, %v731
  %v733 = vpop.f32.mrb[0].mxu0
  %v734 = vadd.f32 %v626, %v733
  %735 = vmatprep.mubr.f32.mxu0 0.0
  %736 = vmatmul.mubr.f32.gmra.mrb[0].mxu0 %v642
  %v737 = vpop.f32.mrb[0].mxu0
  %v738 = vadd.f32 %v622, %v737
  %v739 = vpop.f32.mrb[0].mxu0
  %v740 = vadd.f32 %v626, %v739
  %741 = vmatprep.mubr.f32.mxu0 0.0
  %742 = vmatmul.mubr.f32.gmra.mrb[0].mxu0 %v645
  %v743 = vpop.f32.mrb[0].mxu0
  %v744 = vadd.f32 %v622, %v743
  %v745 = vpop.f32.mrb[0].mxu0
  %v746 = vadd.f32 %v626, %v745
  %747 = vdwg.mxu0
  %v749 = vsel %vm427, 0.0, 0
  %751 = vmatprep.subr.mxu0 %v601
  %752 = vmatpush1.msra.mxu0 %v600
  %753 = vmatprep.subr.mxu0 %v603
  %754 = vmatpush1.msra.mxu0 %v602
  %755 = vmatprep.subr.mxu0 %v605
  %756 = vmatpush1.msra.mxu0 %v604
  %757 = vmatprep.subr.mxu0 %v607
  %758 = vmatpush1.msra.mxu0 %v606
  %759 = vmatprep.subr.mxu0 %v609
  %760 = vmatpush1.msra.mxu0 %v608
  %761 = vmatprep.subr.mxu0 %v611
  %762 = vmatpush1.msra.mxu0 %v610
  %763 = vmatprep.subr.mxu0 %v613
  %764 = vmatpush1.msra.mxu0 %v612
  %765 = vmatprep.subr.mxu0 %v615
  %766 = vmatpush1.msra.mxu0 %v614
  %767 = vmatprep.subr.mxu0 0.0
  %768 = vmatpush1.msra.mxu0 0.0
  %769 = vmatprep.subr.mxu0 0.0
  %770 = vmatpush1.msra.mxu0 0.0
  %771 = vmatprep.subr.mxu0 0.0
  %772 = vmatpush1.msra.mxu0 0.0
  %773 = vmatprep.subr.mxu0 0.0
  %774 = vmatpush1.msra.mxu0 0.0
  %775 = vmatprep.subr.mxu0 0.0
  %776 = vmatpush1.msra.mxu0 0.0
  %777 = vmatprep.subr.mxu0 0.0
  %778 = vmatpush1.msra.mxu0 0.0
  %779 = vmatprep.subr.mxu0 0.0
  %780 = vmatpush1.msra.mxu0 0.0
  %781 = vmatprep.subr.mxu0 0.0
  %782 = vmatpush1.msra.mxu0 0.0
  %783 = vmatprep.subr.mxu0 0.0
  %784 = vmatpush1.msra.mxu0 0.0
  %785 = vmatprep.subr.mxu0 0.0
  %786 = vmatpush1.msra.mxu0 0.0
  %787 = vmatprep.subr.mxu0 0.0
  %788 = vmatpush1.msra.mxu0 0.0
  %789 = vmatprep.subr.mxu0 0.0
  %790 = vmatpush1.msra.mxu0 0.0
  %791 = vmatprep.subr.mxu0 0.0
  %792 = vmatpush1.msra.mxu0 0.0
  %793 = vmatprep.subr.mxu0 0.0
  %794 = vmatpush1.msra.mxu0 0.0
  %795 = vmatprep.subr.mxu0 0.0
  %796 = vmatpush1.msra.mxu0 0.0
  %797 = vmatprep.subr.mxu0 0.0
  %798 = vmatpush1.msra.mxu0 0.0
  %799 = vmatprep.subr.mxu0 0.0
  %800 = vmatpush1.msra.mxu0 0.0
  %801 = vmatprep.subr.mxu0 0.0
  %802 = vmatpush1.msra.mxu0 0.0
  %803 = vmatprep.subr.mxu0 0.0
  %804 = vmatpush1.msra.mxu0 0.0
  %805 = vmatprep.subr.mxu0 0.0
  %806 = vmatpush1.msra.mxu0 0.0
  %807 = vmatprep.subr.mxu0 0.0
  %808 = vmatpush1.msra.mxu0 0.0
  %809 = vmatprep.subr.mxu0 0.0
  %810 = vmatpush1.msra.mxu0 0.0
  %811 = vmatprep.subr.mxu0 0.0
  %812 = vmatpush1.msra.mxu0 0.0
  %813 = vmatprep.subr.mxu0 0.0
  %814 = vmatpush1.msra.mxu0 0.0
  %815 = vmatprep.mubr.f32.mxu0 0.0
  %816 = vmatmul.mubr.f32.gmra.mrb[0].mxu0 %v749
  %v817 = vpop.f32.mrb[0].mxu0
  %v818 = vadd.f32 0.0, %v817
  %v819 = vpop.f32.mrb[0].mxu0
  %v820 = vadd.f32 0.0, %v819
  %821 = vdwg.mxu0
  %v822 = vadd.f32 %v714, %v818
  %v823 = vadd.f32 %v716, %v820
  %v824 = vxor.u32 %v822, 2147483648
  %v825 = vxor.u32 %v823, 2147483648
  %v826 = vmul.f32 %v824, 1.442695
  %v827 = vpow.pop %v826
  %v828 = vmul.f32 %v825, 1.442695
  %v829 = vpow.pop %v828
  %v830 = vadd.f32 %v827, 1.0
  %v831 = vadd.f32 %v829, 1.0
  %v832 = vrcp.pop %v830
  %v833 = vmul.f32 1.0, %v832
  %v834 = vrcp.pop %v831
  %v835 = vmul.f32 1.0, %v834
  %v836 = vtanh.pop %v823
  %v837 = vmul.f32 %v833, 0.0
  %v838 = vmul.f32 %v833, %v836
  %840 = vrot.lane.b32.xlu0 %v838, 64
  %v841 = vpop.permute.xlu0 %840
  %v843 = vadd.f32 %v837, %v841
  %v844 = vtanh.pop %v843
  %v845 = vmul.f32 %v835, %v844
  %847 = vrot.lane.b32.xlu0 %v845, 64
  %v848 = vpop.permute.xlu0 %847
  %v849 = vsel %vm427, %v848, 0
  %851 = vmatprep.subr.mxu0 %v601
  %852 = vmatpush1.msra.mxu0 %v600
  %853 = vmatprep.subr.mxu0 %v603
  %854 = vmatpush1.msra.mxu0 %v602
  %855 = vmatprep.subr.mxu0 %v605
  %856 = vmatpush1.msra.mxu0 %v604
  %857 = vmatprep.subr.mxu0 %v607
  %858 = vmatpush1.msra.mxu0 %v606
  %859 = vmatprep.subr.mxu0 %v609
  %860 = vmatpush1.msra.mxu0 %v608
  %861 = vmatprep.subr.mxu0 %v611
  %862 = vmatpush1.msra.mxu0 %v610
  %863 = vmatprep.subr.mxu0 %v613
  %864 = vmatpush1.msra.mxu0 %v612
  %865 = vmatprep.subr.mxu0 %v615
  %866 = vmatpush1.msra.mxu0 %v614
  %867 = vmatprep.subr.mxu0 0.0
  %868 = vmatpush1.msra.mxu0 0.0
  %869 = vmatprep.subr.mxu0 0.0
  %870 = vmatpush1.msra.mxu0 0.0
  %871 = vmatprep.subr.mxu0 0.0
  %872 = vmatpush1.msra.mxu0 0.0
  %873 = vmatprep.subr.mxu0 0.0
  %874 = vmatpush1.msra.mxu0 0.0
  %875 = vmatprep.subr.mxu0 0.0
  %876 = vmatpush1.msra.mxu0 0.0
  %877 = vmatprep.subr.mxu0 0.0
  %878 = vmatpush1.msra.mxu0 0.0
  %879 = vmatprep.subr.mxu0 0.0
  %880 = vmatpush1.msra.mxu0 0.0
  %881 = vmatprep.subr.mxu0 0.0
  %882 = vmatpush1.msra.mxu0 0.0
  %883 = vmatprep.subr.mxu0 0.0
  %884 = vmatpush1.msra.mxu0 0.0
  %885 = vmatprep.subr.mxu0 0.0
  %886 = vmatpush1.msra.mxu0 0.0
  %887 = vmatprep.subr.mxu0 0.0
  %888 = vmatpush1.msra.mxu0 0.0
  %889 = vmatprep.subr.mxu0 0.0
  %890 = vmatpush1.msra.mxu0 0.0
  %891 = vmatprep.subr.mxu0 0.0
  %892 = vmatpush1.msra.mxu0 0.0
  %893 = vmatprep.subr.mxu0 0.0
  %894 = vmatpush1.msra.mxu0 0.0
  %895 = vmatprep.subr.mxu0 0.0
  %896 = vmatpush1.msra.mxu0 0.0
  %897 = vmatprep.subr.mxu0 0.0
  %898 = vmatpush1.msra.mxu0 0.0
  %899 = vmatprep.subr.mxu0 0.0
  %900 = vmatpush1.msra.mxu0 0.0
  %901 = vmatprep.subr.mxu0 0.0
  %902 = vmatpush1.msra.mxu0 0.0
  %903 = vmatprep.subr.mxu0 0.0
  %904 = vmatpush1.msra.mxu0 0.0
  %905 = vmatprep.subr.mxu0 0.0
  %906 = vmatpush1.msra.mxu0 0.0
  %907 = vmatprep.subr.mxu0 0.0
  %908 = vmatpush1.msra.mxu0 0.0
  %909 = vmatprep.subr.mxu0 0.0
  %910 = vmatpush1.msra.mxu0 0.0
  %911 = vmatprep.subr.mxu0 0.0
  %912 = vmatpush1.msra.mxu0 0.0
  %913 = vmatprep.subr.mxu0 0.0
  %914 = vmatpush1.msra.mxu0 0.0
  %915 = vmatprep.mubr.f32.mxu0 0.0
  %916 = vmatmul.mubr.f32.gmra.mrb[0].mxu0 %v849
  %v917 = vpop.f32.mrb[0].mxu0
  %v918 = vadd.f32 0.0, %v917
  %v919 = vpop.f32.mrb[0].mxu0
  %v920 = vadd.f32 0.0, %v919
  %921 = vdwg.mxu0
  %v924 = vrot.slane %v918, 6
  %v925 = vrot.slane %v920, 6
  %v928 = vadd.f32 %v714, %v924
  %v929 = vadd.f32 %v716, %v925
  %v930 = vxor.u32 %v928, 2147483648
  %v931 = vxor.u32 %v929, 2147483648
  %v932 = vmul.f32 %v930, 1.442695
  %v933 = vpow.pop %v932
  %v934 = vmul.f32 %v931, 1.442695
  %v935 = vpow.pop %v934
  %v936 = vadd.f32 %v933, 1.0
  %v937 = vadd.f32 %v935, 1.0
  %v938 = vrcp.pop %v936
  %v939 = vmul.f32 1.0, %v938
  %v940 = vrcp.pop %v937
  %v941 = vmul.f32 1.0, %v940
  %v942 = vtanh.pop %v929
  %v944 = vrot.slane %v843, 6
  %v946 = vmul.f32 %v939, %v944
  %v947 = vmul.f32 %v939, %v942
  %949 = vrot.lane.b32.xlu0 %v947, 64
  %v950 = vpop.permute.xlu0 %949
  %v952 = vadd.f32 %v946, %v950
  %v953 = vtanh.pop %v952
  %v954 = vmul.f32 %v941, %v953
  %v956 = vrot.slane %v954, 2
  %957 = vrot.lane.b32.xlu0 %v956, 64
  %v958 = vpop.permute.xlu0 %957
  %v959 = vsel %vm427, %v958, 0
  %961 = vmatprep.subr.mxu0 %v601
  %962 = vmatpush1.msra.mxu0 %v600
  %963 = vmatprep.subr.mxu0 %v603
  %964 = vmatpush1.msra.mxu0 %v602
  %965 = vmatprep.subr.mxu0 %v605
  %966 = vmatpush1.msra.mxu0 %v604
  %967 = vmatprep.subr.mxu0 %v607
  %968 = vmatpush1.msra.mxu0 %v606
  %969 = vmatprep.subr.mxu0 %v609
  %970 = vmatpush1.msra.mxu0 %v608
  %971 = vmatprep.subr.mxu0 %v611
  %972 = vmatpush1.msra.mxu0 %v610
  %973 = vmatprep.subr.mxu0 %v613
  %974 = vmatpush1.msra.mxu0 %v612
  %975 = vmatprep.subr.mxu0 %v615
  %976 = vmatpush1.msra.mxu0 %v614
  %977 = vmatprep.subr.mxu0 0.0
  %978 = vmatpush1.msra.mxu0 0.0
  %979 = vmatprep.subr.mxu0 0.0
  %980 = vmatpush1.msra.mxu0 0.0
  %981 = vmatprep.subr.mxu0 0.0
  %982 = vmatpush1.msra.mxu0 0.0
  %983 = vmatprep.subr.mxu0 0.0
  %984 = vmatpush1.msra.mxu0 0.0
  %985 = vmatprep.subr.mxu0 0.0
  %986 = vmatpush1.msra.mxu0 0.0
  %987 = vmatprep.subr.mxu0 0.0
  %988 = vmatpush1.msra.mxu0 0.0
  %989 = vmatprep.subr.mxu0 0.0
  %990 = vmatpush1.msra.mxu0 0.0
  %991 = vmatprep.subr.mxu0 0.0
  %992 = vmatpush1.msra.mxu0 0.0
  %993 = vmatprep.subr.mxu0 0.0
  %994 = vmatpush1.msra.mxu0 0.0
  %995 = vmatprep.subr.mxu0 0.0
  %996 = vmatpush1.msra.mxu0 0.0
  %997 = vmatprep.subr.mxu0 0.0
  %998 = vmatpush1.msra.mxu0 0.0
  %999 = vmatprep.subr.mxu0 0.0
  %1000 = vmatpush1.msra.mxu0 0.0
  %1001 = vmatprep.subr.mxu0 0.0
  %1002 = vmatpush1.msra.mxu0 0.0
  %1003 = vmatprep.subr.mxu0 0.0
  %1004 = vmatpush1.msra.mxu0 0.0
  %1005 = vmatprep.subr.mxu0 0.0
  %1006 = vmatpush1.msra.mxu0 0.0
  %1007 = vmatprep.subr.mxu0 0.0
  %1008 = vmatpush1.msra.mxu0 0.0
  %1009 = vmatprep.subr.mxu0 0.0
  %1010 = vmatpush1.msra.mxu0 0.0
  %1011 = vmatprep.subr.mxu0 0.0
  %1012 = vmatpush1.msra.mxu0 0.0
  %1013 = vmatprep.subr.mxu0 0.0
  %1014 = vmatpush1.msra.mxu0 0.0
  %1015 = vmatprep.subr.mxu0 0.0
  %1016 = vmatpush1.msra.mxu0 0.0
  %1017 = vmatprep.subr.mxu0 0.0
  %1018 = vmatpush1.msra.mxu0 0.0
  %1019 = vmatprep.subr.mxu0 0.0
  %1020 = vmatpush1.msra.mxu0 0.0
  %1021 = vmatprep.subr.mxu0 0.0
  %1022 = vmatpush1.msra.mxu0 0.0
  %1023 = vmatprep.subr.mxu0 0.0
  %1024 = vmatpush1.msra.mxu0 0.0
  %1025 = vmatprep.mubr.f32.mxu0 0.0
  %1026 = vmatmul.mubr.f32.gmra.mrb[0].mxu0 %v959
  %v1027 = vpop.f32.mrb[0].mxu0
  %v1028 = vadd.f32 0.0, %v1027
  %v1029 = vpop.f32.mrb[0].mxu0
  %v1030 = vadd.f32 0.0, %v1029
  %1031 = vdwg.mxu0
  %v1034 = vrot.slane %v1028, 4
  %v1035 = vrot.slane %v1030, 4
  %v1038 = vadd.f32 %v714, %v1034
  %v1039 = vadd.f32 %v716, %v1035
  %v1040 = vxor.u32 %v1038, 2147483648
  %v1041 = vxor.u32 %v1039, 2147483648
  %v1042 = vmul.f32 %v1040, 1.442695
  %v1043 = vpow.pop %v1042
  %v1044 = vmul.f32 %v1041, 1.442695
  %v1045 = vpow.pop %v1044
  %v1046 = vadd.f32 %v1043, 1.0
  %v1047 = vadd.f32 %v1045, 1.0
  %v1048 = vrcp.pop %v1046
  %v1049 = vmul.f32 1.0, %v1048
  %v1050 = vrcp.pop %v1047
  %v1051 = vmul.f32 1.0, %v1050
  %v1052 = vtanh.pop %v1039
  %v1054 = vrot.slane %v952, 6
  %v1056 = vmul.f32 %v1049, %v1054
  %v1057 = vmul.f32 %v1049, %v1052
  %1059 = vrot.lane.b32.xlu0 %v1057, 64
  %v1060 = vpop.permute.xlu0 %1059
  %v1062 = vadd.f32 %v1056, %v1060
  %v1063 = vtanh.pop %v1062
  %v1064 = vmul.f32 %v1051, %v1063
  %v1066 = vrot.slane %v1064, 4
  %1067 = vrot.lane.b32.xlu0 %v1066, 64
  %v1068 = vpop.permute.xlu0 %1067
  %v1069 = vsel %vm427, %v1068, 0
  %1071 = vmatprep.subr.mxu0 %v601
  %1072 = vmatpush1.msra.mxu0 %v600
  %1073 = vmatprep.subr.mxu0 %v603
  %1074 = vmatpush1.msra.mxu0 %v602
  %1075 = vmatprep.subr.mxu0 %v605
  %1076 = vmatpush1.msra.mxu0 %v604
  %1077 = vmatprep.subr.mxu0 %v607
  %1078 = vmatpush1.msra.mxu0 %v606
  %1079 = vmatprep.subr.mxu0 %v609
  %1080 = vmatpush1.msra.mxu0 %v608
  %1081 = vmatprep.subr.mxu0 %v611
  %1082 = vmatpush1.msra.mxu0 %v610
  %1083 = vmatprep.subr.mxu0 %v613
  %1084 = vmatpush1.msra.mxu0 %v612
  %1085 = vmatprep.subr.mxu0 %v615
  %1086 = vmatpush1.msra.mxu0 %v614
  %1087 = vmatprep.subr.mxu0 0.0
  %1088 = vmatpush1.msra.mxu0 0.0
  %1089 = vmatprep.subr.mxu0 0.0
  %1090 = vmatpush1.msra.mxu0 0.0
  %1091 = vmatprep.subr.mxu0 0.0
  %1092 = vmatpush1.msra.mxu0 0.0
  %1093 = vmatprep.subr.mxu0 0.0
  %1094 = vmatpush1.msra.mxu0 0.0
  %1095 = vmatprep.subr.mxu0 0.0
  %1096 = vmatpush1.msra.mxu0 0.0
  %1097 = vmatprep.subr.mxu0 0.0
  %1098 = vmatpush1.msra.mxu0 0.0
  %1099 = vmatprep.subr.mxu0 0.0
  %1100 = vmatpush1.msra.mxu0 0.0
  %1101 = vmatprep.subr.mxu0 0.0
  %1102 = vmatpush1.msra.mxu0 0.0
  %1103 = vmatprep.subr.mxu0 0.0
  %1104 = vmatpush1.msra.mxu0 0.0
  %1105 = vmatprep.subr.mxu0 0.0
  %1106 = vmatpush1.msra.mxu0 0.0
  %1107 = vmatprep.subr.mxu0 0.0
  %1108 = vmatpush1.msra.mxu0 0.0
  %1109 = vmatprep.subr.mxu0 0.0
  %1110 = vmatpush1.msra.mxu0 0.0
  %1111 = vmatprep.subr.mxu0 0.0
  %1112 = vmatpush1.msra.mxu0 0.0
  %1113 = vmatprep.subr.mxu0 0.0
  %1114 = vmatpush1.msra.mxu0 0.0
  %1115 = vmatprep.subr.mxu0 0.0
  %1116 = vmatpush1.msra.mxu0 0.0
  %1117 = vmatprep.subr.mxu0 0.0
  %1118 = vmatpush1.msra.mxu0 0.0
  %1119 = vmatprep.subr.mxu0 0.0
  %1120 = vmatpush1.msra.mxu0 0.0
  %1121 = vmatprep.subr.mxu0 0.0
  %1122 = vmatpush1.msra.mxu0 0.0
  %1123 = vmatprep.subr.mxu0 0.0
  %1124 = vmatpush1.msra.mxu0 0.0
  %1125 = vmatprep.subr.mxu0 0.0
  %1126 = vmatpush1.msra.mxu0 0.0
  %1127 = vmatprep.subr.mxu0 0.0
  %1128 = vmatpush1.msra.mxu0 0.0
  %1129 = vmatprep.subr.mxu0 0.0
  %1130 = vmatpush1.msra.mxu0 0.0
  %1131 = vmatprep.subr.mxu0 0.0
  %1132 = vmatpush1.msra.mxu0 0.0
  %1133 = vmatprep.subr.mxu0 0.0
  %1134 = vmatpush1.msra.mxu0 0.0
  %1135 = vmatprep.mubr.f32.mxu0 0.0
  %1136 = vmatmul.mubr.f32.gmra.mrb[0].mxu0 %v1069
  %v1137 = vpop.f32.mrb[0].mxu0
  %v1138 = vadd.f32 0.0, %v1137
  %v1139 = vpop.f32.mrb[0].mxu0
  %v1140 = vadd.f32 0.0, %v1139
  %1141 = vdwg.mxu0
  %v1144 = vrot.slane %v1138, 2
  %v1145 = vrot.slane %v1140, 2
  %v1148 = vadd.f32 %v714, %v1144
  %v1149 = vadd.f32 %v716, %v1145
  %v1150 = vxor.u32 %v1148, 2147483648
  %v1151 = vxor.u32 %v1149, 2147483648
  %v1152 = vmul.f32 %v1150, 1.442695
  %v1153 = vpow.pop %v1152
  %v1154 = vmul.f32 %v1151, 1.442695
  %v1155 = vpow.pop %v1154
  %v1156 = vadd.f32 %v1153, 1.0
  %v1157 = vadd.f32 %v1155, 1.0
  %v1158 = vrcp.pop %v1156
  %v1159 = vmul.f32 1.0, %v1158
  %v1160 = vrcp.pop %v1157
  %v1161 = vmul.f32 1.0, %v1160
  %v1162 = vtanh.pop %v1149
  %v1164 = vrot.slane %v1062, 6
  %v1166 = vmul.f32 %v1159, %v1164
  %v1167 = vmul.f32 %v1159, %v1162
  %1169 = vrot.lane.b32.xlu0 %v1167, 64
  %v1170 = vpop.permute.xlu0 %1169
  %v1172 = vadd.f32 %v1166, %v1170
  %v1173 = vtanh.pop %v1172
  %v1174 = vmul.f32 %v1161, %v1173
  %v1176 = vrot.slane %v1174, 6
  %1177 = vrot.lane.b32.xlu0 %v1176, 64
  %v1178 = vpop.permute.xlu0 %1177
  %v1179 = vsel %vm427, %v1178, 0
  %1181 = vmatprep.subr.mxu0 %v601
  %1182 = vmatpush1.msra.mxu0 %v600
  %1183 = vmatprep.subr.mxu0 %v603
  %1184 = vmatpush1.msra.mxu0 %v602
  %1185 = vmatprep.subr.mxu0 %v605
  %1186 = vmatpush1.msra.mxu0 %v604
  %1187 = vmatprep.subr.mxu0 %v607
  %1188 = vmatpush1.msra.mxu0 %v606
  %1189 = vmatprep.subr.mxu0 %v609
  %1190 = vmatpush1.msra.mxu0 %v608
  %1191 = vmatprep.subr.mxu0 %v611
  %1192 = vmatpush1.msra.mxu0 %v610
  %1193 = vmatprep.subr.mxu0 %v613
  %1194 = vmatpush1.msra.mxu0 %v612
  %1195 = vmatprep.subr.mxu0 %v615
  %1196 = vmatpush1.msra.mxu0 %v614
  %1197 = vmatprep.subr.mxu0 0.0
  %1198 = vmatpush1.msra.mxu0 0.0
  %1199 = vmatprep.subr.mxu0 0.0
  %1200 = vmatpush1.msra.mxu0 0.0
  %1201 = vmatprep.subr.mxu0 0.0
  %1202 = vmatpush1.msra.mxu0 0.0
  %1203 = vmatprep.subr.mxu0 0.0
  %1204 = vmatpush1.msra.mxu0 0.0
  %1205 = vmatprep.subr.mxu0 0.0
  %1206 = vmatpush1.msra.mxu0 0.0
  %1207 = vmatprep.subr.mxu0 0.0
  %1208 = vmatpush1.msra.mxu0 0.0
  %1209 = vmatprep.subr.mxu0 0.0
  %1210 = vmatpush1.msra.mxu0 0.0
  %1211 = vmatprep.subr.mxu0 0.0
  %1212 = vmatpush1.msra.mxu0 0.0
  %1213 = vmatprep.subr.mxu0 0.0
  %1214 = vmatpush1.msra.mxu0 0.0
  %1215 = vmatprep.subr.mxu0 0.0
  %1216 = vmatpush1.msra.mxu0 0.0
  %1217 = vmatprep.subr.mxu0 0.0
  %1218 = vmatpush1.msra.mxu0 0.0
  %1219 = vmatprep.subr.mxu0 0.0
  %1220 = vmatpush1.msra.mxu0 0.0
  %1221 = vmatprep.subr.mxu0 0.0
  %1222 = vmatpush1.msra.mxu0 0.0
  %1223 = vmatprep.subr.mxu0 0.0
  %1224 = vmatpush1.msra.mxu0 0.0
  %1225 = vmatprep.subr.mxu0 0.0
  %1226 = vmatpush1.msra.mxu0 0.0
  %1227 = vmatprep.subr.mxu0 0.0
  %1228 = vmatpush1.msra.mxu0 0.0
  %1229 = vmatprep.subr.mxu0 0.0
  %1230 = vmatpush1.msra.mxu0 0.0
  %1231 = vmatprep.subr.mxu0 0.0
  %1232 = vmatpush1.msra.mxu0 0.0
  %1233 = vmatprep.subr.mxu0 0.0
  %1234 = vmatpush1.msra.mxu0 0.0
  %1235 = vmatprep.subr.mxu0 0.0
  %1236 = vmatpush1.msra.mxu0 0.0
  %1237 = vmatprep.subr.mxu0 0.0
  %1238 = vmatpush1.msra.mxu0 0.0
  %1239 = vmatprep.subr.mxu0 0.0
  %1240 = vmatpush1.msra.mxu0 0.0
  %1241 = vmatprep.subr.mxu0 0.0
  %1242 = vmatpush1.msra.mxu0 0.0
  %1243 = vmatprep.subr.mxu0 0.0
  %1244 = vmatpush1.msra.mxu0 0.0
  %1245 = vmatprep.mubr.f32.mxu0 0.0
  %1246 = vmatmul.mubr.f32.gmra.mrb[0].mxu0 %v1179
  %v1247 = vpop.f32.mrb[0].mxu0
  %v1248 = vadd.f32 0.0, %v1247
  %v1249 = vpop.f32.mrb[0].mxu0
  %v1250 = vadd.f32 0.0, %v1249
  %1251 = vdwg.mxu0
  %v1252 = vadd.f32 %v720, %v1248
  %v1253 = vadd.f32 %v722, %v1250
  %v1254 = vxor.u32 %v1252, 2147483648
  %v1255 = vxor.u32 %v1253, 2147483648
  %v1256 = vmul.f32 %v1254, 1.442695
  %v1257 = vpow.pop %v1256
  %v1258 = vmul.f32 %v1255, 1.442695
  %v1259 = vpow.pop %v1258
  %v1260 = vadd.f32 %v1257, 1.0
  %v1261 = vadd.f32 %v1259, 1.0
  %v1262 = vrcp.pop %v1260
  %v1263 = vmul.f32 1.0, %v1262
  %v1264 = vrcp.pop %v1261
  %v1265 = vmul.f32 1.0, %v1264
  %v1266 = vtanh.pop %v1253
  %v1268 = vrot.slane %v1172, 6
  %v1270 = vmul.f32 %v1263, %v1268
  %v1271 = vmul.f32 %v1263, %v1266
  %1273 = vrot.lane.b32.xlu0 %v1271, 64
  %v1274 = vpop.permute.xlu0 %1273
  %v1276 = vadd.f32 %v1270, %v1274
  %v1277 = vtanh.pop %v1276
  %v1278 = vmul.f32 %v1265, %v1277
  %1280 = vrot.lane.b32.xlu0 %v1278, 64
  %v1281 = vpop.permute.xlu0 %1280
  %v1282 = vsel %vm427, %v1281, 0
  %1284 = vmatprep.subr.mxu0 %v601
  %1285 = vmatpush1.msra.mxu0 %v600
  %1286 = vmatprep.subr.mxu0 %v603
  %1287 = vmatpush1.msra.mxu0 %v602
  %1288 = vmatprep.subr.mxu0 %v605
  %1289 = vmatpush1.msra.mxu0 %v604
  %1290 = vmatprep.subr.mxu0 %v607
  %1291 = vmatpush1.msra.mxu0 %v606
  %1292 = vmatprep.subr.mxu0 %v609
  %1293 = vmatpush1.msra.mxu0 %v608
  %1294 = vmatprep.subr.mxu0 %v611
  %1295 = vmatpush1.msra.mxu0 %v610
  %1296 = vmatprep.subr.mxu0 %v613
  %1297 = vmatpush1.msra.mxu0 %v612
  %1298 = vmatprep.subr.mxu0 %v615
  %1299 = vmatpush1.msra.mxu0 %v614
  %1300 = vmatprep.subr.mxu0 0.0
  %1301 = vmatpush1.msra.mxu0 0.0
  %1302 = vmatprep.subr.mxu0 0.0
  %1303 = vmatpush1.msra.mxu0 0.0
  %1304 = vmatprep.subr.mxu0 0.0
  %1305 = vmatpush1.msra.mxu0 0.0
  %1306 = vmatprep.subr.mxu0 0.0
  %1307 = vmatpush1.msra.mxu0 0.0
  %1308 = vmatprep.subr.mxu0 0.0
  %1309 = vmatpush1.msra.mxu0 0.0
  %1310 = vmatprep.subr.mxu0 0.0
  %1311 = vmatpush1.msra.mxu0 0.0
  %1312 = vmatprep.subr.mxu0 0.0
  %1313 = vmatpush1.msra.mxu0 0.0
  %1314 = vmatprep.subr.mxu0 0.0
  %1315 = vmatpush1.msra.mxu0 0.0
  %1316 = vmatprep.subr.mxu0 0.0
  %1317 = vmatpush1.msra.mxu0 0.0
  %1318 = vmatprep.subr.mxu0 0.0
  %1319 = vmatpush1.msra.mxu0 0.0
  %1320 = vmatprep.subr.mxu0 0.0
  %1321 = vmatpush1.msra.mxu0 0.0
  %1322 = vmatprep.subr.mxu0 0.0
  %1323 = vmatpush1.msra.mxu0 0.0
  %1324 = vmatprep.subr.mxu0 0.0
  %1325 = vmatpush1.msra.mxu0 0.0
  %1326 = vmatprep.subr.mxu0 0.0
  %1327 = vmatpush1.msra.mxu0 0.0
  %1328 = vmatprep.subr.mxu0 0.0
  %1329 = vmatpush1.msra.mxu0 0.0
  %1330 = vmatprep.subr.mxu0 0.0
  %1331 = vmatpush1.msra.mxu0 0.0
  %1332 = vmatprep.subr.mxu0 0.0
  %1333 = vmatpush1.msra.mxu0 0.0
  %1334 = vmatprep.subr.mxu0 0.0
  %1335 = vmatpush1.msra.mxu0 0.0
  %1336 = vmatprep.subr.mxu0 0.0
  %1337 = vmatpush1.msra.mxu0 0.0
  %1338 = vmatprep.subr.mxu0 0.0
  %1339 = vmatpush1.msra.mxu0 0.0
  %1340 = vmatprep.subr.mxu0 0.0
  %1341 = vmatpush1.msra.mxu0 0.0
  %1342 = vmatprep.subr.mxu0 0.0
  %1343 = vmatpush1.msra.mxu0 0.0
  %1344 = vmatprep.subr.mxu0 0.0
  %1345 = vmatpush1.msra.mxu0 0.0
  %1346 = vmatprep.subr.mxu0 0.0
  %1347 = vmatpush1.msra.mxu0 0.0
  %1348 = vmatprep.mubr.f32.mxu0 0.0
  %1349 = vmatmul.mubr.f32.gmra.mrb[0].mxu0 %v1282
  %v1350 = vpop.f32.mrb[0].mxu0
  %v1351 = vadd.f32 0.0, %v1350
  %v1352 = vpop.f32.mrb[0].mxu0
  %v1353 = vadd.f32 0.0, %v1352
  %1354 = vdwg.mxu0
  %v1357 = vrot.slane %v1351, 6
  %v1358 = vrot.slane %v1353, 6
  %v1361 = vadd.f32 %v720, %v1357
  %v1362 = vadd.f32 %v722, %v1358
  %v1363 = vxor.u32 %v1361, 2147483648
  %v1364 = vxor.u32 %v1362, 2147483648
  %v1365 = vmul.f32 %v1363, 1.442695
  %v1366 = vpow.pop %v1365
  %v1367 = vmul.f32 %v1364, 1.442695
  %v1368 = vpow.pop %v1367
  %v1369 = vadd.f32 %v1366, 1.0
  %v1370 = vadd.f32 %v1368, 1.0
  %v1371 = vrcp.pop %v1369
  %v1372 = vmul.f32 1.0, %v1371
  %v1373 = vrcp.pop %v1370
  %v1374 = vmul.f32 1.0, %v1373
  %v1375 = vtanh.pop %v1362
  %v1377 = vrot.slane %v1276, 6
  %v1379 = vmul.f32 %v1372, %v1377
  %v1380 = vmul.f32 %v1372, %v1375
  %1382 = vrot.lane.b32.xlu0 %v1380, 64
  %v1383 = vpop.permute.xlu0 %1382
  %v1385 = vadd.f32 %v1379, %v1383
  %v1386 = vtanh.pop %v1385
  %v1387 = vmul.f32 %v1374, %v1386
  %v1389 = vrot.slane %v1387, 2
  %1390 = vrot.lane.b32.xlu0 %v1389, 64
  %v1391 = vpop.permute.xlu0 %1390
  %v1392 = vsel %vm427, %v1391, 0
  %1394 = vmatprep.subr.mxu0 %v601
  %1395 = vmatpush1.msra.mxu0 %v600
  %1396 = vmatprep.subr.mxu0 %v603
  %1397 = vmatpush1.msra.mxu0 %v602
  %1398 = vmatprep.subr.mxu0 %v605
  %1399 = vmatpush1.msra.mxu0 %v604
  %1400 = vmatprep.subr.mxu0 %v607
  %1401 = vmatpush1.msra.mxu0 %v606
  %1402 = vmatprep.subr.mxu0 %v609
  %1403 = vmatpush1.msra.mxu0 %v608
  %1404 = vmatprep.subr.mxu0 %v611
  %1405 = vmatpush1.msra.mxu0 %v610
  %1406 = vmatprep.subr.mxu0 %v613
  %1407 = vmatpush1.msra.mxu0 %v612
  %1408 = vmatprep.subr.mxu0 %v615
  %1409 = vmatpush1.msra.mxu0 %v614
  %1410 = vmatprep.subr.mxu0 0.0
  %1411 = vmatpush1.msra.mxu0 0.0
  %1412 = vmatprep.subr.mxu0 0.0
  %1413 = vmatpush1.msra.mxu0 0.0
  %1414 = vmatprep.subr.mxu0 0.0
  %1415 = vmatpush1.msra.mxu0 0.0
  %1416 = vmatprep.subr.mxu0 0.0
  %1417 = vmatpush1.msra.mxu0 0.0
  %1418 = vmatprep.subr.mxu0 0.0
  %1419 = vmatpush1.msra.mxu0 0.0
  %1420 = vmatprep.subr.mxu0 0.0
  %1421 = vmatpush1.msra.mxu0 0.0
  %1422 = vmatprep.subr.mxu0 0.0
  %1423 = vmatpush1.msra.mxu0 0.0
  %1424 = vmatprep.subr.mxu0 0.0
  %1425 = vmatpush1.msra.mxu0 0.0
  %1426 = vmatprep.subr.mxu0 0.0
  %1427 = vmatpush1.msra.mxu0 0.0
  %1428 = vmatprep.subr.mxu0 0.0
  %1429 = vmatpush1.msra.mxu0 0.0
  %1430 = vmatprep.subr.mxu0 0.0
  %1431 = vmatpush1.msra.mxu0 0.0
  %1432 = vmatprep.subr.mxu0 0.0
  %1433 = vmatpush1.msra.mxu0 0.0
  %1434 = vmatprep.subr.mxu0 0.0
  %1435 = vmatpush1.msra.mxu0 0.0
  %1436 = vmatprep.subr.mxu0 0.0
  %1437 = vmatpush1.msra.mxu0 0.0
  %1438 = vmatprep.subr.mxu0 0.0
  %1439 = vmatpush1.msra.mxu0 0.0
  %1440 = vmatprep.subr.mxu0 0.0
  %1441 = vmatpush1.msra.mxu0 0.0
  %1442 = vmatprep.subr.mxu0 0.0
  %1443 = vmatpush1.msra.mxu0 0.0
  %1444 = vmatprep.subr.mxu0 0.0
  %1445 = vmatpush1.msra.mxu0 0.0
  %1446 = vmatprep.subr.mxu0 0.0
  %1447 = vmatpush1.msra.mxu0 0.0
  %1448 = vmatprep.subr.mxu0 0.0
  %1449 = vmatpush1.msra.mxu0 0.0
  %1450 = vmatprep.subr.mxu0 0.0
  %1451 = vmatpush1.msra.mxu0 0.0
  %1452 = vmatprep.subr.mxu0 0.0
  %1453 = vmatpush1.msra.mxu0 0.0
  %1454 = vmatprep.subr.mxu0 0.0
  %1455 = vmatpush1.msra.mxu0 0.0
  %1456 = vmatprep.subr.mxu0 0.0
  %1457 = vmatpush1.msra.mxu0 0.0
  %1458 = vmatprep.mubr.f32.mxu0 0.0
  %1459 = vmatmul.mubr.f32.gmra.mrb[0].mxu0 %v1392
  %v1460 = vpop.f32.mrb[0].mxu0
  %v1461 = vadd.f32 0.0, %v1460
  %v1462 = vpop.f32.mrb[0].mxu0
  %v1463 = vadd.f32 0.0, %v1462
  %1464 = vdwg.mxu0
  %v1467 = vrot.slane %v1461, 4
  %v1468 = vrot.slane %v1463, 4
  %v1471 = vadd.f32 %v720, %v1467
  %v1472 = vadd.f32 %v722, %v1468
  %v1473 = vxor.u32 %v1471, 2147483648
  %v1474 = vxor.u32 %v1472, 2147483648
  %v1475 = vmul.f32 %v1473, 1.442695
  %v1476 = vpow.pop %v1475
  %v1477 = vmul.f32 %v1474, 1.442695
  %v1478 = vpow.pop %v1477
  %v1479 = vadd.f32 %v1476, 1.0
  %v1480 = vadd.f32 %v1478, 1.0
  %v1481 = vrcp.pop %v1479
  %v1482 = vmul.f32 1.0, %v1481
  %v1483 = vrcp.pop %v1480
  %v1484 = vmul.f32 1.0, %v1483
  %v1485 = vtanh.pop %v1472
  %v1487 = vrot.slane %v1385, 6
  %v1489 = vmul.f32 %v1482, %v1487
  %v1490 = vmul.f32 %v1482, %v1485
  %1492 = vrot.lane.b32.xlu0 %v1490, 64
  %v1493 = vpop.permute.xlu0 %1492
  %v1495 = vadd.f32 %v1489, %v1493
  %v1496 = vtanh.pop %v1495
  %v1497 = vmul.f32 %v1484, %v1496
  %v1499 = vrot.slane %v1497, 4
  %1500 = vrot.lane.b32.xlu0 %v1499, 64
  %v1501 = vpop.permute.xlu0 %1500
  %v1502 = vsel %vm427, %v1501, 0
  %1504 = vmatprep.subr.mxu0 %v601
  %1505 = vmatpush1.msra.mxu0 %v600
  %1506 = vmatprep.subr.mxu0 %v603
  %1507 = vmatpush1.msra.mxu0 %v602
  %1508 = vmatprep.subr.mxu0 %v605
  %1509 = vmatpush1.msra.mxu0 %v604
  %1510 = vmatprep.subr.mxu0 %v607
  %1511 = vmatpush1.msra.mxu0 %v606
  %1512 = vmatprep.subr.mxu0 %v609
  %1513 = vmatpush1.msra.mxu0 %v608
  %1514 = vmatprep.subr.mxu0 %v611
  %1515 = vmatpush1.msra.mxu0 %v610
  %1516 = vmatprep.subr.mxu0 %v613
  %1517 = vmatpush1.msra.mxu0 %v612
  %1518 = vmatprep.subr.mxu0 %v615
  %1519 = vmatpush1.msra.mxu0 %v614
  %1520 = vmatprep.subr.mxu0 0.0
  %1521 = vmatpush1.msra.mxu0 0.0
  %1522 = vmatprep.subr.mxu0 0.0
  %1523 = vmatpush1.msra.mxu0 0.0
  %1524 = vmatprep.subr.mxu0 0.0
  %1525 = vmatpush1.msra.mxu0 0.0
  %1526 = vmatprep.subr.mxu0 0.0
  %1527 = vmatpush1.msra.mxu0 0.0
  %1528 = vmatprep.subr.mxu0 0.0
  %1529 = vmatpush1.msra.mxu0 0.0
  %1530 = vmatprep.subr.mxu0 0.0
  %1531 = vmatpush1.msra.mxu0 0.0
  %1532 = vmatprep.subr.mxu0 0.0
  %1533 = vmatpush1.msra.mxu0 0.0
  %1534 = vmatprep.subr.mxu0 0.0
  %1535 = vmatpush1.msra.mxu0 0.0
  %1536 = vmatprep.subr.mxu0 0.0
  %1537 = vmatpush1.msra.mxu0 0.0
  %1538 = vmatprep.subr.mxu0 0.0
  %1539 = vmatpush1.msra.mxu0 0.0
  %1540 = vmatprep.subr.mxu0 0.0
  %1541 = vmatpush1.msra.mxu0 0.0
  %1542 = vmatprep.subr.mxu0 0.0
  %1543 = vmatpush1.msra.mxu0 0.0
  %1544 = vmatprep.subr.mxu0 0.0
  %1545 = vmatpush1.msra.mxu0 0.0
  %1546 = vmatprep.subr.mxu0 0.0
  %1547 = vmatpush1.msra.mxu0 0.0
  %1548 = vmatprep.subr.mxu0 0.0
  %1549 = vmatpush1.msra.mxu0 0.0
  %1550 = vmatprep.subr.mxu0 0.0
  %1551 = vmatpush1.msra.mxu0 0.0
  %1552 = vmatprep.subr.mxu0 0.0
  %1553 = vmatpush1.msra.mxu0 0.0
  %1554 = vmatprep.subr.mxu0 0.0
  %1555 = vmatpush1.msra.mxu0 0.0
  %1556 = vmatprep.subr.mxu0 0.0
  %1557 = vmatpush1.msra.mxu0 0.0
  %1558 = vmatprep.subr.mxu0 0.0
  %1559 = vmatpush1.msra.mxu0 0.0
  %1560 = vmatprep.subr.mxu0 0.0
  %1561 = vmatpush1.msra.mxu0 0.0
  %1562 = vmatprep.subr.mxu0 0.0
  %1563 = vmatpush1.msra.mxu0 0.0
  %1564 = vmatprep.subr.mxu0 0.0
  %1565 = vmatpush1.msra.mxu0 0.0
  %1566 = vmatprep.subr.mxu0 0.0
  %1567 = vmatpush1.msra.mxu0 0.0
  %1568 = vmatprep.mubr.f32.mxu0 0.0
  %1569 = vmatmul.mubr.f32.gmra.mrb[0].mxu0 %v1502
  %v1570 = vpop.f32.mrb[0].mxu0
  %v1571 = vadd.f32 0.0, %v1570
  %v1572 = vpop.f32.mrb[0].mxu0
  %v1573 = vadd.f32 0.0, %v1572
  %1574 = vdwg.mxu0
  %v1577 = vrot.slane %v1571, 2
  %v1578 = vrot.slane %v1573, 2
  %v1581 = vadd.f32 %v720, %v1577
  %v1582 = vadd.f32 %v722, %v1578
  %v1583 = vxor.u32 %v1581, 2147483648
  %v1584 = vxor.u32 %v1582, 2147483648
  %v1585 = vmul.f32 %v1583, 1.442695
  %v1586 = vpow.pop %v1585
  %v1587 = vmul.f32 %v1584, 1.442695
  %v1588 = vpow.pop %v1587
  %v1589 = vadd.f32 %v1586, 1.0
  %v1590 = vadd.f32 %v1588, 1.0
  %v1591 = vrcp.pop %v1589
  %v1592 = vmul.f32 1.0, %v1591
  %v1593 = vrcp.pop %v1590
  %v1594 = vmul.f32 1.0, %v1593
  %v1595 = vtanh.pop %v1582
  %v1597 = vrot.slane %v1495, 6
  %v1599 = vmul.f32 %v1592, %v1597
  %v1600 = vmul.f32 %v1592, %v1595
  %1602 = vrot.lane.b32.xlu0 %v1600, 64
  %v1603 = vpop.permute.xlu0 %1602
  %v1605 = vadd.f32 %v1599, %v1603
  %v1606 = vtanh.pop %v1605
  %v1607 = vmul.f32 %v1594, %v1606
  %v1609 = vrot.slane %v1607, 6
  %1610 = vrot.lane.b32.xlu0 %v1609, 64
  %v1611 = vpop.permute.xlu0 %1610
  %v1612 = vsel %vm427, %v1611, 0
  %1614 = vmatprep.subr.mxu0 %v601
  %1615 = vmatpush1.msra.mxu0 %v600
  %1616 = vmatprep.subr.mxu0 %v603
  %1617 = vmatpush1.msra.mxu0 %v602
  %1618 = vmatprep.subr.mxu0 %v605
  %1619 = vmatpush1.msra.mxu0 %v604
  %1620 = vmatprep.subr.mxu0 %v607
  %1621 = vmatpush1.msra.mxu0 %v606
  %1622 = vmatprep.subr.mxu0 %v609
  %1623 = vmatpush1.msra.mxu0 %v608
  %1624 = vmatprep.subr.mxu0 %v611
  %1625 = vmatpush1.msra.mxu0 %v610
  %1626 = vmatprep.subr.mxu0 %v613
  %1627 = vmatpush1.msra.mxu0 %v612
  %1628 = vmatprep.subr.mxu0 %v615
  %1629 = vmatpush1.msra.mxu0 %v614
  %1630 = vmatprep.subr.mxu0 0.0
  %1631 = vmatpush1.msra.mxu0 0.0
  %1632 = vmatprep.subr.mxu0 0.0
  %1633 = vmatpush1.msra.mxu0 0.0
  %1634 = vmatprep.subr.mxu0 0.0
  %1635 = vmatpush1.msra.mxu0 0.0
  %1636 = vmatprep.subr.mxu0 0.0
  %1637 = vmatpush1.msra.mxu0 0.0
  %1638 = vmatprep.subr.mxu0 0.0
  %1639 = vmatpush1.msra.mxu0 0.0
  %1640 = vmatprep.subr.mxu0 0.0
  %1641 = vmatpush1.msra.mxu0 0.0
  %1642 = vmatprep.subr.mxu0 0.0
  %1643 = vmatpush1.msra.mxu0 0.0
  %1644 = vmatprep.subr.mxu0 0.0
  %1645 = vmatpush1.msra.mxu0 0.0
  %1646 = vmatprep.subr.mxu0 0.0
  %1647 = vmatpush1.msra.mxu0 0.0
  %1648 = vmatprep.subr.mxu0 0.0
  %1649 = vmatpush1.msra.mxu0 0.0
  %1650 = vmatprep.subr.mxu0 0.0
  %1651 = vmatpush1.msra.mxu0 0.0
  %1652 = vmatprep.subr.mxu0 0.0
  %1653 = vmatpush1.msra.mxu0 0.0
  %1654 = vmatprep.subr.mxu0 0.0
  %1655 = vmatpush1.msra.mxu0 0.0
  %1656 = vmatprep.subr.mxu0 0.0
  %1657 = vmatpush1.msra.mxu0 0.0
  %1658 = vmatprep.subr.mxu0 0.0
  %1659 = vmatpush1.msra.mxu0 0.0
  %1660 = vmatprep.subr.mxu0 0.0
  %1661 = vmatpush1.msra.mxu0 0.0
  %1662 = vmatprep.subr.mxu0 0.0
  %1663 = vmatpush1.msra.mxu0 0.0
  %1664 = vmatprep.subr.mxu0 0.0
  %1665 = vmatpush1.msra.mxu0 0.0
  %1666 = vmatprep.subr.mxu0 0.0
  %1667 = vmatpush1.msra.mxu0 0.0
  %1668 = vmatprep.subr.mxu0 0.0
  %1669 = vmatpush1.msra.mxu0 0.0
  %1670 = vmatprep.subr.mxu0 0.0
  %1671 = vmatpush1.msra.mxu0 0.0
  %1672 = vmatprep.subr.mxu0 0.0
  %1673 = vmatpush1.msra.mxu0 0.0
  %1674 = vmatprep.subr.mxu0 0.0
  %1675 = vmatpush1.msra.mxu0 0.0
  %1676 = vmatprep.subr.mxu0 0.0
  %1677 = vmatpush1.msra.mxu0 0.0
  %1678 = vmatprep.mubr.f32.mxu0 0.0
  %1679 = vmatmul.mubr.f32.gmra.mrb[0].mxu0 %v1612
  %v1680 = vpop.f32.mrb[0].mxu0
  %v1681 = vadd.f32 0.0, %v1680
  %v1682 = vpop.f32.mrb[0].mxu0
  %v1683 = vadd.f32 0.0, %v1682
  %1684 = vdwg.mxu0
  %v1685 = vadd.f32 %v726, %v1681
  %v1686 = vadd.f32 %v728, %v1683
  %v1687 = vxor.u32 %v1685, 2147483648
  %v1688 = vxor.u32 %v1686, 2147483648
  %v1689 = vmul.f32 %v1687, 1.442695
  %v1690 = vpow.pop %v1689
  %v1691 = vmul.f32 %v1688, 1.442695
  %v1692 = vpow.pop %v1691
  %v1693 = vadd.f32 %v1690, 1.0
  %v1694 = vadd.f32 %v1692, 1.0
  %v1695 = vrcp.pop %v1693
  %v1696 = vmul.f32 1.0, %v1695
  %v1697 = vrcp.pop %v1694
  %v1698 = vmul.f32 1.0, %v1697
  %v1699 = vtanh.pop %v1686
  %v1701 = vrot.slane %v1605, 6
  %v1703 = vmul.f32 %v1696, %v1701
  %v1704 = vmul.f32 %v1696, %v1699
  %1706 = vrot.lane.b32.xlu0 %v1704, 64
  %v1707 = vpop.permute.xlu0 %1706
  %v1709 = vadd.f32 %v1703, %v1707
  %v1710 = vtanh.pop %v1709
  %v1711 = vmul.f32 %v1698, %v1710
  %1713 = vrot.lane.b32.xlu0 %v1711, 64
  %v1714 = vpop.permute.xlu0 %1713
  %v1715 = vsel %vm427, %v1714, 0
  %1717 = vmatprep.subr.mxu0 %v601
  %1718 = vmatpush1.msra.mxu0 %v600
  %1719 = vmatprep.subr.mxu0 %v603
  %1720 = vmatpush1.msra.mxu0 %v602
  %1721 = vmatprep.subr.mxu0 %v605
  %1722 = vmatpush1.msra.mxu0 %v604
  %1723 = vmatprep.subr.mxu0 %v607
  %1724 = vmatpush1.msra.mxu0 %v606
  %1725 = vmatprep.subr.mxu0 %v609
  %1726 = vmatpush1.msra.mxu0 %v608
  %1727 = vmatprep.subr.mxu0 %v611
  %1728 = vmatpush1.msra.mxu0 %v610
  %1729 = vmatprep.subr.mxu0 %v613
  %1730 = vmatpush1.msra.mxu0 %v612
  %1731 = vmatprep.subr.mxu0 %v615
  %1732 = vmatpush1.msra.mxu0 %v614
  %1733 = vmatprep.subr.mxu0 0.0
  %1734 = vmatpush1.msra.mxu0 0.0
  %1735 = vmatprep.subr.mxu0 0.0
  %1736 = vmatpush1.msra.mxu0 0.0
  %1737 = vmatprep.subr.mxu0 0.0
  %1738 = vmatpush1.msra.mxu0 0.0
  %1739 = vmatprep.subr.mxu0 0.0
  %1740 = vmatpush1.msra.mxu0 0.0
  %1741 = vmatprep.subr.mxu0 0.0
  %1742 = vmatpush1.msra.mxu0 0.0
  %1743 = vmatprep.subr.mxu0 0.0
  %1744 = vmatpush1.msra.mxu0 0.0
  %1745 = vmatprep.subr.mxu0 0.0
  %1746 = vmatpush1.msra.mxu0 0.0
  %1747 = vmatprep.subr.mxu0 0.0
  %1748 = vmatpush1.msra.mxu0 0.0
  %1749 = vmatprep.subr.mxu0 0.0
  %1750 = vmatpush1.msra.mxu0 0.0
  %1751 = vmatprep.subr.mxu0 0.0
  %1752 = vmatpush1.msra.mxu0 0.0
  %1753 = vmatprep.subr.mxu0 0.0
  %1754 = vmatpush1.msra.mxu0 0.0
  %1755 = vmatprep.subr.mxu0 0.0
  %1756 = vmatpush1.msra.mxu0 0.0
  %1757 = vmatprep.subr.mxu0 0.0
  %1758 = vmatpush1.msra.mxu0 0.0
  %1759 = vmatprep.subr.mxu0 0.0
  %1760 = vmatpush1.msra.mxu0 0.0
  %1761 = vmatprep.subr.mxu0 0.0
  %1762 = vmatpush1.msra.mxu0 0.0
  %1763 = vmatprep.subr.mxu0 0.0
  %1764 = vmatpush1.msra.mxu0 0.0
  %1765 = vmatprep.subr.mxu0 0.0
  %1766 = vmatpush1.msra.mxu0 0.0
  %1767 = vmatprep.subr.mxu0 0.0
  %1768 = vmatpush1.msra.mxu0 0.0
  %1769 = vmatprep.subr.mxu0 0.0
  %1770 = vmatpush1.msra.mxu0 0.0
  %1771 = vmatprep.subr.mxu0 0.0
  %1772 = vmatpush1.msra.mxu0 0.0
  %1773 = vmatprep.subr.mxu0 0.0
  %1774 = vmatpush1.msra.mxu0 0.0
  %1775 = vmatprep.subr.mxu0 0.0
  %1776 = vmatpush1.msra.mxu0 0.0
  %1777 = vmatprep.subr.mxu0 0.0
  %1778 = vmatpush1.msra.mxu0 0.0
  %1779 = vmatprep.subr.mxu0 0.0
  %1780 = vmatpush1.msra.mxu0 0.0
  %1781 = vmatprep.mubr.f32.mxu0 0.0
  %1782 = vmatmul.mubr.f32.gmra.mrb[0].mxu0 %v1715
  %v1783 = vpop.f32.mrb[0].mxu0
  %v1784 = vadd.f32 0.0, %v1783
  %v1785 = vpop.f32.mrb[0].mxu0
  %v1786 = vadd.f32 0.0, %v1785
  %1787 = vdwg.mxu0
  %v1790 = vrot.slane %v1784, 6
  %v1791 = vrot.slane %v1786, 6
  %v1794 = vadd.f32 %v726, %v1790
  %v1795 = vadd.f32 %v728, %v1791
  %v1796 = vxor.u32 %v1794, 2147483648
  %v1797 = vxor.u32 %v1795, 2147483648
  %v1798 = vmul.f32 %v1796, 1.442695
  %v1799 = vpow.pop %v1798
  %v1800 = vmul.f32 %v1797, 1.442695
  %v1801 = vpow.pop %v1800
  %v1802 = vadd.f32 %v1799, 1.0
  %v1803 = vadd.f32 %v1801, 1.0
  %v1804 = vrcp.pop %v1802
  %v1805 = vmul.f32 1.0, %v1804
  %v1806 = vrcp.pop %v1803
  %v1807 = vmul.f32 1.0, %v1806
  %v1808 = vtanh.pop %v1795
  %v1810 = vrot.slane %v1709, 6
  %v1812 = vmul.f32 %v1805, %v1810
  %v1813 = vmul.f32 %v1805, %v1808
  %1815 = vrot.lane.b32.xlu0 %v1813, 64
  %v1816 = vpop.permute.xlu0 %1815
  %v1818 = vadd.f32 %v1812, %v1816
  %v1819 = vtanh.pop %v1818
  %v1820 = vmul.f32 %v1807, %v1819
  %v1822 = vrot.slane %v1820, 2
  %1823 = vrot.lane.b32.xlu0 %v1822, 64
  %v1824 = vpop.permute.xlu0 %1823
  %v1825 = vsel %vm427, %v1824, 0
  %1827 = vmatprep.subr.mxu0 %v601
  %1828 = vmatpush1.msra.mxu0 %v600
  %1829 = vmatprep.subr.mxu0 %v603
  %1830 = vmatpush1.msra.mxu0 %v602
  %1831 = vmatprep.subr.mxu0 %v605
  %1832 = vmatpush1.msra.mxu0 %v604
  %1833 = vmatprep.subr.mxu0 %v607
  %1834 = vmatpush1.msra.mxu0 %v606
  %1835 = vmatprep.subr.mxu0 %v609
  %1836 = vmatpush1.msra.mxu0 %v608
  %1837 = vmatprep.subr.mxu0 %v611
  %1838 = vmatpush1.msra.mxu0 %v610
  %1839 = vmatprep.subr.mxu0 %v613
  %1840 = vmatpush1.msra.mxu0 %v612
  %1841 = vmatprep.subr.mxu0 %v615
  %1842 = vmatpush1.msra.mxu0 %v614
  %1843 = vmatprep.subr.mxu0 0.0
  %1844 = vmatpush1.msra.mxu0 0.0
  %1845 = vmatprep.subr.mxu0 0.0
  %1846 = vmatpush1.msra.mxu0 0.0
  %1847 = vmatprep.subr.mxu0 0.0
  %1848 = vmatpush1.msra.mxu0 0.0
  %1849 = vmatprep.subr.mxu0 0.0
  %1850 = vmatpush1.msra.mxu0 0.0
  %1851 = vmatprep.subr.mxu0 0.0
  %1852 = vmatpush1.msra.mxu0 0.0
  %1853 = vmatprep.subr.mxu0 0.0
  %1854 = vmatpush1.msra.mxu0 0.0
  %1855 = vmatprep.subr.mxu0 0.0
  %1856 = vmatpush1.msra.mxu0 0.0
  %1857 = vmatprep.subr.mxu0 0.0
  %1858 = vmatpush1.msra.mxu0 0.0
  %1859 = vmatprep.subr.mxu0 0.0
  %1860 = vmatpush1.msra.mxu0 0.0
  %1861 = vmatprep.subr.mxu0 0.0
  %1862 = vmatpush1.msra.mxu0 0.0
  %1863 = vmatprep.subr.mxu0 0.0
  %1864 = vmatpush1.msra.mxu0 0.0
  %1865 = vmatprep.subr.mxu0 0.0
  %1866 = vmatpush1.msra.mxu0 0.0
  %1867 = vmatprep.subr.mxu0 0.0
  %1868 = vmatpush1.msra.mxu0 0.0
  %1869 = vmatprep.subr.mxu0 0.0
  %1870 = vmatpush1.msra.mxu0 0.0
  %1871 = vmatprep.subr.mxu0 0.0
  %1872 = vmatpush1.msra.mxu0 0.0
  %1873 = vmatprep.subr.mxu0 0.0
  %1874 = vmatpush1.msra.mxu0 0.0
  %1875 = vmatprep.subr.mxu0 0.0
  %1876 = vmatpush1.msra.mxu0 0.0
  %1877 = vmatprep.subr.mxu0 0.0
  %1878 = vmatpush1.msra.mxu0 0.0
  %1879 = vmatprep.subr.mxu0 0.0
  %1880 = vmatpush1.msra.mxu0 0.0
  %1881 = vmatprep.subr.mxu0 0.0
  %1882 = vmatpush1.msra.mxu0 0.0
  %1883 = vmatprep.subr.mxu0 0.0
  %1884 = vmatpush1.msra.mxu0 0.0
  %1885 = vmatprep.subr.mxu0 0.0
  %1886 = vmatpush1.msra.mxu0 0.0
  %1887 = vmatprep.subr.mxu0 0.0
  %1888 = vmatpush1.msra.mxu0 0.0
  %1889 = vmatprep.subr.mxu0 0.0
  %1890 = vmatpush1.msra.mxu0 0.0
  %1891 = vmatprep.mubr.f32.mxu0 0.0
  %1892 = vmatmul.mubr.f32.gmra.mrb[0].mxu0 %v1825
  %v1893 = vpop.f32.mrb[0].mxu0
  %v1894 = vadd.f32 0.0, %v1893
  %v1895 = vpop.f32.mrb[0].mxu0
  %v1896 = vadd.f32 0.0, %v1895
  %1897 = vdwg.mxu0
  %v1900 = vrot.slane %v1894, 4
  %v1901 = vrot.slane %v1896, 4
  %v1904 = vadd.f32 %v726, %v1900
  %v1905 = vadd.f32 %v728, %v1901
  %v1906 = vxor.u32 %v1904, 2147483648
  %v1907 = vxor.u32 %v1905, 2147483648
  %v1908 = vmul.f32 %v1906, 1.442695
  %v1909 = vpow.pop %v1908
  %v1910 = vmul.f32 %v1907, 1.442695
  %v1911 = vpow.pop %v1910
  %v1912 = vadd.f32 %v1909, 1.0
  %v1913 = vadd.f32 %v1911, 1.0
  %v1914 = vrcp.pop %v1912
  %v1915 = vmul.f32 1.0, %v1914
  %v1916 = vrcp.pop %v1913
  %v1917 = vmul.f32 1.0, %v1916
  %v1918 = vtanh.pop %v1905
  %v1920 = vrot.slane %v1818, 6
  %v1922 = vmul.f32 %v1915, %v1920
  %v1923 = vmul.f32 %v1915, %v1918
  %1925 = vrot.lane.b32.xlu0 %v1923, 64
  %v1926 = vpop.permute.xlu0 %1925
  %v1928 = vadd.f32 %v1922, %v1926
  %v1929 = vtanh.pop %v1928
  %v1930 = vmul.f32 %v1917, %v1929
  %v1932 = vrot.slane %v1930, 4
  %1933 = vrot.lane.b32.xlu0 %v1932, 64
  %v1934 = vpop.permute.xlu0 %1933
  %v1935 = vsel %vm427, %v1934, 0
  %1937 = vmatprep.subr.mxu0 %v601
  %1938 = vmatpush1.msra.mxu0 %v600
  %1939 = vmatprep.subr.mxu0 %v603
  %1940 = vmatpush1.msra.mxu0 %v602
  %1941 = vmatprep.subr.mxu0 %v605
  %1942 = vmatpush1.msra.mxu0 %v604
  %1943 = vmatprep.subr.mxu0 %v607
  %1944 = vmatpush1.msra.mxu0 %v606
  %1945 = vmatprep.subr.mxu0 %v609
  %1946 = vmatpush1.msra.mxu0 %v608
  %1947 = vmatprep.subr.mxu0 %v611
  %1948 = vmatpush1.msra.mxu0 %v610
  %1949 = vmatprep.subr.mxu0 %v613
  %1950 = vmatpush1.msra.mxu0 %v612
  %1951 = vmatprep.subr.mxu0 %v615
  %1952 = vmatpush1.msra.mxu0 %v614
  %1953 = vmatprep.subr.mxu0 0.0
  %1954 = vmatpush1.msra.mxu0 0.0
  %1955 = vmatprep.subr.mxu0 0.0
  %1956 = vmatpush1.msra.mxu0 0.0
  %1957 = vmatprep.subr.mxu0 0.0
  %1958 = vmatpush1.msra.mxu0 0.0
  %1959 = vmatprep.subr.mxu0 0.0
  %1960 = vmatpush1.msra.mxu0 0.0
  %1961 = vmatprep.subr.mxu0 0.0
  %1962 = vmatpush1.msra.mxu0 0.0
  %1963 = vmatprep.subr.mxu0 0.0
  %1964 = vmatpush1.msra.mxu0 0.0
  %1965 = vmatprep.subr.mxu0 0.0
  %1966 = vmatpush1.msra.mxu0 0.0
  %1967 = vmatprep.subr.mxu0 0.0
  %1968 = vmatpush1.msra.mxu0 0.0
  %1969 = vmatprep.subr.mxu0 0.0
  %1970 = vmatpush1.msra.mxu0 0.0
  %1971 = vmatprep.subr.mxu0 0.0
  %1972 = vmatpush1.msra.mxu0 0.0
  %1973 = vmatprep.subr.mxu0 0.0
  %1974 = vmatpush1.msra.mxu0 0.0
  %1975 = vmatprep.subr.mxu0 0.0
  %1976 = vmatpush1.msra.mxu0 0.0
  %1977 = vmatprep.subr.mxu0 0.0
  %1978 = vmatpush1.msra.mxu0 0.0
  %1979 = vmatprep.subr.mxu0 0.0
  %1980 = vmatpush1.msra.mxu0 0.0
  %1981 = vmatprep.subr.mxu0 0.0
  %1982 = vmatpush1.msra.mxu0 0.0
  %1983 = vmatprep.subr.mxu0 0.0
  %1984 = vmatpush1.msra.mxu0 0.0
  %1985 = vmatprep.subr.mxu0 0.0
  %1986 = vmatpush1.msra.mxu0 0.0
  %1987 = vmatprep.subr.mxu0 0.0
  %1988 = vmatpush1.msra.mxu0 0.0
  %1989 = vmatprep.subr.mxu0 0.0
  %1990 = vmatpush1.msra.mxu0 0.0
  %1991 = vmatprep.subr.mxu0 0.0
  %1992 = vmatpush1.msra.mxu0 0.0
  %1993 = vmatprep.subr.mxu0 0.0
  %1994 = vmatpush1.msra.mxu0 0.0
  %1995 = vmatprep.subr.mxu0 0.0
  %1996 = vmatpush1.msra.mxu0 0.0
  %1997 = vmatprep.subr.mxu0 0.0
  %1998 = vmatpush1.msra.mxu0 0.0
  %1999 = vmatprep.subr.mxu0 0.0
  %2000 = vmatpush1.msra.mxu0 0.0
  %2001 = vmatprep.mubr.f32.mxu0 0.0
  %2002 = vmatmul.mubr.f32.gmra.mrb[0].mxu0 %v1935
  %v2003 = vpop.f32.mrb[0].mxu0
  %v2004 = vadd.f32 0.0, %v2003
  %v2005 = vpop.f32.mrb[0].mxu0
  %v2006 = vadd.f32 0.0, %v2005
  %2007 = vdwg.mxu0
  %v2010 = vrot.slane %v2004, 2
  %v2011 = vrot.slane %v2006, 2
  %v2014 = vadd.f32 %v726, %v2010
  %v2015 = vadd.f32 %v728, %v2011
  %v2016 = vxor.u32 %v2014, 2147483648
  %v2017 = vxor.u32 %v2015, 2147483648
  %v2018 = vmul.f32 %v2016, 1.442695
  %v2019 = vpow.pop %v2018
  %v2020 = vmul.f32 %v2017, 1.442695
  %v2021 = vpow.pop %v2020
  %v2022 = vadd.f32 %v2019, 1.0
  %v2023 = vadd.f32 %v2021, 1.0
  %v2024 = vrcp.pop %v2022
  %v2025 = vmul.f32 1.0, %v2024
  %v2026 = vrcp.pop %v2023
  %v2027 = vmul.f32 1.0, %v2026
  %v2028 = vtanh.pop %v2015
  %v2030 = vrot.slane %v1928, 6
  %v2032 = vmul.f32 %v2025, %v2030
  %v2033 = vmul.f32 %v2025, %v2028
  %2035 = vrot.lane.b32.xlu0 %v2033, 64
  %v2036 = vpop.permute.xlu0 %2035
  %v2038 = vadd.f32 %v2032, %v2036
  %v2039 = vtanh.pop %v2038
  %v2040 = vmul.f32 %v2027, %v2039
  %v2042 = vrot.slane %v2040, 6
  %2043 = vrot.lane.b32.xlu0 %v2042, 64
  %v2044 = vpop.permute.xlu0 %2043
  %v2045 = vsel %vm427, %v2044, 0
  %2047 = vmatprep.subr.mxu0 %v601
  %2048 = vmatpush1.msra.mxu0 %v600
  %2049 = vmatprep.subr.mxu0 %v603
  %2050 = vmatpush1.msra.mxu0 %v602
  %2051 = vmatprep.subr.mxu0 %v605
  %2052 = vmatpush1.msra.mxu0 %v604
  %2053 = vmatprep.subr.mxu0 %v607
  %2054 = vmatpush1.msra.mxu0 %v606
  %2055 = vmatprep.subr.mxu0 %v609
  %2056 = vmatpush1.msra.mxu0 %v608
  %2057 = vmatprep.subr.mxu0 %v611
  %2058 = vmatpush1.msra.mxu0 %v610
  %2059 = vmatprep.subr.mxu0 %v613
  %2060 = vmatpush1.msra.mxu0 %v612
  %2061 = vmatprep.subr.mxu0 %v615
  %2062 = vmatpush1.msra.mxu0 %v614
  %2063 = vmatprep.subr.mxu0 0.0
  %2064 = vmatpush1.msra.mxu0 0.0
  %2065 = vmatprep.subr.mxu0 0.0
  %2066 = vmatpush1.msra.mxu0 0.0
  %2067 = vmatprep.subr.mxu0 0.0
  %2068 = vmatpush1.msra.mxu0 0.0
  %2069 = vmatprep.subr.mxu0 0.0
  %2070 = vmatpush1.msra.mxu0 0.0
  %2071 = vmatprep.subr.mxu0 0.0
  %2072 = vmatpush1.msra.mxu0 0.0
  %2073 = vmatprep.subr.mxu0 0.0
  %2074 = vmatpush1.msra.mxu0 0.0
  %2075 = vmatprep.subr.mxu0 0.0
  %2076 = vmatpush1.msra.mxu0 0.0
  %2077 = vmatprep.subr.mxu0 0.0
  %2078 = vmatpush1.msra.mxu0 0.0
  %2079 = vmatprep.subr.mxu0 0.0
  %2080 = vmatpush1.msra.mxu0 0.0
  %2081 = vmatprep.subr.mxu0 0.0
  %2082 = vmatpush1.msra.mxu0 0.0
  %2083 = vmatprep.subr.mxu0 0.0
  %2084 = vmatpush1.msra.mxu0 0.0
  %2085 = vmatprep.subr.mxu0 0.0
  %2086 = vmatpush1.msra.mxu0 0.0
  %2087 = vmatprep.subr.mxu0 0.0
  %2088 = vmatpush1.msra.mxu0 0.0
  %2089 = vmatprep.subr.mxu0 0.0
  %2090 = vmatpush1.msra.mxu0 0.0
  %2091 = vmatprep.subr.mxu0 0.0
  %2092 = vmatpush1.msra.mxu0 0.0
  %2093 = vmatprep.subr.mxu0 0.0
  %2094 = vmatpush1.msra.mxu0 0.0
  %2095 = vmatprep.subr.mxu0 0.0
  %2096 = vmatpush1.msra.mxu0 0.0
  %2097 = vmatprep.subr.mxu0 0.0
  %2098 = vmatpush1.msra.mxu0 0.0
  %2099 = vmatprep.subr.mxu0 0.0
  %2100 = vmatpush1.msra.mxu0 0.0
  %2101 = vmatprep.subr.mxu0 0.0
  %2102 = vmatpush1.msra.mxu0 0.0
  %2103 = vmatprep.subr.mxu0 0.0
  %2104 = vmatpush1.msra.mxu0 0.0
  %2105 = vmatprep.subr.mxu0 0.0
  %2106 = vmatpush1.msra.mxu0 0.0
  %2107 = vmatprep.subr.mxu0 0.0
  %2108 = vmatpush1.msra.mxu0 0.0
  %2109 = vmatprep.subr.mxu0 0.0
  %2110 = vmatpush1.msra.mxu0 0.0
  %2111 = vmatprep.mubr.f32.mxu0 0.0
  %2112 = vmatmul.mubr.f32.gmra.mrb[0].mxu0 %v2045
  %v2113 = vpop.f32.mrb[0].mxu0
  %v2114 = vadd.f32 0.0, %v2113
  %v2115 = vpop.f32.mrb[0].mxu0
  %v2116 = vadd.f32 0.0, %v2115
  %2117 = vdwg.mxu0
  %v2118 = vadd.f32 %v732, %v2114
  %v2119 = vadd.f32 %v734, %v2116
  %v2120 = vxor.u32 %v2118, 2147483648
  %v2121 = vxor.u32 %v2119, 2147483648
  %v2122 = vmul.f32 %v2120, 1.442695
  %v2123 = vpow.pop %v2122
  %v2124 = vmul.f32 %v2121, 1.442695
  %v2125 = vpow.pop %v2124
  %v2126 = vadd.f32 %v2123, 1.0
  %v2127 = vadd.f32 %v2125, 1.0
  %v2128 = vrcp.pop %v2126
  %v2129 = vmul.f32 1.0, %v2128
  %v2130 = vrcp.pop %v2127
  %v2131 = vmul.f32 1.0, %v2130
  %v2132 = vtanh.pop %v2119
  %v2134 = vrot.slane %v2038, 6
  %v2136 = vmul.f32 %v2129, %v2134
  %v2137 = vmul.f32 %v2129, %v2132
  %2139 = vrot.lane.b32.xlu0 %v2137, 64
  %v2140 = vpop.permute.xlu0 %2139
  %v2142 = vadd.f32 %v2136, %v2140
  %v2143 = vtanh.pop %v2142
  %v2144 = vmul.f32 %v2131, %v2143
  %2146 = vrot.lane.b32.xlu0 %v2144, 64
  %v2147 = vpop.permute.xlu0 %2146
  %v2148 = vsel %vm427, %v2147, 0
  %2150 = vmatprep.subr.mxu0 %v601
  %2151 = vmatpush1.msra.mxu0 %v600
  %2152 = vmatprep.subr.mxu0 %v603
  %2153 = vmatpush1.msra.mxu0 %v602
  %2154 = vmatprep.subr.mxu0 %v605
  %2155 = vmatpush1.msra.mxu0 %v604
  %2156 = vmatprep.subr.mxu0 %v607
  %2157 = vmatpush1.msra.mxu0 %v606
  %2158 = vmatprep.subr.mxu0 %v609
  %2159 = vmatpush1.msra.mxu0 %v608
  %2160 = vmatprep.subr.mxu0 %v611
  %2161 = vmatpush1.msra.mxu0 %v610
  %2162 = vmatprep.subr.mxu0 %v613
  %2163 = vmatpush1.msra.mxu0 %v612
  %2164 = vmatprep.subr.mxu0 %v615
  %2165 = vmatpush1.msra.mxu0 %v614
  %2166 = vmatprep.subr.mxu0 0.0
  %2167 = vmatpush1.msra.mxu0 0.0
  %2168 = vmatprep.subr.mxu0 0.0
  %2169 = vmatpush1.msra.mxu0 0.0
  %2170 = vmatprep.subr.mxu0 0.0
  %2171 = vmatpush1.msra.mxu0 0.0
  %2172 = vmatprep.subr.mxu0 0.0
  %2173 = vmatpush1.msra.mxu0 0.0
  %2174 = vmatprep.subr.mxu0 0.0
  %2175 = vmatpush1.msra.mxu0 0.0
  %2176 = vmatprep.subr.mxu0 0.0
  %2177 = vmatpush1.msra.mxu0 0.0
  %2178 = vmatprep.subr.mxu0 0.0
  %2179 = vmatpush1.msra.mxu0 0.0
  %2180 = vmatprep.subr.mxu0 0.0
  %2181 = vmatpush1.msra.mxu0 0.0
  %2182 = vmatprep.subr.mxu0 0.0
  %2183 = vmatpush1.msra.mxu0 0.0
  %2184 = vmatprep.subr.mxu0 0.0
  %2185 = vmatpush1.msra.mxu0 0.0
  %2186 = vmatprep.subr.mxu0 0.0
  %2187 = vmatpush1.msra.mxu0 0.0
  %2188 = vmatprep.subr.mxu0 0.0
  %2189 = vmatpush1.msra.mxu0 0.0
  %2190 = vmatprep.subr.mxu0 0.0
  %2191 = vmatpush1.msra.mxu0 0.0
  %2192 = vmatprep.subr.mxu0 0.0
  %2193 = vmatpush1.msra.mxu0 0.0
  %2194 = vmatprep.subr.mxu0 0.0
  %2195 = vmatpush1.msra.mxu0 0.0
  %2196 = vmatprep.subr.mxu0 0.0
  %2197 = vmatpush1.msra.mxu0 0.0
  %2198 = vmatprep.subr.mxu0 0.0
  %2199 = vmatpush1.msra.mxu0 0.0
  %2200 = vmatprep.subr.mxu0 0.0
  %2201 = vmatpush1.msra.mxu0 0.0
  %2202 = vmatprep.subr.mxu0 0.0
  %2203 = vmatpush1.msra.mxu0 0.0
  %2204 = vmatprep.subr.mxu0 0.0
  %2205 = vmatpush1.msra.mxu0 0.0
  %2206 = vmatprep.subr.mxu0 0.0
  %2207 = vmatpush1.msra.mxu0 0.0
  %2208 = vmatprep.subr.mxu0 0.0
  %2209 = vmatpush1.msra.mxu0 0.0
  %2210 = vmatprep.subr.mxu0 0.0
  %2211 = vmatpush1.msra.mxu0 0.0
  %2212 = vmatprep.subr.mxu0 0.0
  %2213 = vmatpush1.msra.mxu0 0.0
  %2214 = vmatprep.mubr.f32.mxu0 0.0
  %2215 = vmatmul.mubr.f32.gmra.mrb[0].mxu0 %v2148
  %v2216 = vpop.f32.mrb[0].mxu0
  %v2217 = vadd.f32 0.0, %v2216
  %v2218 = vpop.f32.mrb[0].mxu0
  %v2219 = vadd.f32 0.0, %v2218
  %2220 = vdwg.mxu0
  %v2223 = vrot.slane %v2217, 6
  %v2224 = vrot.slane %v2219, 6
  %v2227 = vadd.f32 %v732, %v2223
  %v2228 = vadd.f32 %v734, %v2224
  %v2229 = vxor.u32 %v2227, 2147483648
  %v2230 = vxor.u32 %v2228, 2147483648
  %v2231 = vmul.f32 %v2229, 1.442695
  %v2232 = vpow.pop %v2231
  %v2233 = vmul.f32 %v2230, 1.442695
  %v2234 = vpow.pop %v2233
  %v2235 = vadd.f32 %v2232, 1.0
  %v2236 = vadd.f32 %v2234, 1.0
  %v2237 = vrcp.pop %v2235
  %v2238 = vmul.f32 1.0, %v2237
  %v2239 = vrcp.pop %v2236
  %v2240 = vmul.f32 1.0, %v2239
  %v2241 = vtanh.pop %v2228
  %v2243 = vrot.slane %v2142, 6
  %v2245 = vmul.f32 %v2238, %v2243
  %v2246 = vmul.f32 %v2238, %v2241
  %2248 = vrot.lane.b32.xlu0 %v2246, 64
  %v2249 = vpop.permute.xlu0 %2248
  %v2251 = vadd.f32 %v2245, %v2249
  %v2252 = vtanh.pop %v2251
  %v2253 = vmul.f32 %v2240, %v2252
  %v2255 = vrot.slane %v2253, 2
  %2256 = vrot.lane.b32.xlu0 %v2255, 64
  %v2257 = vpop.permute.xlu0 %2256
  %v2258 = vsel %vm427, %v2257, 0
  %2260 = vmatprep.subr.mxu0 %v601
  %2261 = vmatpush1.msra.mxu0 %v600
  %2262 = vmatprep.subr.mxu0 %v603
  %2263 = vmatpush1.msra.mxu0 %v602
  %2264 = vmatprep.subr.mxu0 %v605
  %2265 = vmatpush1.msra.mxu0 %v604
  %2266 = vmatprep.subr.mxu0 %v607
  %2267 = vmatpush1.msra.mxu0 %v606
  %2268 = vmatprep.subr.mxu0 %v609
  %2269 = vmatpush1.msra.mxu0 %v608
  %2270 = vmatprep.subr.mxu0 %v611
  %2271 = vmatpush1.msra.mxu0 %v610
  %2272 = vmatprep.subr.mxu0 %v613
  %2273 = vmatpush1.msra.mxu0 %v612
  %2274 = vmatprep.subr.mxu0 %v615
  %2275 = vmatpush1.msra.mxu0 %v614
  %2276 = vmatprep.subr.mxu0 0.0
  %2277 = vmatpush1.msra.mxu0 0.0
  %2278 = vmatprep.subr.mxu0 0.0
  %2279 = vmatpush1.msra.mxu0 0.0
  %2280 = vmatprep.subr.mxu0 0.0
  %2281 = vmatpush1.msra.mxu0 0.0
  %2282 = vmatprep.subr.mxu0 0.0
  %2283 = vmatpush1.msra.mxu0 0.0
  %2284 = vmatprep.subr.mxu0 0.0
  %2285 = vmatpush1.msra.mxu0 0.0
  %2286 = vmatprep.subr.mxu0 0.0
  %2287 = vmatpush1.msra.mxu0 0.0
  %2288 = vmatprep.subr.mxu0 0.0
  %2289 = vmatpush1.msra.mxu0 0.0
  %2290 = vmatprep.subr.mxu0 0.0
  %2291 = vmatpush1.msra.mxu0 0.0
  %2292 = vmatprep.subr.mxu0 0.0
  %2293 = vmatpush1.msra.mxu0 0.0
  %2294 = vmatprep.subr.mxu0 0.0
  %2295 = vmatpush1.msra.mxu0 0.0
  %2296 = vmatprep.subr.mxu0 0.0
  %2297 = vmatpush1.msra.mxu0 0.0
  %2298 = vmatprep.subr.mxu0 0.0
  %2299 = vmatpush1.msra.mxu0 0.0
  %2300 = vmatprep.subr.mxu0 0.0
  %2301 = vmatpush1.msra.mxu0 0.0
  %2302 = vmatprep.subr.mxu0 0.0
  %2303 = vmatpush1.msra.mxu0 0.0
  %2304 = vmatprep.subr.mxu0 0.0
  %2305 = vmatpush1.msra.mxu0 0.0
  %2306 = vmatprep.subr.mxu0 0.0
  %2307 = vmatpush1.msra.mxu0 0.0
  %2308 = vmatprep.subr.mxu0 0.0
  %2309 = vmatpush1.msra.mxu0 0.0
  %2310 = vmatprep.subr.mxu0 0.0
  %2311 = vmatpush1.msra.mxu0 0.0
  %2312 = vmatprep.subr.mxu0 0.0
  %2313 = vmatpush1.msra.mxu0 0.0
  %2314 = vmatprep.subr.mxu0 0.0
  %2315 = vmatpush1.msra.mxu0 0.0
  %2316 = vmatprep.subr.mxu0 0.0
  %2317 = vmatpush1.msra.mxu0 0.0
  %2318 = vmatprep.subr.mxu0 0.0
  %2319 = vmatpush1.msra.mxu0 0.0
  %2320 = vmatprep.subr.mxu0 0.0
  %2321 = vmatpush1.msra.mxu0 0.0
  %2322 = vmatprep.subr.mxu0 0.0
  %2323 = vmatpush1.msra.mxu0 0.0
  %2324 = vmatprep.mubr.f32.mxu0 0.0
  %2325 = vmatmul.mubr.f32.gmra.mrb[0].mxu0 %v2258
  %v2326 = vpop.f32.mrb[0].mxu0
  %v2327 = vadd.f32 0.0, %v2326
  %v2328 = vpop.f32.mrb[0].mxu0
  %v2329 = vadd.f32 0.0, %v2328
  %2330 = vdwg.mxu0
  %v2333 = vrot.slane %v2327, 4
  %v2334 = vrot.slane %v2329, 4
  %v2337 = vadd.f32 %v732, %v2333
  %v2338 = vadd.f32 %v734, %v2334
  %v2339 = vxor.u32 %v2337, 2147483648
  %v2340 = vxor.u32 %v2338, 2147483648
  %v2341 = vmul.f32 %v2339, 1.442695
  %v2342 = vpow.pop %v2341
  %v2343 = vmul.f32 %v2340, 1.442695
  %v2344 = vpow.pop %v2343
  %v2345 = vadd.f32 %v2342, 1.0
  %v2346 = vadd.f32 %v2344, 1.0
  %v2347 = vrcp.pop %v2345
  %v2348 = vmul.f32 1.0, %v2347
  %v2349 = vrcp.pop %v2346
  %v2350 = vmul.f32 1.0, %v2349
  %v2351 = vtanh.pop %v2338
  %v2353 = vrot.slane %v2251, 6
  %v2355 = vmul.f32 %v2348, %v2353
  %v2356 = vmul.f32 %v2348, %v2351
  %2358 = vrot.lane.b32.xlu0 %v2356, 64
  %v2359 = vpop.permute.xlu0 %2358
  %v2361 = vadd.f32 %v2355, %v2359
  %v2362 = vtanh.pop %v2361
  %v2363 = vmul.f32 %v2350, %v2362
  %v2365 = vrot.slane %v2363, 4
  %2366 = vrot.lane.b32.xlu0 %v2365, 64
  %v2367 = vpop.permute.xlu0 %2366
  %v2368 = vsel %vm427, %v2367, 0
  %2370 = vmatprep.subr.mxu0 %v601
  %2371 = vmatpush1.msra.mxu0 %v600
  %2372 = vmatprep.subr.mxu0 %v603
  %2373 = vmatpush1.msra.mxu0 %v602
  %2374 = vmatprep.subr.mxu0 %v605
  %2375 = vmatpush1.msra.mxu0 %v604
  %2376 = vmatprep.subr.mxu0 %v607
  %2377 = vmatpush1.msra.mxu0 %v606
  %2378 = vmatprep.subr.mxu0 %v609
  %2379 = vmatpush1.msra.mxu0 %v608
  %2380 = vmatprep.subr.mxu0 %v611
  %2381 = vmatpush1.msra.mxu0 %v610
  %2382 = vmatprep.subr.mxu0 %v613
  %2383 = vmatpush1.msra.mxu0 %v612
  %2384 = vmatprep.subr.mxu0 %v615
  %2385 = vmatpush1.msra.mxu0 %v614
  %2386 = vmatprep.subr.mxu0 0.0
  %2387 = vmatpush1.msra.mxu0 0.0
  %2388 = vmatprep.subr.mxu0 0.0
  %2389 = vmatpush1.msra.mxu0 0.0
  %2390 = vmatprep.subr.mxu0 0.0
  %2391 = vmatpush1.msra.mxu0 0.0
  %2392 = vmatprep.subr.mxu0 0.0
  %2393 = vmatpush1.msra.mxu0 0.0
  %2394 = vmatprep.subr.mxu0 0.0
  %2395 = vmatpush1.msra.mxu0 0.0
  %2396 = vmatprep.subr.mxu0 0.0
  %2397 = vmatpush1.msra.mxu0 0.0
  %2398 = vmatprep.subr.mxu0 0.0
  %2399 = vmatpush1.msra.mxu0 0.0
  %2400 = vmatprep.subr.mxu0 0.0
  %2401 = vmatpush1.msra.mxu0 0.0
  %2402 = vmatprep.subr.mxu0 0.0
  %2403 = vmatpush1.msra.mxu0 0.0
  %2404 = vmatprep.subr.mxu0 0.0
  %2405 = vmatpush1.msra.mxu0 0.0
  %2406 = vmatprep.subr.mxu0 0.0
  %2407 = vmatpush1.msra.mxu0 0.0
  %2408 = vmatprep.subr.mxu0 0.0
  %2409 = vmatpush1.msra.mxu0 0.0
  %2410 = vmatprep.subr.mxu0 0.0
  %2411 = vmatpush1.msra.mxu0 0.0
  %2412 = vmatprep.subr.mxu0 0.0
  %2413 = vmatpush1.msra.mxu0 0.0
  %2414 = vmatprep.subr.mxu0 0.0
  %2415 = vmatpush1.msra.mxu0 0.0
  %2416 = vmatprep.subr.mxu0 0.0
  %2417 = vmatpush1.msra.mxu0 0.0
  %2418 = vmatprep.subr.mxu0 0.0
  %2419 = vmatpush1.msra.mxu0 0.0
  %2420 = vmatprep.subr.mxu0 0.0
  %2421 = vmatpush1.msra.mxu0 0.0
  %2422 = vmatprep.subr.mxu0 0.0
  %2423 = vmatpush1.msra.mxu0 0.0
  %2424 = vmatprep.subr.mxu0 0.0
  %2425 = vmatpush1.msra.mxu0 0.0
  %2426 = vmatprep.subr.mxu0 0.0
  %2427 = vmatpush1.msra.mxu0 0.0
  %2428 = vmatprep.subr.mxu0 0.0
  %2429 = vmatpush1.msra.mxu0 0.0
  %2430 = vmatprep.subr.mxu0 0.0
  %2431 = vmatpush1.msra.mxu0 0.0
  %2432 = vmatprep.subr.mxu0 0.0
  %2433 = vmatpush1.msra.mxu0 0.0
  %2434 = vmatprep.mubr.f32.mxu0 0.0
  %2435 = vmatmul.mubr.f32.gmra.mrb[0].mxu0 %v2368
  %v2436 = vpop.f32.mrb[0].mxu0
  %v2437 = vadd.f32 0.0, %v2436
  %v2438 = vpop.f32.mrb[0].mxu0
  %v2439 = vadd.f32 0.0, %v2438
  %2440 = vdwg.mxu0
  %v2443 = vrot.slane %v2437, 2
  %v2444 = vrot.slane %v2439, 2
  %v2447 = vadd.f32 %v732, %v2443
  %v2448 = vadd.f32 %v734, %v2444
  %v2449 = vxor.u32 %v2447, 2147483648
  %v2450 = vxor.u32 %v2448, 2147483648
  %v2451 = vmul.f32 %v2449, 1.442695
  %v2452 = vpow.pop %v2451
  %v2453 = vmul.f32 %v2450, 1.442695
  %v2454 = vpow.pop %v2453
  %v2455 = vadd.f32 %v2452, 1.0
  %v2456 = vadd.f32 %v2454, 1.0
  %v2457 = vrcp.pop %v2455
  %v2458 = vmul.f32 1.0, %v2457
  %v2459 = vrcp.pop %v2456
  %v2460 = vmul.f32 1.0, %v2459
  %v2461 = vtanh.pop %v2448
  %v2463 = vrot.slane %v2361, 6
  %v2465 = vmul.f32 %v2458, %v2463
  %v2466 = vmul.f32 %v2458, %v2461
  %2468 = vrot.lane.b32.xlu0 %v2466, 64
  %v2469 = vpop.permute.xlu0 %2468
  %v2471 = vadd.f32 %v2465, %v2469
  %v2472 = vtanh.pop %v2471
  %v2473 = vmul.f32 %v2460, %v2472
  %v2475 = vrot.slane %v2473, 6
  %2476 = vrot.lane.b32.xlu0 %v2475, 64
  %v2477 = vpop.permute.xlu0 %2476
  %v2478 = vsel %vm427, %v2477, 0
  %2480 = vmatprep.subr.mxu0 %v601
  %2481 = vmatpush1.msra.mxu0 %v600
  %2482 = vmatprep.subr.mxu0 %v603
  %2483 = vmatpush1.msra.mxu0 %v602
  %2484 = vmatprep.subr.mxu0 %v605
  %2485 = vmatpush1.msra.mxu0 %v604
  %2486 = vmatprep.subr.mxu0 %v607
  %2487 = vmatpush1.msra.mxu0 %v606
  %2488 = vmatprep.subr.mxu0 %v609
  %2489 = vmatpush1.msra.mxu0 %v608
  %2490 = vmatprep.subr.mxu0 %v611
  %2491 = vmatpush1.msra.mxu0 %v610
  %2492 = vmatprep.subr.mxu0 %v613
  %2493 = vmatpush1.msra.mxu0 %v612
  %2494 = vmatprep.subr.mxu0 %v615
  %2495 = vmatpush1.msra.mxu0 %v614
  %2496 = vmatprep.subr.mxu0 0.0
  %2497 = vmatpush1.msra.mxu0 0.0
  %2498 = vmatprep.subr.mxu0 0.0
  %2499 = vmatpush1.msra.mxu0 0.0
  %2500 = vmatprep.subr.mxu0 0.0
  %2501 = vmatpush1.msra.mxu0 0.0
  %2502 = vmatprep.subr.mxu0 0.0
  %2503 = vmatpush1.msra.mxu0 0.0
  %2504 = vmatprep.subr.mxu0 0.0
  %2505 = vmatpush1.msra.mxu0 0.0
  %2506 = vmatprep.subr.mxu0 0.0
  %2507 = vmatpush1.msra.mxu0 0.0
  %2508 = vmatprep.subr.mxu0 0.0
  %2509 = vmatpush1.msra.mxu0 0.0
  %2510 = vmatprep.subr.mxu0 0.0
  %2511 = vmatpush1.msra.mxu0 0.0
  %2512 = vmatprep.subr.mxu0 0.0
  %2513 = vmatpush1.msra.mxu0 0.0
  %2514 = vmatprep.subr.mxu0 0.0
  %2515 = vmatpush1.msra.mxu0 0.0
  %2516 = vmatprep.subr.mxu0 0.0
  %2517 = vmatpush1.msra.mxu0 0.0
  %2518 = vmatprep.subr.mxu0 0.0
  %2519 = vmatpush1.msra.mxu0 0.0
  %2520 = vmatprep.subr.mxu0 0.0
  %2521 = vmatpush1.msra.mxu0 0.0
  %2522 = vmatprep.subr.mxu0 0.0
  %2523 = vmatpush1.msra.mxu0 0.0
  %2524 = vmatprep.subr.mxu0 0.0
  %2525 = vmatpush1.msra.mxu0 0.0
  %2526 = vmatprep.subr.mxu0 0.0
  %2527 = vmatpush1.msra.mxu0 0.0
  %2528 = vmatprep.subr.mxu0 0.0
  %2529 = vmatpush1.msra.mxu0 0.0
  %2530 = vmatprep.subr.mxu0 0.0
  %2531 = vmatpush1.msra.mxu0 0.0
  %2532 = vmatprep.subr.mxu0 0.0
  %2533 = vmatpush1.msra.mxu0 0.0
  %2534 = vmatprep.subr.mxu0 0.0
  %2535 = vmatpush1.msra.mxu0 0.0
  %2536 = vmatprep.subr.mxu0 0.0
  %2537 = vmatpush1.msra.mxu0 0.0
  %2538 = vmatprep.subr.mxu0 0.0
  %2539 = vmatpush1.msra.mxu0 0.0
  %2540 = vmatprep.subr.mxu0 0.0
  %2541 = vmatpush1.msra.mxu0 0.0
  %2542 = vmatprep.subr.mxu0 0.0
  %2543 = vmatpush1.msra.mxu0 0.0
  %2544 = vmatprep.mubr.f32.mxu0 0.0
  %2545 = vmatmul.mubr.f32.gmra.mrb[0].mxu0 %v2478
  %v2546 = vpop.f32.mrb[0].mxu0
  %v2547 = vadd.f32 0.0, %v2546
  %v2548 = vpop.f32.mrb[0].mxu0
  %v2549 = vadd.f32 0.0, %v2548
  %2550 = vdwg.mxu0
  %v2551 = vadd.f32 %v738, %v2547
  %v2552 = vadd.f32 %v740, %v2549
  %v2553 = vxor.u32 %v2551, 2147483648
  %v2554 = vxor.u32 %v2552, 2147483648
  %v2555 = vmul.f32 %v2553, 1.442695
  %v2556 = vpow.pop %v2555
  %v2557 = vmul.f32 %v2554, 1.442695
  %v2558 = vpow.pop %v2557
  %v2559 = vadd.f32 %v2556, 1.0
  %v2560 = vadd.f32 %v2558, 1.0
  %v2561 = vrcp.pop %v2559
  %v2562 = vmul.f32 1.0, %v2561
  %v2563 = vrcp.pop %v2560
  %v2564 = vmul.f32 1.0, %v2563
  %v2565 = vtanh.pop %v2552
  %v2567 = vrot.slane %v2471, 6
  %v2569 = vmul.f32 %v2562, %v2567
  %v2570 = vmul.f32 %v2562, %v2565
  %2572 = vrot.lane.b32.xlu0 %v2570, 64
  %v2573 = vpop.permute.xlu0 %2572
  %v2575 = vadd.f32 %v2569, %v2573
  %v2576 = vtanh.pop %v2575
  %v2577 = vmul.f32 %v2564, %v2576
  %2579 = vrot.lane.b32.xlu0 %v2577, 64
  %v2580 = vpop.permute.xlu0 %2579
  %v2581 = vsel %vm427, %v2580, 0
  %2583 = vmatprep.subr.mxu0 %v601
  %2584 = vmatpush1.msra.mxu0 %v600
  %2585 = vmatprep.subr.mxu0 %v603
  %2586 = vmatpush1.msra.mxu0 %v602
  %2587 = vmatprep.subr.mxu0 %v605
  %2588 = vmatpush1.msra.mxu0 %v604
  %2589 = vmatprep.subr.mxu0 %v607
  %2590 = vmatpush1.msra.mxu0 %v606
  %2591 = vmatprep.subr.mxu0 %v609
  %2592 = vmatpush1.msra.mxu0 %v608
  %2593 = vmatprep.subr.mxu0 %v611
  %2594 = vmatpush1.msra.mxu0 %v610
  %2595 = vmatprep.subr.mxu0 %v613
  %2596 = vmatpush1.msra.mxu0 %v612
  %2597 = vmatprep.subr.mxu0 %v615
  %2598 = vmatpush1.msra.mxu0 %v614
  %2599 = vmatprep.subr.mxu0 0.0
  %2600 = vmatpush1.msra.mxu0 0.0
  %2601 = vmatprep.subr.mxu0 0.0
  %2602 = vmatpush1.msra.mxu0 0.0
  %2603 = vmatprep.subr.mxu0 0.0
  %2604 = vmatpush1.msra.mxu0 0.0
  %2605 = vmatprep.subr.mxu0 0.0
  %2606 = vmatpush1.msra.mxu0 0.0
  %2607 = vmatprep.subr.mxu0 0.0
  %2608 = vmatpush1.msra.mxu0 0.0
  %2609 = vmatprep.subr.mxu0 0.0
  %2610 = vmatpush1.msra.mxu0 0.0
  %2611 = vmatprep.subr.mxu0 0.0
  %2612 = vmatpush1.msra.mxu0 0.0
  %2613 = vmatprep.subr.mxu0 0.0
  %2614 = vmatpush1.msra.mxu0 0.0
  %2615 = vmatprep.subr.mxu0 0.0
  %2616 = vmatpush1.msra.mxu0 0.0
  %2617 = vmatprep.subr.mxu0 0.0
  %2618 = vmatpush1.msra.mxu0 0.0
  %2619 = vmatprep.subr.mxu0 0.0
  %2620 = vmatpush1.msra.mxu0 0.0
  %2621 = vmatprep.subr.mxu0 0.0
  %2622 = vmatpush1.msra.mxu0 0.0
  %2623 = vmatprep.subr.mxu0 0.0
  %2624 = vmatpush1.msra.mxu0 0.0
  %2625 = vmatprep.subr.mxu0 0.0
  %2626 = vmatpush1.msra.mxu0 0.0
  %2627 = vmatprep.subr.mxu0 0.0
  %2628 = vmatpush1.msra.mxu0 0.0
  %2629 = vmatprep.subr.mxu0 0.0
  %2630 = vmatpush1.msra.mxu0 0.0
  %2631 = vmatprep.subr.mxu0 0.0
  %2632 = vmatpush1.msra.mxu0 0.0
  %2633 = vmatprep.subr.mxu0 0.0
  %2634 = vmatpush1.msra.mxu0 0.0
  %2635 = vmatprep.subr.mxu0 0.0
  %2636 = vmatpush1.msra.mxu0 0.0
  %2637 = vmatprep.subr.mxu0 0.0
  %2638 = vmatpush1.msra.mxu0 0.0
  %2639 = vmatprep.subr.mxu0 0.0
  %2640 = vmatpush1.msra.mxu0 0.0
  %2641 = vmatprep.subr.mxu0 0.0
  %2642 = vmatpush1.msra.mxu0 0.0
  %2643 = vmatprep.subr.mxu0 0.0
  %2644 = vmatpush1.msra.mxu0 0.0
  %2645 = vmatprep.subr.mxu0 0.0
  %2646 = vmatpush1.msra.mxu0 0.0
  %2647 = vmatprep.mubr.f32.mxu0 0.0
  %2648 = vmatmul.mubr.f32.gmra.mrb[0].mxu0 %v2581
  %v2649 = vpop.f32.mrb[0].mxu0
  %v2650 = vadd.f32 0.0, %v2649
  %v2651 = vpop.f32.mrb[0].mxu0
  %v2652 = vadd.f32 0.0, %v2651
  %2653 = vdwg.mxu0
  %v2656 = vrot.slane %v2650, 6
  %v2657 = vrot.slane %v2652, 6
  %v2660 = vadd.f32 %v738, %v2656
  %v2661 = vadd.f32 %v740, %v2657
  %v2662 = vxor.u32 %v2660, 2147483648
  %v2663 = vxor.u32 %v2661, 2147483648
  %v2664 = vmul.f32 %v2662, 1.442695
  %v2665 = vpow.pop %v2664
  %v2666 = vmul.f32 %v2663, 1.442695
  %v2667 = vpow.pop %v2666
  %v2668 = vadd.f32 %v2665, 1.0
  %v2669 = vadd.f32 %v2667, 1.0
  %v2670 = vrcp.pop %v2668
  %v2671 = vmul.f32 1.0, %v2670
  %v2672 = vrcp.pop %v2669
  %v2673 = vmul.f32 1.0, %v2672
  %v2674 = vtanh.pop %v2661
  %v2676 = vrot.slane %v2575, 6
  %v2678 = vmul.f32 %v2671, %v2676
  %v2679 = vmul.f32 %v2671, %v2674
  %2681 = vrot.lane.b32.xlu0 %v2679, 64
  %v2682 = vpop.permute.xlu0 %2681
  %v2684 = vadd.f32 %v2678, %v2682
  %v2685 = vtanh.pop %v2684
  %v2686 = vmul.f32 %v2673, %v2685
  %v2688 = vrot.slane %v2686, 2
  %2689 = vrot.lane.b32.xlu0 %v2688, 64
  %v2690 = vpop.permute.xlu0 %2689
  %v2691 = vsel %vm427, %v2690, 0
  %2693 = vmatprep.subr.mxu0 %v601
  %2694 = vmatpush1.msra.mxu0 %v600
  %2695 = vmatprep.subr.mxu0 %v603
  %2696 = vmatpush1.msra.mxu0 %v602
  %2697 = vmatprep.subr.mxu0 %v605
  %2698 = vmatpush1.msra.mxu0 %v604
  %2699 = vmatprep.subr.mxu0 %v607
  %2700 = vmatpush1.msra.mxu0 %v606
  %2701 = vmatprep.subr.mxu0 %v609
  %2702 = vmatpush1.msra.mxu0 %v608
  %2703 = vmatprep.subr.mxu0 %v611
  %2704 = vmatpush1.msra.mxu0 %v610
  %2705 = vmatprep.subr.mxu0 %v613
  %2706 = vmatpush1.msra.mxu0 %v612
  %2707 = vmatprep.subr.mxu0 %v615
  %2708 = vmatpush1.msra.mxu0 %v614
  %2709 = vmatprep.subr.mxu0 0.0
  %2710 = vmatpush1.msra.mxu0 0.0
  %2711 = vmatprep.subr.mxu0 0.0
  %2712 = vmatpush1.msra.mxu0 0.0
  %2713 = vmatprep.subr.mxu0 0.0
  %2714 = vmatpush1.msra.mxu0 0.0
  %2715 = vmatprep.subr.mxu0 0.0
  %2716 = vmatpush1.msra.mxu0 0.0
  %2717 = vmatprep.subr.mxu0 0.0
  %2718 = vmatpush1.msra.mxu0 0.0
  %2719 = vmatprep.subr.mxu0 0.0
  %2720 = vmatpush1.msra.mxu0 0.0
  %2721 = vmatprep.subr.mxu0 0.0
  %2722 = vmatpush1.msra.mxu0 0.0
  %2723 = vmatprep.subr.mxu0 0.0
  %2724 = vmatpush1.msra.mxu0 0.0
  %2725 = vmatprep.subr.mxu0 0.0
  %2726 = vmatpush1.msra.mxu0 0.0
  %2727 = vmatprep.subr.mxu0 0.0
  %2728 = vmatpush1.msra.mxu0 0.0
  %2729 = vmatprep.subr.mxu0 0.0
  %2730 = vmatpush1.msra.mxu0 0.0
  %2731 = vmatprep.subr.mxu0 0.0
  %2732 = vmatpush1.msra.mxu0 0.0
  %2733 = vmatprep.subr.mxu0 0.0
  %2734 = vmatpush1.msra.mxu0 0.0
  %2735 = vmatprep.subr.mxu0 0.0
  %2736 = vmatpush1.msra.mxu0 0.0
  %2737 = vmatprep.subr.mxu0 0.0
  %2738 = vmatpush1.msra.mxu0 0.0
  %2739 = vmatprep.subr.mxu0 0.0
  %2740 = vmatpush1.msra.mxu0 0.0
  %2741 = vmatprep.subr.mxu0 0.0
  %2742 = vmatpush1.msra.mxu0 0.0
  %2743 = vmatprep.subr.mxu0 0.0
  %2744 = vmatpush1.msra.mxu0 0.0
  %2745 = vmatprep.subr.mxu0 0.0
  %2746 = vmatpush1.msra.mxu0 0.0
  %2747 = vmatprep.subr.mxu0 0.0
  %2748 = vmatpush1.msra.mxu0 0.0
  %2749 = vmatprep.subr.mxu0 0.0
  %2750 = vmatpush1.msra.mxu0 0.0
  %2751 = vmatprep.subr.mxu0 0.0
  %2752 = vmatpush1.msra.mxu0 0.0
  %2753 = vmatprep.subr.mxu0 0.0
  %2754 = vmatpush1.msra.mxu0 0.0
  %2755 = vmatprep.subr.mxu0 0.0
  %2756 = vmatpush1.msra.mxu0 0.0
  %2757 = vmatprep.mubr.f32.mxu0 0.0
  %2758 = vmatmul.mubr.f32.gmra.mrb[0].mxu0 %v2691
  %v2759 = vpop.f32.mrb[0].mxu0
  %v2760 = vadd.f32 0.0, %v2759
  %v2761 = vpop.f32.mrb[0].mxu0
  %v2762 = vadd.f32 0.0, %v2761
  %2763 = vdwg.mxu0
  %v2766 = vrot.slane %v2760, 4
  %v2767 = vrot.slane %v2762, 4
  %v2770 = vadd.f32 %v738, %v2766
  %v2771 = vadd.f32 %v740, %v2767
  %v2772 = vxor.u32 %v2770, 2147483648
  %v2773 = vxor.u32 %v2771, 2147483648
  %v2774 = vmul.f32 %v2772, 1.442695
  %v2775 = vpow.pop %v2774
  %v2776 = vmul.f32 %v2773, 1.442695
  %v2777 = vpow.pop %v2776
  %v2778 = vadd.f32 %v2775, 1.0
  %v2779 = vadd.f32 %v2777, 1.0
  %v2780 = vrcp.pop %v2778
  %v2781 = vmul.f32 1.0, %v2780
  %v2782 = vrcp.pop %v2779
  %v2783 = vmul.f32 1.0, %v2782
  %v2784 = vtanh.pop %v2771
  %v2786 = vrot.slane %v2684, 6
  %v2788 = vmul.f32 %v2781, %v2786
  %v2789 = vmul.f32 %v2781, %v2784
  %2791 = vrot.lane.b32.xlu0 %v2789, 64
  %v2792 = vpop.permute.xlu0 %2791
  %v2794 = vadd.f32 %v2788, %v2792
  %v2795 = vtanh.pop %v2794
  %v2796 = vmul.f32 %v2783, %v2795
  %v2798 = vrot.slane %v2796, 4
  %2799 = vrot.lane.b32.xlu0 %v2798, 64
  %v2800 = vpop.permute.xlu0 %2799
  %v2801 = vsel %vm427, %v2800, 0
  %2803 = vmatprep.subr.mxu0 %v601
  %2804 = vmatpush1.msra.mxu0 %v600
  %2805 = vmatprep.subr.mxu0 %v603
  %2806 = vmatpush1.msra.mxu0 %v602
  %2807 = vmatprep.subr.mxu0 %v605
  %2808 = vmatpush1.msra.mxu0 %v604
  %2809 = vmatprep.subr.mxu0 %v607
  %2810 = vmatpush1.msra.mxu0 %v606
  %2811 = vmatprep.subr.mxu0 %v609
  %2812 = vmatpush1.msra.mxu0 %v608
  %2813 = vmatprep.subr.mxu0 %v611
  %2814 = vmatpush1.msra.mxu0 %v610
  %2815 = vmatprep.subr.mxu0 %v613
  %2816 = vmatpush1.msra.mxu0 %v612
  %2817 = vmatprep.subr.mxu0 %v615
  %2818 = vmatpush1.msra.mxu0 %v614
  %2819 = vmatprep.subr.mxu0 0.0
  %2820 = vmatpush1.msra.mxu0 0.0
  %2821 = vmatprep.subr.mxu0 0.0
  %2822 = vmatpush1.msra.mxu0 0.0
  %2823 = vmatprep.subr.mxu0 0.0
  %2824 = vmatpush1.msra.mxu0 0.0
  %2825 = vmatprep.subr.mxu0 0.0
  %2826 = vmatpush1.msra.mxu0 0.0
  %2827 = vmatprep.subr.mxu0 0.0
  %2828 = vmatpush1.msra.mxu0 0.0
  %2829 = vmatprep.subr.mxu0 0.0
  %2830 = vmatpush1.msra.mxu0 0.0
  %2831 = vmatprep.subr.mxu0 0.0
  %2832 = vmatpush1.msra.mxu0 0.0
  %2833 = vmatprep.subr.mxu0 0.0
  %2834 = vmatpush1.msra.mxu0 0.0
  %2835 = vmatprep.subr.mxu0 0.0
  %2836 = vmatpush1.msra.mxu0 0.0
  %2837 = vmatprep.subr.mxu0 0.0
  %2838 = vmatpush1.msra.mxu0 0.0
  %2839 = vmatprep.subr.mxu0 0.0
  %2840 = vmatpush1.msra.mxu0 0.0
  %2841 = vmatprep.subr.mxu0 0.0
  %2842 = vmatpush1.msra.mxu0 0.0
  %2843 = vmatprep.subr.mxu0 0.0
  %2844 = vmatpush1.msra.mxu0 0.0
  %2845 = vmatprep.subr.mxu0 0.0
  %2846 = vmatpush1.msra.mxu0 0.0
  %2847 = vmatprep.subr.mxu0 0.0
  %2848 = vmatpush1.msra.mxu0 0.0
  %2849 = vmatprep.subr.mxu0 0.0
  %2850 = vmatpush1.msra.mxu0 0.0
  %2851 = vmatprep.subr.mxu0 0.0
  %2852 = vmatpush1.msra.mxu0 0.0
  %2853 = vmatprep.subr.mxu0 0.0
  %2854 = vmatpush1.msra.mxu0 0.0
  %2855 = vmatprep.subr.mxu0 0.0
  %2856 = vmatpush1.msra.mxu0 0.0
  %2857 = vmatprep.subr.mxu0 0.0
  %2858 = vmatpush1.msra.mxu0 0.0
  %2859 = vmatprep.subr.mxu0 0.0
  %2860 = vmatpush1.msra.mxu0 0.0
  %2861 = vmatprep.subr.mxu0 0.0
  %2862 = vmatpush1.msra.mxu0 0.0
  %2863 = vmatprep.subr.mxu0 0.0
  %2864 = vmatpush1.msra.mxu0 0.0
  %2865 = vmatprep.subr.mxu0 0.0
  %2866 = vmatpush1.msra.mxu0 0.0
  %2867 = vmatprep.mubr.f32.mxu0 0.0
  %2868 = vmatmul.mubr.f32.gmra.mrb[0].mxu0 %v2801
  %v2869 = vpop.f32.mrb[0].mxu0
  %v2870 = vadd.f32 0.0, %v2869
  %v2871 = vpop.f32.mrb[0].mxu0
  %v2872 = vadd.f32 0.0, %v2871
  %2873 = vdwg.mxu0
  %v2876 = vrot.slane %v2870, 2
  %v2877 = vrot.slane %v2872, 2
  %v2880 = vadd.f32 %v738, %v2876
  %v2881 = vadd.f32 %v740, %v2877
  %v2882 = vxor.u32 %v2880, 2147483648
  %v2883 = vxor.u32 %v2881, 2147483648
  %v2884 = vmul.f32 %v2882, 1.442695
  %v2885 = vpow.pop %v2884
  %v2886 = vmul.f32 %v2883, 1.442695
  %v2887 = vpow.pop %v2886
  %v2888 = vadd.f32 %v2885, 1.0
  %v2889 = vadd.f32 %v2887, 1.0
  %v2890 = vrcp.pop %v2888
  %v2891 = vmul.f32 1.0, %v2890
  %v2892 = vrcp.pop %v2889
  %v2893 = vmul.f32 1.0, %v2892
  %v2894 = vtanh.pop %v2881
  %v2896 = vrot.slane %v2794, 6
  %v2898 = vmul.f32 %v2891, %v2896
  %v2899 = vmul.f32 %v2891, %v2894
  %2901 = vrot.lane.b32.xlu0 %v2899, 64
  %v2902 = vpop.permute.xlu0 %2901
  %v2904 = vadd.f32 %v2898, %v2902
  %v2905 = vtanh.pop %v2904
  %v2906 = vmul.f32 %v2893, %v2905
  %v2908 = vrot.slane %v2906, 6
  %2909 = vrot.lane.b32.xlu0 %v2908, 64
  %v2910 = vpop.permute.xlu0 %2909
  %v2911 = vsel %vm427, %v2910, 0
  %2913 = vmatprep.subr.mxu0 %v601
  %2914 = vmatpush1.msra.mxu0 %v600
  %2915 = vmatprep.subr.mxu0 %v603
  %2916 = vmatpush1.msra.mxu0 %v602
  %2917 = vmatprep.subr.mxu0 %v605
  %2918 = vmatpush1.msra.mxu0 %v604
  %2919 = vmatprep.subr.mxu0 %v607
  %2920 = vmatpush1.msra.mxu0 %v606
  %2921 = vmatprep.subr.mxu0 %v609
  %2922 = vmatpush1.msra.mxu0 %v608
  %2923 = vmatprep.subr.mxu0 %v611
  %2924 = vmatpush1.msra.mxu0 %v610
  %2925 = vmatprep.subr.mxu0 %v613
  %2926 = vmatpush1.msra.mxu0 %v612
  %2927 = vmatprep.subr.mxu0 %v615
  %2928 = vmatpush1.msra.mxu0 %v614
  %2929 = vmatprep.subr.mxu0 0.0
  %2930 = vmatpush1.msra.mxu0 0.0
  %2931 = vmatprep.subr.mxu0 0.0
  %2932 = vmatpush1.msra.mxu0 0.0
  %2933 = vmatprep.subr.mxu0 0.0
  %2934 = vmatpush1.msra.mxu0 0.0
  %2935 = vmatprep.subr.mxu0 0.0
  %2936 = vmatpush1.msra.mxu0 0.0
  %2937 = vmatprep.subr.mxu0 0.0
  %2938 = vmatpush1.msra.mxu0 0.0
  %2939 = vmatprep.subr.mxu0 0.0
  %2940 = vmatpush1.msra.mxu0 0.0
  %2941 = vmatprep.subr.mxu0 0.0
  %2942 = vmatpush1.msra.mxu0 0.0
  %2943 = vmatprep.subr.mxu0 0.0
  %2944 = vmatpush1.msra.mxu0 0.0
  %2945 = vmatprep.subr.mxu0 0.0
  %2946 = vmatpush1.msra.mxu0 0.0
  %2947 = vmatprep.subr.mxu0 0.0
  %2948 = vmatpush1.msra.mxu0 0.0
  %2949 = vmatprep.subr.mxu0 0.0
  %2950 = vmatpush1.msra.mxu0 0.0
  %2951 = vmatprep.subr.mxu0 0.0
  %2952 = vmatpush1.msra.mxu0 0.0
  %2953 = vmatprep.subr.mxu0 0.0
  %2954 = vmatpush1.msra.mxu0 0.0
  %2955 = vmatprep.subr.mxu0 0.0
  %2956 = vmatpush1.msra.mxu0 0.0
  %2957 = vmatprep.subr.mxu0 0.0
  %2958 = vmatpush1.msra.mxu0 0.0
  %2959 = vmatprep.subr.mxu0 0.0
  %2960 = vmatpush1.msra.mxu0 0.0
  %2961 = vmatprep.subr.mxu0 0.0
  %2962 = vmatpush1.msra.mxu0 0.0
  %2963 = vmatprep.subr.mxu0 0.0
  %2964 = vmatpush1.msra.mxu0 0.0
  %2965 = vmatprep.subr.mxu0 0.0
  %2966 = vmatpush1.msra.mxu0 0.0
  %2967 = vmatprep.subr.mxu0 0.0
  %2968 = vmatpush1.msra.mxu0 0.0
  %2969 = vmatprep.subr.mxu0 0.0
  %2970 = vmatpush1.msra.mxu0 0.0
  %2971 = vmatprep.subr.mxu0 0.0
  %2972 = vmatpush1.msra.mxu0 0.0
  %2973 = vmatprep.subr.mxu0 0.0
  %2974 = vmatpush1.msra.mxu0 0.0
  %2975 = vmatprep.subr.mxu0 0.0
  %2976 = vmatpush1.msra.mxu0 0.0
  %2977 = vmatprep.mubr.f32.mxu0 0.0
  %2978 = vmatmul.mubr.f32.gmra.mrb[0].mxu0 %v2911
  %v2979 = vpop.f32.mrb[0].mxu0
  %v2980 = vadd.f32 0.0, %v2979
  %v2981 = vpop.f32.mrb[0].mxu0
  %v2982 = vadd.f32 0.0, %v2981
  %2983 = vdwg.mxu0
  %v2984 = vadd.f32 %v744, %v2980
  %v2985 = vadd.f32 %v746, %v2982
  %v2986 = vxor.u32 %v2984, 2147483648
  %v2987 = vxor.u32 %v2985, 2147483648
  %v2988 = vmul.f32 %v2986, 1.442695
  %v2989 = vpow.pop %v2988
  %v2990 = vmul.f32 %v2987, 1.442695
  %v2991 = vpow.pop %v2990
  %v2992 = vadd.f32 %v2989, 1.0
  %v2993 = vadd.f32 %v2991, 1.0
  %v2994 = vrcp.pop %v2992
  %v2995 = vmul.f32 1.0, %v2994
  %v2996 = vrcp.pop %v2993
  %v2997 = vmul.f32 1.0, %v2996
  %v2998 = vtanh.pop %v2985
  %v3000 = vrot.slane %v2904, 6
  %v3002 = vmul.f32 %v2995, %v3000
  %v3003 = vmul.f32 %v2995, %v2998
  %3005 = vrot.lane.b32.xlu0 %v3003, 64
  %v3006 = vpop.permute.xlu0 %3005
  %v3008 = vadd.f32 %v3002, %v3006
  %v3009 = vtanh.pop %v3008
  %v3010 = vmul.f32 %v2997, %v3009
  %3012 = vrot.lane.b32.xlu0 %v3010, 64
  %v3013 = vpop.permute.xlu0 %3012
  %v3014 = vsel %vm427, %v3013, 0
  %3016 = vmatprep.subr.mxu0 %v601
  %3017 = vmatpush1.msra.mxu0 %v600
  %3018 = vmatprep.subr.mxu0 %v603
  %3019 = vmatpush1.msra.mxu0 %v602
  %3020 = vmatprep.subr.mxu0 %v605
  %3021 = vmatpush1.msra.mxu0 %v604
  %3022 = vmatprep.subr.mxu0 %v607
  %3023 = vmatpush1.msra.mxu0 %v606
  %3024 = vmatprep.subr.mxu0 %v609
  %3025 = vmatpush1.msra.mxu0 %v608
  %3026 = vmatprep.subr.mxu0 %v611
  %3027 = vmatpush1.msra.mxu0 %v610
  %3028 = vmatprep.subr.mxu0 %v613
  %3029 = vmatpush1.msra.mxu0 %v612
  %3030 = vmatprep.subr.mxu0 %v615
  %3031 = vmatpush1.msra.mxu0 %v614
  %3032 = vmatprep.subr.mxu0 0.0
  %3033 = vmatpush1.msra.mxu0 0.0
  %3034 = vmatprep.subr.mxu0 0.0
  %3035 = vmatpush1.msra.mxu0 0.0
  %3036 = vmatprep.subr.mxu0 0.0
  %3037 = vmatpush1.msra.mxu0 0.0
  %3038 = vmatprep.subr.mxu0 0.0
  %3039 = vmatpush1.msra.mxu0 0.0
  %3040 = vmatprep.subr.mxu0 0.0
  %3041 = vmatpush1.msra.mxu0 0.0
  %3042 = vmatprep.subr.mxu0 0.0
  %3043 = vmatpush1.msra.mxu0 0.0
  %3044 = vmatprep.subr.mxu0 0.0
  %3045 = vmatpush1.msra.mxu0 0.0
  %3046 = vmatprep.subr.mxu0 0.0
  %3047 = vmatpush1.msra.mxu0 0.0
  %3048 = vmatprep.subr.mxu0 0.0
  %3049 = vmatpush1.msra.mxu0 0.0
  %3050 = vmatprep.subr.mxu0 0.0
  %3051 = vmatpush1.msra.mxu0 0.0
  %3052 = vmatprep.subr.mxu0 0.0
  %3053 = vmatpush1.msra.mxu0 0.0
  %3054 = vmatprep.subr.mxu0 0.0
  %3055 = vmatpush1.msra.mxu0 0.0
  %3056 = vmatprep.subr.mxu0 0.0
  %3057 = vmatpush1.msra.mxu0 0.0
  %3058 = vmatprep.subr.mxu0 0.0
  %3059 = vmatpush1.msra.mxu0 0.0
  %3060 = vmatprep.subr.mxu0 0.0
  %3061 = vmatpush1.msra.mxu0 0.0
  %3062 = vmatprep.subr.mxu0 0.0
  %3063 = vmatpush1.msra.mxu0 0.0
  %3064 = vmatprep.subr.mxu0 0.0
  %3065 = vmatpush1.msra.mxu0 0.0
  %3066 = vmatprep.subr.mxu0 0.0
  %3067 = vmatpush1.msra.mxu0 0.0
  %3068 = vmatprep.subr.mxu0 0.0
  %3069 = vmatpush1.msra.mxu0 0.0
  %3070 = vmatprep.subr.mxu0 0.0
  %3071 = vmatpush1.msra.mxu0 0.0
  %3072 = vmatprep.subr.mxu0 0.0
  %3073 = vmatpush1.msra.mxu0 0.0
  %3074 = vmatprep.subr.mxu0 0.0
  %3075 = vmatpush1.msra.mxu0 0.0
  %3076 = vmatprep.subr.mxu0 0.0
  %3077 = vmatpush1.msra.mxu0 0.0
  %3078 = vmatprep.subr.mxu0 0.0
  %3079 = vmatpush1.msra.mxu0 0.0
  %3080 = vmatprep.mubr.f32.mxu0 0.0
  %3081 = vmatmul.mubr.f32.gmra.mrb[0].mxu0 %v3014
  %v3082 = vpop.f32.mrb[0].mxu0
  %v3083 = vadd.f32 0.0, %v3082
  %v3084 = vpop.f32.mrb[0].mxu0
  %v3085 = vadd.f32 0.0, %v3084
  %3086 = vdwg.mxu0
  %v3089 = vrot.slane %v3083, 6
  %v3090 = vrot.slane %v3085, 6
  %v3093 = vadd.f32 %v744, %v3089
  %v3094 = vadd.f32 %v746, %v3090
  %v3095 = vxor.u32 %v3093, 2147483648
  %v3096 = vxor.u32 %v3094, 2147483648
  %v3097 = vmul.f32 %v3095, 1.442695
  %v3098 = vpow.pop %v3097
  %v3099 = vmul.f32 %v3096, 1.442695
  %v3100 = vpow.pop %v3099
  %v3101 = vadd.f32 %v3098, 1.0
  %v3102 = vadd.f32 %v3100, 1.0
  %v3103 = vrcp.pop %v3101
  %v3104 = vmul.f32 1.0, %v3103
  %v3105 = vrcp.pop %v3102
  %v3106 = vmul.f32 1.0, %v3105
  %v3107 = vtanh.pop %v3094
  %v3109 = vrot.slane %v3008, 6
  %v3111 = vmul.f32 %v3104, %v3109
  %v3112 = vmul.f32 %v3104, %v3107
  %3114 = vrot.lane.b32.xlu0 %v3112, 64
  %v3115 = vpop.permute.xlu0 %3114
  %v3117 = vadd.f32 %v3111, %v3115
  %v3118 = vtanh.pop %v3117
  %v3119 = vmul.f32 %v3106, %v3118
  %v3121 = vrot.slane %v3119, 2
  %3122 = vrot.lane.b32.xlu0 %v3121, 64
  %v3123 = vpop.permute.xlu0 %3122
  %v3124 = vsel %vm427, %v3123, 0
  %3126 = vmatprep.subr.mxu0 %v601
  %3127 = vmatpush1.msra.mxu0 %v600
  %3128 = vmatprep.subr.mxu0 %v603
  %3129 = vmatpush1.msra.mxu0 %v602
  %3130 = vmatprep.subr.mxu0 %v605
  %3131 = vmatpush1.msra.mxu0 %v604
  %3132 = vmatprep.subr.mxu0 %v607
  %3133 = vmatpush1.msra.mxu0 %v606
  %3134 = vmatprep.subr.mxu0 %v609
  %3135 = vmatpush1.msra.mxu0 %v608
  %3136 = vmatprep.subr.mxu0 %v611
  %3137 = vmatpush1.msra.mxu0 %v610
  %3138 = vmatprep.subr.mxu0 %v613
  %3139 = vmatpush1.msra.mxu0 %v612
  %3140 = vmatprep.subr.mxu0 %v615
  %3141 = vmatpush1.msra.mxu0 %v614
  %3142 = vmatprep.subr.mxu0 0.0
  %3143 = vmatpush1.msra.mxu0 0.0
  %3144 = vmatprep.subr.mxu0 0.0
  %3145 = vmatpush1.msra.mxu0 0.0
  %3146 = vmatprep.subr.mxu0 0.0
  %3147 = vmatpush1.msra.mxu0 0.0
  %3148 = vmatprep.subr.mxu0 0.0
  %3149 = vmatpush1.msra.mxu0 0.0
  %3150 = vmatprep.subr.mxu0 0.0
  %3151 = vmatpush1.msra.mxu0 0.0
  %3152 = vmatprep.subr.mxu0 0.0
  %3153 = vmatpush1.msra.mxu0 0.0
  %3154 = vmatprep.subr.mxu0 0.0
  %3155 = vmatpush1.msra.mxu0 0.0
  %3156 = vmatprep.subr.mxu0 0.0
  %3157 = vmatpush1.msra.mxu0 0.0
  %3158 = vmatprep.subr.mxu0 0.0
  %3159 = vmatpush1.msra.mxu0 0.0
  %3160 = vmatprep.subr.mxu0 0.0
  %3161 = vmatpush1.msra.mxu0 0.0
  %3162 = vmatprep.subr.mxu0 0.0
  %3163 = vmatpush1.msra.mxu0 0.0
  %3164 = vmatprep.subr.mxu0 0.0
  %3165 = vmatpush1.msra.mxu0 0.0
  %3166 = vmatprep.subr.mxu0 0.0
  %3167 = vmatpush1.msra.mxu0 0.0
  %3168 = vmatprep.subr.mxu0 0.0
  %3169 = vmatpush1.msra.mxu0 0.0
  %3170 = vmatprep.subr.mxu0 0.0
  %3171 = vmatpush1.msra.mxu0 0.0
  %3172 = vmatprep.subr.mxu0 0.0
  %3173 = vmatpush1.msra.mxu0 0.0
  %3174 = vmatprep.subr.mxu0 0.0
  %3175 = vmatpush1.msra.mxu0 0.0
  %3176 = vmatprep.subr.mxu0 0.0
  %3177 = vmatpush1.msra.mxu0 0.0
  %3178 = vmatprep.subr.mxu0 0.0
  %3179 = vmatpush1.msra.mxu0 0.0
  %3180 = vmatprep.subr.mxu0 0.0
  %3181 = vmatpush1.msra.mxu0 0.0
  %3182 = vmatprep.subr.mxu0 0.0
  %3183 = vmatpush1.msra.mxu0 0.0
  %3184 = vmatprep.subr.mxu0 0.0
  %3185 = vmatpush1.msra.mxu0 0.0
  %3186 = vmatprep.subr.mxu0 0.0
  %3187 = vmatpush1.msra.mxu0 0.0
  %3188 = vmatprep.subr.mxu0 0.0
  %3189 = vmatpush1.msra.mxu0 0.0
  %3190 = vmatprep.mubr.f32.mxu0 0.0
  %3191 = vmatmul.mubr.f32.gmra.mrb[0].mxu0 %v3124
  %v3192 = vpop.f32.mrb[0].mxu0
  %v3193 = vadd.f32 0.0, %v3192
  %v3194 = vpop.f32.mrb[0].mxu0
  %v3195 = vadd.f32 0.0, %v3194
  %3196 = vdwg.mxu0
  %v3199 = vrot.slane %v3193, 4
  %v3200 = vrot.slane %v3195, 4
  %v3203 = vadd.f32 %v744, %v3199
  %v3204 = vadd.f32 %v746, %v3200
  %v3205 = vxor.u32 %v3203, 2147483648
  %v3206 = vxor.u32 %v3204, 2147483648
  %v3207 = vmul.f32 %v3205, 1.442695
  %v3208 = vpow.pop %v3207
  %v3209 = vmul.f32 %v3206, 1.442695
  %v3210 = vpow.pop %v3209
  %v3211 = vadd.f32 %v3208, 1.0
  %v3212 = vadd.f32 %v3210, 1.0
  %v3213 = vrcp.pop %v3211
  %v3214 = vmul.f32 1.0, %v3213
  %v3215 = vrcp.pop %v3212
  %v3216 = vmul.f32 1.0, %v3215
  %v3217 = vtanh.pop %v3204
  %v3219 = vrot.slane %v3117, 6
  %v3221 = vmul.f32 %v3214, %v3219
  %v3222 = vmul.f32 %v3214, %v3217
  %3224 = vrot.lane.b32.xlu0 %v3222, 64
  %v3225 = vpop.permute.xlu0 %3224
  %v3227 = vadd.f32 %v3221, %v3225
  %v3228 = vtanh.pop %v3227
  %v3229 = vmul.f32 %v3216, %v3228
  %v3231 = vrot.slane %v3229, 4
  %3232 = vrot.lane.b32.xlu0 %v3231, 64
  %v3233 = vpop.permute.xlu0 %3232
  %v3234 = vsel %vm427, %v3233, 0
  %3236 = vmatprep.subr.mxu0 %v601
  %3237 = vmatpush1.msra.mxu0 %v600
  %3238 = vmatprep.subr.mxu0 %v603
  %3239 = vmatpush1.msra.mxu0 %v602
  %3240 = vmatprep.subr.mxu0 %v605
  %3241 = vmatpush1.msra.mxu0 %v604
  %3242 = vmatprep.subr.mxu0 %v607
  %3243 = vmatpush1.msra.mxu0 %v606
  %3244 = vmatprep.subr.mxu0 %v609
  %3245 = vmatpush1.msra.mxu0 %v608
  %3246 = vmatprep.subr.mxu0 %v611
  %3247 = vmatpush1.msra.mxu0 %v610
  %3248 = vmatprep.subr.mxu0 %v613
  %3249 = vmatpush1.msra.mxu0 %v612
  %3250 = vmatprep.subr.mxu0 %v615
  %3251 = vmatpush1.msra.mxu0 %v614
  %3252 = vmatprep.subr.mxu0 0.0
  %3253 = vmatpush1.msra.mxu0 0.0
  %3254 = vmatprep.subr.mxu0 0.0
  %3255 = vmatpush1.msra.mxu0 0.0
  %3256 = vmatprep.subr.mxu0 0.0
  %3257 = vmatpush1.msra.mxu0 0.0
  %3258 = vmatprep.subr.mxu0 0.0
  %3259 = vmatpush1.msra.mxu0 0.0
  %3260 = vmatprep.subr.mxu0 0.0
  %3261 = vmatpush1.msra.mxu0 0.0
  %3262 = vmatprep.subr.mxu0 0.0
  %3263 = vmatpush1.msra.mxu0 0.0
  %3264 = vmatprep.subr.mxu0 0.0
  %3265 = vmatpush1.msra.mxu0 0.0
  %3266 = vmatprep.subr.mxu0 0.0
  %3267 = vmatpush1.msra.mxu0 0.0
  %3268 = vmatprep.subr.mxu0 0.0
  %3269 = vmatpush1.msra.mxu0 0.0
  %3270 = vmatprep.subr.mxu0 0.0
  %3271 = vmatpush1.msra.mxu0 0.0
  %3272 = vmatprep.subr.mxu0 0.0
  %3273 = vmatpush1.msra.mxu0 0.0
  %3274 = vmatprep.subr.mxu0 0.0
  %3275 = vmatpush1.msra.mxu0 0.0
  %3276 = vmatprep.subr.mxu0 0.0
  %3277 = vmatpush1.msra.mxu0 0.0
  %3278 = vmatprep.subr.mxu0 0.0
  %3279 = vmatpush1.msra.mxu0 0.0
  %3280 = vmatprep.subr.mxu0 0.0
  %3281 = vmatpush1.msra.mxu0 0.0
  %3282 = vmatprep.subr.mxu0 0.0
  %3283 = vmatpush1.msra.mxu0 0.0
  %3284 = vmatprep.subr.mxu0 0.0
  %3285 = vmatpush1.msra.mxu0 0.0
  %3286 = vmatprep.subr.mxu0 0.0
  %3287 = vmatpush1.msra.mxu0 0.0
  %3288 = vmatprep.subr.mxu0 0.0
  %3289 = vmatpush1.msra.mxu0 0.0
  %3290 = vmatprep.subr.mxu0 0.0
  %3291 = vmatpush1.msra.mxu0 0.0
  %3292 = vmatprep.subr.mxu0 0.0
  %3293 = vmatpush1.msra.mxu0 0.0
  %3294 = vmatprep.subr.mxu0 0.0
  %3295 = vmatpush1.msra.mxu0 0.0
  %3296 = vmatprep.subr.mxu0 0.0
  %3297 = vmatpush1.msra.mxu0 0.0
  %3298 = vmatprep.subr.mxu0 0.0
  %3299 = vmatpush1.msra.mxu0 0.0
  %3300 = vmatprep.mubr.f32.mxu0 0.0
  %3301 = vmatmul.mubr.f32.gmra.mrb[0].mxu0 %v3234
  %v3302 = vpop.f32.mrb[0].mxu0
  %v3303 = vadd.f32 0.0, %v3302
  %v3304 = vpop.f32.mrb[0].mxu0
  %v3305 = vadd.f32 0.0, %v3304
  %3306 = vdwg.mxu0
  %v3309 = vrot.slane %v3303, 2
  %v3310 = vrot.slane %v3305, 2
  %v3313 = vadd.f32 %v744, %v3309
  %v3314 = vadd.f32 %v746, %v3310
  %v3315 = vxor.u32 %v3313, 2147483648
  %v3316 = vxor.u32 %v3314, 2147483648
  %v3317 = vmul.f32 %v3315, 1.442695
  %v3318 = vpow.pop %v3317
  %v3319 = vmul.f32 %v3316, 1.442695
  %v3320 = vpow.pop %v3319
  %v3321 = vadd.f32 %v3318, 1.0
  %v3322 = vadd.f32 %v3320, 1.0
  %v3323 = vrcp.pop %v3321
  %v3324 = vmul.f32 1.0, %v3323
  %v3325 = vrcp.pop %v3322
  %v3326 = vmul.f32 1.0, %v3325
  %v3327 = vtanh.pop %v3314
  %v3329 = vrot.slane %v3227, 6
  %v3331 = vmul.f32 %v3324, %v3329
  %v3332 = vmul.f32 %v3324, %v3327
  %3334 = vrot.lane.b32.xlu0 %v3332, 64
  %v3335 = vpop.permute.xlu0 %3334
  %v3337 = vadd.f32 %v3331, %v3335
  %v3338 = vtanh.pop %v3337
  %v3339 = vmul.f32 %v3326, %v3338
  %v3340 = vlaneseq
  %v3341 = vshrl.u32 %v3340, 7
  %v3342 = vsub.s32 0, %v3341
  %v3343 = vrot.slane %v48, %v3342
  %v3345 = vrot.slane %v3339, 6
  %3346 = vrot.lane.b32.xlu0 %v3345, 64
  %v3347 = vpop.permute.xlu0 %3346
  %v3348 = vsel %vm427, %v3347, 0
  %3350 = vmatprep.subr.mxu0 0.0
  %3351 = vmatpush1.msra.mxu0 %v35
  %3352 = vmatprep.subr.mxu0 0.0
  %3353 = vmatpush1.msra.mxu0 %v36
  %3354 = vmatprep.subr.mxu0 0.0
  %3355 = vmatpush1.msra.mxu0 %v37
  %3356 = vmatprep.subr.mxu0 0.0
  %3357 = vmatpush1.msra.mxu0 %v38
  %3358 = vmatprep.subr.mxu0 0.0
  %3359 = vmatpush1.msra.mxu0 %v39
  %3360 = vmatprep.subr.mxu0 0.0
  %3361 = vmatpush1.msra.mxu0 %v40
  %3362 = vmatprep.subr.mxu0 0.0
  %3363 = vmatpush1.msra.mxu0 %v41
  %3364 = vmatprep.subr.mxu0 0.0
  %3365 = vmatpush1.msra.mxu0 %v42
  %3366 = vmatprep.subr.mxu0 0.0
  %3367 = vmatpush1.msra.mxu0 0.0
  %3368 = vmatprep.subr.mxu0 0.0
  %3369 = vmatpush1.msra.mxu0 0.0
  %3370 = vmatprep.subr.mxu0 0.0
  %3371 = vmatpush1.msra.mxu0 0.0
  %3372 = vmatprep.subr.mxu0 0.0
  %3373 = vmatpush1.msra.mxu0 0.0
  %3374 = vmatprep.subr.mxu0 0.0
  %3375 = vmatpush1.msra.mxu0 0.0
  %3376 = vmatprep.subr.mxu0 0.0
  %3377 = vmatpush1.msra.mxu0 0.0
  %3378 = vmatprep.subr.mxu0 0.0
  %3379 = vmatpush1.msra.mxu0 0.0
  %3380 = vmatprep.subr.mxu0 0.0
  %3381 = vmatpush1.msra.mxu0 0.0
  %3382 = vmatprep.subr.mxu0 0.0
  %3383 = vmatpush1.msra.mxu0 0.0
  %3384 = vmatprep.subr.mxu0 0.0
  %3385 = vmatpush1.msra.mxu0 0.0
  %3386 = vmatprep.subr.mxu0 0.0
  %3387 = vmatpush1.msra.mxu0 0.0
  %3388 = vmatprep.subr.mxu0 0.0
  %3389 = vmatpush1.msra.mxu0 0.0
  %3390 = vmatprep.subr.mxu0 0.0
  %3391 = vmatpush1.msra.mxu0 0.0
  %3392 = vmatprep.subr.mxu0 0.0
  %3393 = vmatpush1.msra.mxu0 0.0
  %3394 = vmatprep.subr.mxu0 0.0
  %3395 = vmatpush1.msra.mxu0 0.0
  %3396 = vmatprep.subr.mxu0 0.0
  %3397 = vmatpush1.msra.mxu0 0.0
  %3398 = vmatprep.subr.mxu0 0.0
  %3399 = vmatpush1.msra.mxu0 0.0
  %3400 = vmatprep.subr.mxu0 0.0
  %3401 = vmatpush1.msra.mxu0 0.0
  %3402 = vmatprep.subr.mxu0 0.0
  %3403 = vmatpush1.msra.mxu0 0.0
  %3404 = vmatprep.subr.mxu0 0.0
  %3405 = vmatpush1.msra.mxu0 0.0
  %3406 = vmatprep.subr.mxu0 0.0
  %3407 = vmatpush1.msra.mxu0 0.0
  %3408 = vmatprep.subr.mxu0 0.0
  %3409 = vmatpush1.msra.mxu0 0.0
  %3410 = vmatprep.subr.mxu0 0.0
  %3411 = vmatpush1.msra.mxu0 0.0
  %3412 = vmatprep.subr.mxu0 0.0
  %3413 = vmatpush1.msra.mxu0 0.0
  %3414 = vmatprep.mubr.f32.mxu0 0.0
  %3415 = vmatmul.mubr.f32.gmra.mrb[0].mxu0 %v3348
  %v3416 = vpop.f32.mrb[0].mxu0
  %v3417 = vadd.f32 %v3343, %v3416
  %v3418 = vpop.f32.mrb[0].mxu0
  %3419 = vdwg.mxu0
  %v3420 = vtanh.pop %v3417
  %v3421 = vmul.f32 %v3420, 0.2
  %v3422 = vadd.f32 %v3421, 0.8
  %3424 = vrot.lane.b32.xlu0 %v3422, 127
  %v3425 = vpop.permute.xlu0 %3424
  %v3427 = vmul.f32 %v3417, %v3425
  %vm3428 = vcmask 1024
  %3429 = vst.msk [vmem:[%s5] sm:$0x3] %vm3428, %v3427
  // Predicated region
  $region22: #{solana_forward_pallas.1} parent=0 // pred_check
    _
  $region23: #{solana_forward_pallas.1} parent=0 // pred_check_branch
    %3431 = sbr.rel (0) target = $region25
  $region24: #{solana_forward_pallas.1} parent=0 // pred_region
    _
  $region25: #{solana_forward_pallas.1} parent=0 // pred_fallthru
    _
  // Predicated region
  $region26: #{solana_forward_pallas.1} parent=0 // pred_check
    _
  $region27: #{solana_forward_pallas.1} parent=0 // pred_check_branch
    %3433 = sbr.rel (0) target = $region29
  $region28: #{solana_forward_pallas.1} parent=0 // pred_region
    _
  $region29: #{solana_forward_pallas.1} parent=0 // pred_fallthru
    _

</llo_original>
